<compile_context>
chip_gen: v7x
topology: tpu7x:2x2x1
jax: 0.10.0
libtpu: 0.0.40
codegen_flags: <defaults>
</compile_context>

<pallas_src>
import jax
import jax.numpy as jnp
from jax.experimental import pallas as pl
from jax.experimental.pallas import tpu as pltpu

# ---- module hyper-parameters (from the PyTorch source) ----------------------
DH = 50           # hidden size per direction
DW = 300          # embedding dim
N_WORDS = 30      # synthetic small vocabulary (len(words))
PAD = N_WORDS + 1
N_VOCAB = N_WORDS + 2
N_CLASSES = 4
BP = 8            # per-time-step batch block, padded to 8 sublanes

VMEM_SPEC = pl.BlockSpec(memory_space=pltpu.MemorySpace.VMEM)


# ---- fused 3-layer bi-RNN + linear-head kernel -------------------------------
def fused_rnn_kernel(ids_ref,    # (T*BP, 1) int32 token ids, time-major, batch-padded
                     emb_ref,    # (N_VOCAB, DW) bf16 embedding table
                     w1_ref,     # (2, DW, 2DH) bf16: [fwd-padded | bwd-padded] input proj
                     sq_ref,     # (7, 2DH, 2DH) bf16: U1, Ws2, Wc2, U2, Ws3, Wc3, U3
                     bias_ref,   # (4, 1, 2DH) f32: b1, b2, b3, head-bias (lane-padded)
                     head_ref,   # (2, 2DH, 4) bf16: head weights split per direction
                     out_ref):   # (BP, 4) f32
    TBP = ids_ref.shape[0]
    T = TBP // BP
    D2 = 2 * DH
    bf16 = jnp.bfloat16

    def mx(a, b):
        return jnp.dot(a, b, preferred_element_type=jnp.float32)

    # ---- embedding gather fused in-kernel as a one-hot MXU matmul -----------
    ids = ids_ref[...]                                               # (T*BP, 1)
    iota = jax.lax.broadcasted_iota(jnp.int32, (TBP, N_VOCAB), 1)
    onehot = (iota == ids).astype(bf16)
    x16 = mx(onehot, emb_ref[...]).astype(bf16)                      # (T*BP, DW)

    def rev_time(v):
        # reverse the T time blocks; 8-sublane-aligned slices -> plain vreg moves
        return jnp.concatenate(
            [v[(T - 1 - t) * BP:(T - t) * BP, :] for t in range(T)], axis=0)

    def recurrence(a, u16, h):
        """Fused bidirectional recurrence.

        `a` (T*BP, 2DH) f32 holds hoisted pre-activations: forward half in
        natural time order, backward half time-reversed, so step s reads one
        aligned (BP, 2DH) block. One (BP,2DH)x(2DH,2DH) bf16 matmul + one f32
        tanh per step; per-step h is kept in registers (no scratch stores).
        """
        hs = []
        for s in range(T):
            h = jnp.tanh(a[s * BP:(s + 1) * BP, :] + mx(h.astype(bf16), u16))
            hs.append(h)
        return hs

    b1 = bias_ref[0]
    b2 = bias_ref[1]
    b3 = bias_ref[2]
    bl = bias_ref[3][:, :N_CLASSES]

    # ---- layer 1: hoisted projection, then fused recurrence ------------------
    a1 = mx(x16, w1_ref[0]) + rev_time(mx(x16, w1_ref[1])) + b1
    hs1 = recurrence(a1, sq_ref[0], jnp.zeros((BP, D2), jnp.float32))

    # ---- layer 2 (h0 = layer-1 final fused hidden, matching the module) ------
    # A2 = Y1 @ W_same2 + rev(Y1) @ W_cross2 + b2 ; rev(Y1) is a free reordering.
    y1 = jnp.concatenate(hs1, axis=0).astype(bf16)
    y1r = jnp.concatenate(hs1[::-1], axis=0).astype(bf16)
    a2 = mx(y1, sq_ref[1]) + mx(y1r, sq_ref[2]) + b2
    hs2 = recurrence(a2, sq_ref[3], hs1[-1])

    # ---- layer 3 --------------------------------------------------------------
    y2 = jnp.concatenate(hs2, axis=0).astype(bf16)
    y2r = jnp.concatenate(hs2[::-1], axis=0).astype(bf16)
    a3 = mx(y2, sq_ref[4]) + mx(y2r, sq_ref[5]) + b3
    hs3 = recurrence(a3, sq_ref[6], hs2[-1])

    # ---- fused linear head on y3[:, -1, :] ------------------------------------
    # forward output at t=T-1 is hs3[-1] fwd half; backward output at t=T-1 is
    # hs3[0] bwd half. Head weights are zero-padded per direction -> no concat.
    out_ref[...] = (mx(hs3[-1].astype(bf16), head_ref[0])
                    + mx(hs3[0].astype(bf16), head_ref[1]) + bl)


# ---- full forward pass (matches RNN.forward semantics) -----------------------
def rnn_forward(tokens, params):
    B, T = tokens.shape
    assert B <= BP

    # Pad the batch to BP rows with the PAD token (whose embedding row is zero),
    # lay out time-major so row = t*BP + b (every per-step block is 8-aligned).
    tok = jnp.pad(tokens.astype(jnp.int32), ((0, BP - B), (0, 0)),
                  constant_values=PAD)                     # (BP, T)
    ids = jnp.transpose(tok).reshape(T * BP, 1)            # (T*BP, 1)

    logits = pl.pallas_call(
        fused_rnn_kernel,
        out_shape=jax.ShapeDtypeStruct((BP, N_CLASSES), jnp.float32),
        in_specs=[VMEM_SPEC] * 6,
        out_specs=VMEM_SPEC,
    )(ids, params["emb"], params["w1"], params["sq"],
      params["bias"], params["head"])
    return logits[:B]


# ---- deterministic parameter construction ------------------------------------
def make_params(key):
    keys = jax.random.split(key, 32)
    ki = iter(range(32))

    def uni(shape, scale):
        return jax.random.uniform(keys[next(ki)], shape, jnp.float32, -scale, scale)

    D2 = 2 * DH
    z = jnp.zeros((DH, DH), jnp.float32)

    def diag_blk(a, b):        # [[a, 0], [0, b]]
        return jnp.concatenate(
            [jnp.concatenate([a, z], axis=1),
             jnp.concatenate([z, b], axis=1)], axis=0)

    def anti_blk(tr, bl_):     # [[0, tr], [bl_, 0]]
        return jnp.concatenate(
            [jnp.concatenate([z, tr], axis=1),
             jnp.concatenate([bl_, z], axis=1)], axis=0)

    # Embedding ~ N(0, 1), padding_idx row zeroed (torch.nn.Embedding semantics)
    emb = jax.random.normal(keys[next(ki)], (N_VOCAB, DW), jnp.float32)
    emb = emb.at[PAD].set(0.0)

    scale = DH ** -0.5

    def rnn_dir(din):
        wih_t = uni((din, DH), scale)                      # W_ih^T
        whh_t = uni((DH, DH), scale)                       # W_hh^T
        b = uni((1, DH), scale) + uni((1, DH), scale)      # b_ih + b_hh
        return wih_t, whh_t, b

    # ---- layer 1 (input dim DW) ----
    w1f, u1f, b1f = rnn_dir(DW)
    w1b, u1b, b1b = rnn_dir(DW)
    zw = jnp.zeros((DW, DH), jnp.float32)
    w1 = jnp.stack([jnp.concatenate([w1f, zw], axis=1),    # -> forward lanes
                    jnp.concatenate([zw, w1b], axis=1)])   # -> backward lanes
    b1 = jnp.concatenate([b1f, b1b], axis=1)
    u1 = diag_blk(u1f, u1b)

    # ---- layers 2 & 3 (input dim 2*DH): same/cross split of W_ih -------------
    def inner_layer():
        wf, uf, bf = rnn_dir(D2)      # W_ih_fwd^T: rows :DH act on y_fwd half
        wb, ub, bb = rnn_dir(D2)      # W_ih_bwd^T
        w_same = diag_blk(wf[:DH], wb[DH:])     # [[Wff^T, 0], [0, Wbb^T]]
        w_cross = anti_blk(wb[:DH], wf[DH:])    # [[0, Wbf^T], [Wfb^T, 0]]
        u_blk = diag_blk(uf, ub)
        b = jnp.concatenate([bf, bb], axis=1)
        return w_same, w_cross, u_blk, b

    ws2, wc2, u2, b2 = inner_layer()
    ws3, wc3, u3, b3 = inner_layer()

    # ---- linear head, split by direction with zero padding (no lane concat) --
    lin_scale = D2 ** -0.5
    wl_t = uni((D2, N_CLASSES), lin_scale)                 # W^T (2DH, 4)
    bl = uni((1, N_CLASSES), lin_scale)
    zh = jnp.zeros((DH, N_CLASSES), jnp.float32)
    head = jnp.stack([jnp.concatenate([wl_t[:DH], zh], axis=0),
                      jnp.concatenate([zh, wl_t[DH:]], axis=0)])   # (2, 2DH, 4)

    bias = jnp.stack([b1, b2, b3,
                      jnp.pad(bl, ((0, 0), (0, D2 - N_CLASSES)))])  # (4, 1, 2DH)

    return dict(
        emb=emb.astype(jnp.bfloat16),                                 # (32, 300)
        w1=w1.astype(jnp.bfloat16),                                   # (2, 300, 100)
        sq=jnp.stack([u1, ws2, wc2, u2, ws3, wc3, u3]).astype(jnp.bfloat16),
        bias=bias,                                                    # (4, 1, 100) f32
        head=head.astype(jnp.bfloat16),                               # (2, 100, 4)
    )


if __name__ == "__main__":
    key = jax.random.PRNGKey(0)
    pkey, tkey = jax.random.split(key)

    params = make_params(pkey)

    B, T = 2, 8
    tokens = jax.random.randint(tkey, (B, T), 0, N_VOCAB, dtype=jnp.int32)
    # make sure a PAD token appears (exercises padding_idx zero-embedding)
    tokens = tokens.at[0, -1].set(PAD)

    logits = jax.jit(rnn_forward)(tokens, params)
    logits = jax.block_until_ready(logits)

    assert logits.shape == (B, N_CLASSES)
    assert logits.dtype == jnp.float32
    assert bool(jnp.all(jnp.isfinite(logits)))
    print("KERNEL_OK")
</pallas_src>

<mosaic_0001>
module attributes {stable_mosaic.version = 11 : i64} {
  func.func @fused_rnn_kernel(%arg0: memref<64x1xi32, #tpu.memory_space<vmem>>, %arg1: memref<32x300xbf16, #tpu.memory_space<vmem>>, %arg2: memref<2x300x100xbf16, #tpu.memory_space<vmem>>, %arg3: memref<7x100x100xbf16, #tpu.memory_space<vmem>>, %arg4: memref<4x1x100xf32, #tpu.memory_space<vmem>>, %arg5: memref<2x100x4xbf16, #tpu.memory_space<vmem>>, %arg6: memref<8x4xf32, #tpu.memory_space<vmem>>) attributes {dimension_semantics = [], scalar_prefetch = 0 : i64, scratch_operands = 0 : i64, tpu.core_type = #tpu.core_type<tc>} {
    %c0 = arith.constant 0 : index
    %c0_0 = arith.constant 0 : index
    %0 = vector.load %arg0[%c0, %c0_0] : memref<64x1xi32, #tpu.memory_space<vmem>>, vector<64x1xi32>
    %1 = tpu.iota {dimensions = array<i32: 1>} : vector<64x32xi32>
    %2 = vector.broadcast %0 : vector<64x1xi32> to vector<64x32xi32>
    %3 = arith.cmpi eq, %1, %2 : vector<64x32xi32>
    %4 = arith.extui %3 : vector<64x32xi1> to vector<64x32xi32>
    %5 = arith.sitofp %4 : vector<64x32xi32> to vector<64x32xf32>
    %6 = arith.truncf %5 : vector<64x32xf32> to vector<64x32xbf16>
    %c0_1 = arith.constant 0 : index
    %c0_2 = arith.constant 0 : index
    %7 = vector.load %arg1[%c0_1, %c0_2] : memref<32x300xbf16, #tpu.memory_space<vmem>>, vector<32x300xbf16>
    %cst = arith.constant dense<0.000000e+00> : vector<64x300xf32>
    %8 = tpu.matmul %6, %7, %cst {dimension_numbers = #tpu.dot_dimension_numbers<[1], [0], [0], [1], [0, 0, 1, 1], [], []>} : vector<64x32xbf16>, vector<32x300xbf16>, vector<64x300xf32> -> vector<64x300xf32>
    %9 = arith.truncf %8 : vector<64x300xf32> to vector<64x300xbf16>
    %c0_3 = arith.constant 0 : index
    %c0_4 = arith.constant 0 : index
    %c0_5 = arith.constant 0 : index
    %10 = vector.load %arg4[%c0_3, %c0_4, %c0_5] : memref<4x1x100xf32, #tpu.memory_space<vmem>>, vector<1x1x100xf32>
    %11 = vector.shape_cast %10 : vector<1x1x100xf32> to vector<1x100xf32>
    %c1 = arith.constant 1 : index
    %c0_6 = arith.constant 0 : index
    %c0_7 = arith.constant 0 : index
    %12 = vector.load %arg4[%c1, %c0_6, %c0_7] : memref<4x1x100xf32, #tpu.memory_space<vmem>>, vector<1x1x100xf32>
    %13 = vector.shape_cast %12 : vector<1x1x100xf32> to vector<1x100xf32>
    %c2 = arith.constant 2 : index
    %c0_8 = arith.constant 0 : index
    %c0_9 = arith.constant 0 : index
    %14 = vector.load %arg4[%c2, %c0_8, %c0_9] : memref<4x1x100xf32, #tpu.memory_space<vmem>>, vector<1x1x100xf32>
    %15 = vector.shape_cast %14 : vector<1x1x100xf32> to vector<1x100xf32>
    %c3 = arith.constant 3 : index
    %c0_10 = arith.constant 0 : index
    %c0_11 = arith.constant 0 : index
    %16 = vector.load %arg4[%c3, %c0_10, %c0_11] : memref<4x1x100xf32, #tpu.memory_space<vmem>>, vector<1x1x100xf32>
    %17 = vector.shape_cast %16 : vector<1x1x100xf32> to vector<1x100xf32>
    %18 = vector.extract_strided_slice %17 {offsets = [0, 0], sizes = [1, 4], strides = [1, 1]} : vector<1x100xf32> to vector<1x4xf32>
    %c0_12 = arith.constant 0 : index
    %c0_13 = arith.constant 0 : index
    %c0_14 = arith.constant 0 : index
    %19 = vector.load %arg2[%c0_12, %c0_13, %c0_14] : memref<2x300x100xbf16, #tpu.memory_space<vmem>>, vector<1x300x100xbf16>
    %20 = vector.shape_cast %19 : vector<1x300x100xbf16> to vector<300x100xbf16>
    %cst_15 = arith.constant dense<0.000000e+00> : vector<64x100xf32>
    %21 = tpu.matmul %9, %20, %cst_15 {dimension_numbers = #tpu.dot_dimension_numbers<[1], [0], [0], [1], [0, 0, 1, 1], [], []>} : vector<64x300xbf16>, vector<300x100xbf16>, vector<64x100xf32> -> vector<64x100xf32>
    %c1_16 = arith.constant 1 : index
    %c0_17 = arith.constant 0 : index
    %c0_18 = arith.constant 0 : index
    %22 = vector.load %arg2[%c1_16, %c0_17, %c0_18] : memref<2x300x100xbf16, #tpu.memory_space<vmem>>, vector<1x300x100xbf16>
    %23 = vector.shape_cast %22 : vector<1x300x100xbf16> to vector<300x100xbf16>
    %cst_19 = arith.constant dense<0.000000e+00> : vector<64x100xf32>
    %24 = tpu.matmul %9, %23, %cst_19 {dimension_numbers = #tpu.dot_dimension_numbers<[1], [0], [0], [1], [0, 0, 1, 1], [], []>} : vector<64x300xbf16>, vector<300x100xbf16>, vector<64x100xf32> -> vector<64x100xf32>
    %25 = vector.extract_strided_slice %24 {offsets = [56, 0], sizes = [8, 100], strides = [1, 1]} : vector<64x100xf32> to vector<8x100xf32>
    %26 = vector.extract_strided_slice %24 {offsets = [48, 0], sizes = [8, 100], strides = [1, 1]} : vector<64x100xf32> to vector<8x100xf32>
    %27 = vector.extract_strided_slice %24 {offsets = [40, 0], sizes = [8, 100], strides = [1, 1]} : vector<64x100xf32> to vector<8x100xf32>
    %28 = vector.extract_strided_slice %24 {offsets = [32, 0], sizes = [8, 100], strides = [1, 1]} : vector<64x100xf32> to vector<8x100xf32>
    %29 = vector.extract_strided_slice %24 {offsets = [24, 0], sizes = [8, 100], strides = [1, 1]} : vector<64x100xf32> to vector<8x100xf32>
    %30 = vector.extract_strided_slice %24 {offsets = [16, 0], sizes = [8, 100], strides = [1, 1]} : vector<64x100xf32> to vector<8x100xf32>
    %31 = vector.extract_strided_slice %24 {offsets = [8, 0], sizes = [8, 100], strides = [1, 1]} : vector<64x100xf32> to vector<8x100xf32>
    %32 = vector.extract_strided_slice %24 {offsets = [0, 0], sizes = [8, 100], strides = [1, 1]} : vector<64x100xf32> to vector<8x100xf32>
    %33 = tpu.concatenate %25, %26, %27, %28, %29, %30, %31, %32 in 0 : vector<8x100xf32>, vector<8x100xf32>, vector<8x100xf32>, vector<8x100xf32>, vector<8x100xf32>, vector<8x100xf32>, vector<8x100xf32>, vector<8x100xf32> -> vector<64x100xf32>
    %34 = arith.addf %21, %33 : vector<64x100xf32>
    %35 = vector.broadcast %11 : vector<1x100xf32> to vector<64x100xf32>
    %36 = arith.addf %34, %35 : vector<64x100xf32>
    %c0_20 = arith.constant 0 : index
    %c0_21 = arith.constant 0 : index
    %c0_22 = arith.constant 0 : index
    %37 = vector.load %arg3[%c0_20, %c0_21, %c0_22] : memref<7x100x100xbf16, #tpu.memory_space<vmem>>, vector<1x100x100xbf16>
    %38 = vector.shape_cast %37 : vector<1x100x100xbf16> to vector<100x100xbf16>
    %cst_23 = arith.constant 0.000000e+00 : f32
    %39 = vector.broadcast %cst_23 : f32 to vector<8x100xf32>
    %40 = vector.extract_strided_slice %36 {offsets = [0, 0], sizes = [8, 100], strides = [1, 1]} : vector<64x100xf32> to vector<8x100xf32>
    %41 = arith.truncf %39 : vector<8x100xf32> to vector<8x100xbf16>
    %cst_24 = arith.constant dense<0.000000e+00> : vector<8x100xf32>
    %42 = tpu.matmul %41, %38, %cst_24 {dimension_numbers = #tpu.dot_dimension_numbers<[1], [0], [0], [1], [0, 0, 1, 1], [], []>} : vector<8x100xbf16>, vector<100x100xbf16>, vector<8x100xf32> -> vector<8x100xf32>
    %43 = arith.addf %40, %42 : vector<8x100xf32>
    %44 = math.tanh %43 : vector<8x100xf32>
    %45 = vector.extract_strided_slice %36 {offsets = [8, 0], sizes = [8, 100], strides = [1, 1]} : vector<64x100xf32> to vector<8x100xf32>
    %46 = arith.truncf %44 : vector<8x100xf32> to vector<8x100xbf16>
    %cst_25 = arith.constant dense<0.000000e+00> : vector<8x100xf32>
    %47 = tpu.matmul %46, %38, %cst_25 {dimension_numbers = #tpu.dot_dimension_numbers<[1], [0], [0], [1], [0, 0, 1, 1], [], []>} : vector<8x100xbf16>, vector<100x100xbf16>, vector<8x100xf32> -> vector<8x100xf32>
    %48 = arith.addf %45, %47 : vector<8x100xf32>
    %49 = math.tanh %48 : vector<8x100xf32>
    %50 = vector.extract_strided_slice %36 {offsets = [16, 0], sizes = [8, 100], strides = [1, 1]} : vector<64x100xf32> to vector<8x100xf32>
    %51 = arith.truncf %49 : vector<8x100xf32> to vector<8x100xbf16>
    %cst_26 = arith.constant dense<0.000000e+00> : vector<8x100xf32>
    %52 = tpu.matmul %51, %38, %cst_26 {dimension_numbers = #tpu.dot_dimension_numbers<[1], [0], [0], [1], [0, 0, 1, 1], [], []>} : vector<8x100xbf16>, vector<100x100xbf16>, vector<8x100xf32> -> vector<8x100xf32>
    %53 = arith.addf %50, %52 : vector<8x100xf32>
    %54 = math.tanh %53 : vector<8x100xf32>
    %55 = vector.extract_strided_slice %36 {offsets = [24, 0], sizes = [8, 100], strides = [1, 1]} : vector<64x100xf32> to vector<8x100xf32>
    %56 = arith.truncf %54 : vector<8x100xf32> to vector<8x100xbf16>
    %cst_27 = arith.constant dense<0.000000e+00> : vector<8x100xf32>
    %57 = tpu.matmul %56, %38, %cst_27 {dimension_numbers = #tpu.dot_dimension_numbers<[1], [0], [0], [1], [0, 0, 1, 1], [], []>} : vector<8x100xbf16>, vector<100x100xbf16>, vector<8x100xf32> -> vector<8x100xf32>
    %58 = arith.addf %55, %57 : vector<8x100xf32>
    %59 = math.tanh %58 : vector<8x100xf32>
    %60 = vector.extract_strided_slice %36 {offsets = [32, 0], sizes = [8, 100], strides = [1, 1]} : vector<64x100xf32> to vector<8x100xf32>
    %61 = arith.truncf %59 : vector<8x100xf32> to vector<8x100xbf16>
    %cst_28 = arith.constant dense<0.000000e+00> : vector<8x100xf32>
    %62 = tpu.matmul %61, %38, %cst_28 {dimension_numbers = #tpu.dot_dimension_numbers<[1], [0], [0], [1], [0, 0, 1, 1], [], []>} : vector<8x100xbf16>, vector<100x100xbf16>, vector<8x100xf32> -> vector<8x100xf32>
    %63 = arith.addf %60, %62 : vector<8x100xf32>
    %64 = math.tanh %63 : vector<8x100xf32>
    %65 = vector.extract_strided_slice %36 {offsets = [40, 0], sizes = [8, 100], strides = [1, 1]} : vector<64x100xf32> to vector<8x100xf32>
    %66 = arith.truncf %64 : vector<8x100xf32> to vector<8x100xbf16>
    %cst_29 = arith.constant dense<0.000000e+00> : vector<8x100xf32>
    %67 = tpu.matmul %66, %38, %cst_29 {dimension_numbers = #tpu.dot_dimension_numbers<[1], [0], [0], [1], [0, 0, 1, 1], [], []>} : vector<8x100xbf16>, vector<100x100xbf16>, vector<8x100xf32> -> vector<8x100xf32>
    %68 = arith.addf %65, %67 : vector<8x100xf32>
    %69 = math.tanh %68 : vector<8x100xf32>
    %70 = vector.extract_strided_slice %36 {offsets = [48, 0], sizes = [8, 100], strides = [1, 1]} : vector<64x100xf32> to vector<8x100xf32>
    %71 = arith.truncf %69 : vector<8x100xf32> to vector<8x100xbf16>
    %cst_30 = arith.constant dense<0.000000e+00> : vector<8x100xf32>
    %72 = tpu.matmul %71, %38, %cst_30 {dimension_numbers = #tpu.dot_dimension_numbers<[1], [0], [0], [1], [0, 0, 1, 1], [], []>} : vector<8x100xbf16>, vector<100x100xbf16>, vector<8x100xf32> -> vector<8x100xf32>
    %73 = arith.addf %70, %72 : vector<8x100xf32>
    %74 = math.tanh %73 : vector<8x100xf32>
    %75 = vector.extract_strided_slice %36 {offsets = [56, 0], sizes = [8, 100], strides = [1, 1]} : vector<64x100xf32> to vector<8x100xf32>
    %76 = arith.truncf %74 : vector<8x100xf32> to vector<8x100xbf16>
    %cst_31 = arith.constant dense<0.000000e+00> : vector<8x100xf32>
    %77 = tpu.matmul %76, %38, %cst_31 {dimension_numbers = #tpu.dot_dimension_numbers<[1], [0], [0], [1], [0, 0, 1, 1], [], []>} : vector<8x100xbf16>, vector<100x100xbf16>, vector<8x100xf32> -> vector<8x100xf32>
    %78 = arith.addf %75, %77 : vector<8x100xf32>
    %79 = math.tanh %78 : vector<8x100xf32>
    %80 = tpu.concatenate %44, %49, %54, %59, %64, %69, %74, %79 in 0 : vector<8x100xf32>, vector<8x100xf32>, vector<8x100xf32>, vector<8x100xf32>, vector<8x100xf32>, vector<8x100xf32>, vector<8x100xf32>, vector<8x100xf32> -> vector<64x100xf32>
    %81 = arith.truncf %80 : vector<64x100xf32> to vector<64x100xbf16>
    %82 = tpu.concatenate %79, %74, %69, %64, %59, %54, %49, %44 in 0 : vector<8x100xf32>, vector<8x100xf32>, vector<8x100xf32>, vector<8x100xf32>, vector<8x100xf32>, vector<8x100xf32>, vector<8x100xf32>, vector<8x100xf32> -> vector<64x100xf32>
    %83 = arith.truncf %82 : vector<64x100xf32> to vector<64x100xbf16>
    %c1_32 = arith.constant 1 : index
    %c0_33 = arith.constant 0 : index
    %c0_34 = arith.constant 0 : index
    %84 = vector.load %arg3[%c1_32, %c0_33, %c0_34] : memref<7x100x100xbf16, #tpu.memory_space<vmem>>, vector<1x100x100xbf16>
    %85 = vector.shape_cast %84 : vector<1x100x100xbf16> to vector<100x100xbf16>
    %cst_35 = arith.constant dense<0.000000e+00> : vector<64x100xf32>
    %86 = tpu.matmul %81, %85, %cst_35 {dimension_numbers = #tpu.dot_dimension_numbers<[1], [0], [0], [1], [0, 0, 1, 1], [], []>} : vector<64x100xbf16>, vector<100x100xbf16>, vector<64x100xf32> -> vector<64x100xf32>
    %c2_36 = arith.constant 2 : index
    %c0_37 = arith.constant 0 : index
    %c0_38 = arith.constant 0 : index
    %87 = vector.load %arg3[%c2_36, %c0_37, %c0_38] : memref<7x100x100xbf16, #tpu.memory_space<vmem>>, vector<1x100x100xbf16>
    %88 = vector.shape_cast %87 : vector<1x100x100xbf16> to vector<100x100xbf16>
    %cst_39 = arith.constant dense<0.000000e+00> : vector<64x100xf32>
    %89 = tpu.matmul %83, %88, %cst_39 {dimension_numbers = #tpu.dot_dimension_numbers<[1], [0], [0], [1], [0, 0, 1, 1], [], []>} : vector<64x100xbf16>, vector<100x100xbf16>, vector<64x100xf32> -> vector<64x100xf32>
    %90 = arith.addf %86, %89 : vector<64x100xf32>
    %91 = vector.broadcast %13 : vector<1x100xf32> to vector<64x100xf32>
    %92 = arith.addf %90, %91 : vector<64x100xf32>
    %c3_40 = arith.constant 3 : index
    %c0_41 = arith.constant 0 : index
    %c0_42 = arith.constant 0 : index
    %93 = vector.load %arg3[%c3_40, %c0_41, %c0_42] : memref<7x100x100xbf16, #tpu.memory_space<vmem>>, vector<1x100x100xbf16>
    %94 = vector.shape_cast %93 : vector<1x100x100xbf16> to vector<100x100xbf16>
    %95 = vector.extract_strided_slice %92 {offsets = [0, 0], sizes = [8, 100], strides = [1, 1]} : vector<64x100xf32> to vector<8x100xf32>
    %96 = arith.truncf %79 : vector<8x100xf32> to vector<8x100xbf16>
    %cst_43 = arith.constant dense<0.000000e+00> : vector<8x100xf32>
    %97 = tpu.matmul %96, %94, %cst_43 {dimension_numbers = #tpu.dot_dimension_numbers<[1], [0], [0], [1], [0, 0, 1, 1], [], []>} : vector<8x100xbf16>, vector<100x100xbf16>, vector<8x100xf32> -> vector<8x100xf32>
    %98 = arith.addf %95, %97 : vector<8x100xf32>
    %99 = math.tanh %98 : vector<8x100xf32>
    %100 = vector.extract_strided_slice %92 {offsets = [8, 0], sizes = [8, 100], strides = [1, 1]} : vector<64x100xf32> to vector<8x100xf32>
    %101 = arith.truncf %99 : vector<8x100xf32> to vector<8x100xbf16>
    %cst_44 = arith.constant dense<0.000000e+00> : vector<8x100xf32>
    %102 = tpu.matmul %101, %94, %cst_44 {dimension_numbers = #tpu.dot_dimension_numbers<[1], [0], [0], [1], [0, 0, 1, 1], [], []>} : vector<8x100xbf16>, vector<100x100xbf16>, vector<8x100xf32> -> vector<8x100xf32>
    %103 = arith.addf %100, %102 : vector<8x100xf32>
    %104 = math.tanh %103 : vector<8x100xf32>
    %105 = vector.extract_strided_slice %92 {offsets = [16, 0], sizes = [8, 100], strides = [1, 1]} : vector<64x100xf32> to vector<8x100xf32>
    %106 = arith.truncf %104 : vector<8x100xf32> to vector<8x100xbf16>
    %cst_45 = arith.constant dense<0.000000e+00> : vector<8x100xf32>
    %107 = tpu.matmul %106, %94, %cst_45 {dimension_numbers = #tpu.dot_dimension_numbers<[1], [0], [0], [1], [0, 0, 1, 1], [], []>} : vector<8x100xbf16>, vector<100x100xbf16>, vector<8x100xf32> -> vector<8x100xf32>
    %108 = arith.addf %105, %107 : vector<8x100xf32>
    %109 = math.tanh %108 : vector<8x100xf32>
    %110 = vector.extract_strided_slice %92 {offsets = [24, 0], sizes = [8, 100], strides = [1, 1]} : vector<64x100xf32> to vector<8x100xf32>
    %111 = arith.truncf %109 : vector<8x100xf32> to vector<8x100xbf16>
    %cst_46 = arith.constant dense<0.000000e+00> : vector<8x100xf32>
    %112 = tpu.matmul %111, %94, %cst_46 {dimension_numbers = #tpu.dot_dimension_numbers<[1], [0], [0], [1], [0, 0, 1, 1], [], []>} : vector<8x100xbf16>, vector<100x100xbf16>, vector<8x100xf32> -> vector<8x100xf32>
    %113 = arith.addf %110, %112 : vector<8x100xf32>
    %114 = math.tanh %113 : vector<8x100xf32>
    %115 = vector.extract_strided_slice %92 {offsets = [32, 0], sizes = [8, 100], strides = [1, 1]} : vector<64x100xf32> to vector<8x100xf32>
    %116 = arith.truncf %114 : vector<8x100xf32> to vector<8x100xbf16>
    %cst_47 = arith.constant dense<0.000000e+00> : vector<8x100xf32>
    %117 = tpu.matmul %116, %94, %cst_47 {dimension_numbers = #tpu.dot_dimension_numbers<[1], [0], [0], [1], [0, 0, 1, 1], [], []>} : vector<8x100xbf16>, vector<100x100xbf16>, vector<8x100xf32> -> vector<8x100xf32>
    %118 = arith.addf %115, %117 : vector<8x100xf32>
    %119 = math.tanh %118 : vector<8x100xf32>
    %120 = vector.extract_strided_slice %92 {offsets = [40, 0], sizes = [8, 100], strides = [1, 1]} : vector<64x100xf32> to vector<8x100xf32>
    %121 = arith.truncf %119 : vector<8x100xf32> to vector<8x100xbf16>
    %cst_48 = arith.constant dense<0.000000e+00> : vector<8x100xf32>
    %122 = tpu.matmul %121, %94, %cst_48 {dimension_numbers = #tpu.dot_dimension_numbers<[1], [0], [0], [1], [0, 0, 1, 1], [], []>} : vector<8x100xbf16>, vector<100x100xbf16>, vector<8x100xf32> -> vector<8x100xf32>
    %123 = arith.addf %120, %122 : vector<8x100xf32>
    %124 = math.tanh %123 : vector<8x100xf32>
    %125 = vector.extract_strided_slice %92 {offsets = [48, 0], sizes = [8, 100], strides = [1, 1]} : vector<64x100xf32> to vector<8x100xf32>
    %126 = arith.truncf %124 : vector<8x100xf32> to vector<8x100xbf16>
    %cst_49 = arith.constant dense<0.000000e+00> : vector<8x100xf32>
    %127 = tpu.matmul %126, %94, %cst_49 {dimension_numbers = #tpu.dot_dimension_numbers<[1], [0], [0], [1], [0, 0, 1, 1], [], []>} : vector<8x100xbf16>, vector<100x100xbf16>, vector<8x100xf32> -> vector<8x100xf32>
    %128 = arith.addf %125, %127 : vector<8x100xf32>
    %129 = math.tanh %128 : vector<8x100xf32>
    %130 = vector.extract_strided_slice %92 {offsets = [56, 0], sizes = [8, 100], strides = [1, 1]} : vector<64x100xf32> to vector<8x100xf32>
    %131 = arith.truncf %129 : vector<8x100xf32> to vector<8x100xbf16>
    %cst_50 = arith.constant dense<0.000000e+00> : vector<8x100xf32>
    %132 = tpu.matmul %131, %94, %cst_50 {dimension_numbers = #tpu.dot_dimension_numbers<[1], [0], [0], [1], [0, 0, 1, 1], [], []>} : vector<8x100xbf16>, vector<100x100xbf16>, vector<8x100xf32> -> vector<8x100xf32>
    %133 = arith.addf %130, %132 : vector<8x100xf32>
    %134 = math.tanh %133 : vector<8x100xf32>
    %135 = tpu.concatenate %99, %104, %109, %114, %119, %124, %129, %134 in 0 : vector<8x100xf32>, vector<8x100xf32>, vector<8x100xf32>, vector<8x100xf32>, vector<8x100xf32>, vector<8x100xf32>, vector<8x100xf32>, vector<8x100xf32> -> vector<64x100xf32>
    %136 = arith.truncf %135 : vector<64x100xf32> to vector<64x100xbf16>
    %137 = tpu.concatenate %134, %129, %124, %119, %114, %109, %104, %99 in 0 : vector<8x100xf32>, vector<8x100xf32>, vector<8x100xf32>, vector<8x100xf32>, vector<8x100xf32>, vector<8x100xf32>, vector<8x100xf32>, vector<8x100xf32> -> vector<64x100xf32>
    %138 = arith.truncf %137 : vector<64x100xf32> to vector<64x100xbf16>
    %c4 = arith.constant 4 : index
    %c0_51 = arith.constant 0 : index
    %c0_52 = arith.constant 0 : index
    %139 = vector.load %arg3[%c4, %c0_51, %c0_52] : memref<7x100x100xbf16, #tpu.memory_space<vmem>>, vector<1x100x100xbf16>
    %140 = vector.shape_cast %139 : vector<1x100x100xbf16> to vector<100x100xbf16>
    %cst_53 = arith.constant dense<0.000000e+00> : vector<64x100xf32>
    %141 = tpu.matmul %136, %140, %cst_53 {dimension_numbers = #tpu.dot_dimension_numbers<[1], [0], [0], [1], [0, 0, 1, 1], [], []>} : vector<64x100xbf16>, vector<100x100xbf16>, vector<64x100xf32> -> vector<64x100xf32>
    %c5 = arith.constant 5 : index
    %c0_54 = arith.constant 0 : index
    %c0_55 = arith.constant 0 : index
    %142 = vector.load %arg3[%c5, %c0_54, %c0_55] : memref<7x100x100xbf16, #tpu.memory_space<vmem>>, vector<1x100x100xbf16>
    %143 = vector.shape_cast %142 : vector<1x100x100xbf16> to vector<100x100xbf16>
    %cst_56 = arith.constant dense<0.000000e+00> : vector<64x100xf32>
    %144 = tpu.matmul %138, %143, %cst_56 {dimension_numbers = #tpu.dot_dimension_numbers<[1], [0], [0], [1], [0, 0, 1, 1], [], []>} : vector<64x100xbf16>, vector<100x100xbf16>, vector<64x100xf32> -> vector<64x100xf32>
    %145 = arith.addf %141, %144 : vector<64x100xf32>
    %146 = vector.broadcast %15 : vector<1x100xf32> to vector<64x100xf32>
    %147 = arith.addf %145, %146 : vector<64x100xf32>
    %c6 = arith.constant 6 : index
    %c0_57 = arith.constant 0 : index
    %c0_58 = arith.constant 0 : index
    %148 = vector.load %arg3[%c6, %c0_57, %c0_58] : memref<7x100x100xbf16, #tpu.memory_space<vmem>>, vector<1x100x100xbf16>
    %149 = vector.shape_cast %148 : vector<1x100x100xbf16> to vector<100x100xbf16>
    %150 = vector.extract_strided_slice %147 {offsets = [0, 0], sizes = [8, 100], strides = [1, 1]} : vector<64x100xf32> to vector<8x100xf32>
    %151 = arith.truncf %134 : vector<8x100xf32> to vector<8x100xbf16>
    %cst_59 = arith.constant dense<0.000000e+00> : vector<8x100xf32>
    %152 = tpu.matmul %151, %149, %cst_59 {dimension_numbers = #tpu.dot_dimension_numbers<[1], [0], [0], [1], [0, 0, 1, 1], [], []>} : vector<8x100xbf16>, vector<100x100xbf16>, vector<8x100xf32> -> vector<8x100xf32>
    %153 = arith.addf %150, %152 : vector<8x100xf32>
    %154 = math.tanh %153 : vector<8x100xf32>
    %155 = vector.extract_strided_slice %147 {offsets = [8, 0], sizes = [8, 100], strides = [1, 1]} : vector<64x100xf32> to vector<8x100xf32>
    %156 = arith.truncf %154 : vector<8x100xf32> to vector<8x100xbf16>
    %cst_60 = arith.constant dense<0.000000e+00> : vector<8x100xf32>
    %157 = tpu.matmul %156, %149, %cst_60 {dimension_numbers = #tpu.dot_dimension_numbers<[1], [0], [0], [1], [0, 0, 1, 1], [], []>} : vector<8x100xbf16>, vector<100x100xbf16>, vector<8x100xf32> -> vector<8x100xf32>
    %158 = arith.addf %155, %157 : vector<8x100xf32>
    %159 = math.tanh %158 : vector<8x100xf32>
    %160 = vector.extract_strided_slice %147 {offsets = [16, 0], sizes = [8, 100], strides = [1, 1]} : vector<64x100xf32> to vector<8x100xf32>
    %161 = arith.truncf %159 : vector<8x100xf32> to vector<8x100xbf16>
    %cst_61 = arith.constant dense<0.000000e+00> : vector<8x100xf32>
    %162 = tpu.matmul %161, %149, %cst_61 {dimension_numbers = #tpu.dot_dimension_numbers<[1], [0], [0], [1], [0, 0, 1, 1], [], []>} : vector<8x100xbf16>, vector<100x100xbf16>, vector<8x100xf32> -> vector<8x100xf32>
    %163 = arith.addf %160, %162 : vector<8x100xf32>
    %164 = math.tanh %163 : vector<8x100xf32>
    %165 = vector.extract_strided_slice %147 {offsets = [24, 0], sizes = [8, 100], strides = [1, 1]} : vector<64x100xf32> to vector<8x100xf32>
    %166 = arith.truncf %164 : vector<8x100xf32> to vector<8x100xbf16>
    %cst_62 = arith.constant dense<0.000000e+00> : vector<8x100xf32>
    %167 = tpu.matmul %166, %149, %cst_62 {dimension_numbers = #tpu.dot_dimension_numbers<[1], [0], [0], [1], [0, 0, 1, 1], [], []>} : vector<8x100xbf16>, vector<100x100xbf16>, vector<8x100xf32> -> vector<8x100xf32>
    %168 = arith.addf %165, %167 : vector<8x100xf32>
    %169 = math.tanh %168 : vector<8x100xf32>
    %170 = vector.extract_strided_slice %147 {offsets = [32, 0], sizes = [8, 100], strides = [1, 1]} : vector<64x100xf32> to vector<8x100xf32>
    %171 = arith.truncf %169 : vector<8x100xf32> to vector<8x100xbf16>
    %cst_63 = arith.constant dense<0.000000e+00> : vector<8x100xf32>
    %172 = tpu.matmul %171, %149, %cst_63 {dimension_numbers = #tpu.dot_dimension_numbers<[1], [0], [0], [1], [0, 0, 1, 1], [], []>} : vector<8x100xbf16>, vector<100x100xbf16>, vector<8x100xf32> -> vector<8x100xf32>
    %173 = arith.addf %170, %172 : vector<8x100xf32>
    %174 = math.tanh %173 : vector<8x100xf32>
    %175 = vector.extract_strided_slice %147 {offsets = [40, 0], sizes = [8, 100], strides = [1, 1]} : vector<64x100xf32> to vector<8x100xf32>
    %176 = arith.truncf %174 : vector<8x100xf32> to vector<8x100xbf16>
    %cst_64 = arith.constant dense<0.000000e+00> : vector<8x100xf32>
    %177 = tpu.matmul %176, %149, %cst_64 {dimension_numbers = #tpu.dot_dimension_numbers<[1], [0], [0], [1], [0, 0, 1, 1], [], []>} : vector<8x100xbf16>, vector<100x100xbf16>, vector<8x100xf32> -> vector<8x100xf32>
    %178 = arith.addf %175, %177 : vector<8x100xf32>
    %179 = math.tanh %178 : vector<8x100xf32>
    %180 = vector.extract_strided_slice %147 {offsets = [48, 0], sizes = [8, 100], strides = [1, 1]} : vector<64x100xf32> to vector<8x100xf32>
    %181 = arith.truncf %179 : vector<8x100xf32> to vector<8x100xbf16>
    %cst_65 = arith.constant dense<0.000000e+00> : vector<8x100xf32>
    %182 = tpu.matmul %181, %149, %cst_65 {dimension_numbers = #tpu.dot_dimension_numbers<[1], [0], [0], [1], [0, 0, 1, 1], [], []>} : vector<8x100xbf16>, vector<100x100xbf16>, vector<8x100xf32> -> vector<8x100xf32>
    %183 = arith.addf %180, %182 : vector<8x100xf32>
    %184 = math.tanh %183 : vector<8x100xf32>
    %185 = vector.extract_strided_slice %147 {offsets = [56, 0], sizes = [8, 100], strides = [1, 1]} : vector<64x100xf32> to vector<8x100xf32>
    %186 = arith.truncf %184 : vector<8x100xf32> to vector<8x100xbf16>
    %cst_66 = arith.constant dense<0.000000e+00> : vector<8x100xf32>
    %187 = tpu.matmul %186, %149, %cst_66 {dimension_numbers = #tpu.dot_dimension_numbers<[1], [0], [0], [1], [0, 0, 1, 1], [], []>} : vector<8x100xbf16>, vector<100x100xbf16>, vector<8x100xf32> -> vector<8x100xf32>
    %188 = arith.addf %185, %187 : vector<8x100xf32>
    %189 = math.tanh %188 : vector<8x100xf32>
    %190 = arith.truncf %189 : vector<8x100xf32> to vector<8x100xbf16>
    %c0_67 = arith.constant 0 : index
    %c0_68 = arith.constant 0 : index
    %c0_69 = arith.constant 0 : index
    %191 = vector.load %arg5[%c0_67, %c0_68, %c0_69] : memref<2x100x4xbf16, #tpu.memory_space<vmem>>, vector<1x100x4xbf16>
    %192 = vector.shape_cast %191 : vector<1x100x4xbf16> to vector<100x4xbf16>
    %cst_70 = arith.constant dense<0.000000e+00> : vector<8x4xf32>
    %193 = tpu.matmul %190, %192, %cst_70 {dimension_numbers = #tpu.dot_dimension_numbers<[1], [0], [0], [1], [0, 0, 1, 1], [], []>} : vector<8x100xbf16>, vector<100x4xbf16>, vector<8x4xf32> -> vector<8x4xf32>
    %194 = arith.truncf %154 : vector<8x100xf32> to vector<8x100xbf16>
    %c1_71 = arith.constant 1 : index
    %c0_72 = arith.constant 0 : index
    %c0_73 = arith.constant 0 : index
    %195 = vector.load %arg5[%c1_71, %c0_72, %c0_73] : memref<2x100x4xbf16, #tpu.memory_space<vmem>>, vector<1x100x4xbf16>
    %196 = vector.shape_cast %195 : vector<1x100x4xbf16> to vector<100x4xbf16>
    %cst_74 = arith.constant dense<0.000000e+00> : vector<8x4xf32>
    %197 = tpu.matmul %194, %196, %cst_74 {dimension_numbers = #tpu.dot_dimension_numbers<[1], [0], [0], [1], [0, 0, 1, 1], [], []>} : vector<8x100xbf16>, vector<100x4xbf16>, vector<8x4xf32> -> vector<8x4xf32>
    %198 = arith.addf %193, %197 : vector<8x4xf32>
    %199 = vector.broadcast %18 : vector<1x4xf32> to vector<8x4xf32>
    %200 = arith.addf %198, %199 : vector<8x4xf32>
    %c0_75 = arith.constant 0 : index
    %c0_76 = arith.constant 0 : index
    %201 = vector.load %arg6[%c0_75, %c0_76] : memref<8x4xf32, #tpu.memory_space<vmem>>, vector<8x4xf32>
    tpu.vector_store %arg6[%c0_75, %c0_76], %200 {strides = array<i32>} : memref<8x4xf32, #tpu.memory_space<vmem>>, vector<8x4xf32>,
    return
  }
}

</mosaic_0001>

<llo_original>
// kernel: rnn_forward.1
$region0: #{rnn_forward.1}
  #allocation0 [shape = 'u32[]', space=smem, size = 0x4, offset = 0x4, fixed_abs, tag = 'smem constant byte address 0x4 - core index']
  #allocation1 [shape = 'u32[144,128]{1,0:T(1,128)}', space=vmem, size = 0x12000, scoped, tag = 'internal scratch']
  %s0 = inlined_call_operand.vmem [shape: s32[64,1], index: 0, kind: input, shape index: {}]
  %s1 = inlined_call_operand.vmem [shape: bf16[32,300], index: 1, kind: input, shape index: {}]
  %s2 = inlined_call_operand.vmem [shape: bf16[2,300,100], index: 2, kind: input, shape index: {}]
  %s3 = inlined_call_operand.vmem [shape: bf16[7,100,100], index: 3, kind: input, shape index: {}]
  %s4 = inlined_call_operand.vmem [shape: f32[4,1,100], index: 4, kind: input, shape index: {}]
  %s5 = inlined_call_operand.vmem [shape: bf16[2,100,4], index: 5, kind: input, shape index: {}]
  %s6 = inlined_call_operand.vmem [shape: f32[8,4], index: 6, kind: output, shape index: {}]
  %s7 = sld [smem:[#allocation0]]
  $region34: #{rnn_forward.1} parent=0
    _
  %s9 = ssub.s32 1, %s7
  %s10 = scalar_select 0, %s9, %s7
  // Predicated region
  $region2: #{rnn_forward.1} parent=0 // pred_check
    _
  $region3: #{rnn_forward.1} parent=0 // pred_check_branch
    %12 = sbr.rel (0) target = $region5
  $region4: #{rnn_forward.1} parent=0 // pred_region
    _
  $region5: #{rnn_forward.1} parent=0 // pred_fallthru
    _
  // Predicated region
  $region6: #{rnn_forward.1} parent=0 // pred_check
    _
  $region7: #{rnn_forward.1} parent=0 // pred_check_branch
    %14 = sbr.rel (0) target = $region9
  $region8: #{rnn_forward.1} parent=0 // pred_region
    _
  $region9: #{rnn_forward.1} parent=0 // pred_fallthru
    _
  // Predicated region
  $region10: #{rnn_forward.1} parent=0 // pred_check
    _
  $region11: #{rnn_forward.1} parent=0 // pred_check_branch
    %16 = sbr.rel (0) target = $region13
  $region12: #{rnn_forward.1} parent=0 // pred_region
    _
  $region13: #{rnn_forward.1} parent=0 // pred_fallthru
    _
  // Predicated region
  $region14: #{rnn_forward.1} parent=0 // pred_check
    _
  $region15: #{rnn_forward.1} parent=0 // pred_check_branch
    %18 = sbr.rel (0) target = $region17
  $region16: #{rnn_forward.1} parent=0 // pred_region
    _
  $region17: #{rnn_forward.1} parent=0 // pred_fallthru
    _
  // Predicated region
  $region18: #{rnn_forward.1} parent=0 // pred_check
    _
  $region19: #{rnn_forward.1} parent=0 // pred_check_branch
    %20 = sbr.rel (0) target = $region21
  $region20: #{rnn_forward.1} parent=0 // pred_region
    _
  $region21: #{rnn_forward.1} parent=0 // pred_fallthru
    _
  // Predicated region
  $region22: #{rnn_forward.1} parent=0 // pred_check
    _
  $region23: #{rnn_forward.1} parent=0 // pred_check_branch
    %22 = sbr.rel (0) target = $region25
  $region24: #{rnn_forward.1} parent=0 // pred_region
    _
  $region25: #{rnn_forward.1} parent=0 // pred_fallthru
    _
  %v24 = vld [vmem:[%s0] sm:$0xff]
  %v25 = vld [vmem:[%s0 + $0x8] sm:$0xff]
  %v26 = vld [vmem:[%s0 + $0x10] sm:$0xff]
  %v27 = vld [vmem:[%s0 + $0x18] sm:$0xff]
  %v28 = vld [vmem:[%s0 + $0x20] sm:$0xff]
  %v29 = vld [vmem:[%s0 + $0x28] sm:$0xff]
  %v30 = vld [vmem:[%s0 + $0x30] sm:$0xff]
  %v31 = vld [vmem:[%s0 + $0x38] sm:$0xff]
  %v32 = vlaneseq
  %v33 = vand.u32 %v32, 127
  %34 = vset.pattern.permute.xlu0 0
  %35 = vperm.xlu0 %34, %v24
  %v36 = vpop.permute.xlu0 %35
  %37 = vset.pattern.permute.xlu0 0
  %38 = vperm.xlu0 %37, %v25
  %v39 = vpop.permute.xlu0 %38
  %40 = vset.pattern.permute.xlu0 0
  %41 = vperm.xlu0 %40, %v26
  %v42 = vpop.permute.xlu0 %41
  %43 = vset.pattern.permute.xlu0 0
  %44 = vperm.xlu0 %43, %v27
  %v45 = vpop.permute.xlu0 %44
  %46 = vset.pattern.permute.xlu0 0
  %47 = vperm.xlu0 %46, %v28
  %v48 = vpop.permute.xlu0 %47
  %49 = vset.pattern.permute.xlu0 0
  %50 = vperm.xlu0 %49, %v29
  %v51 = vpop.permute.xlu0 %50
  %52 = vset.pattern.permute.xlu0 0
  %53 = vperm.xlu0 %52, %v30
  %v54 = vpop.permute.xlu0 %53
  %55 = vset.pattern.permute.xlu0 0
  %56 = vperm.xlu0 %55, %v31
  %v57 = vpop.permute.xlu0 %56
  %vm58 = vcmp.eq.s32.totalorder %v33, %v36
  %vm59 = vcmp.eq.s32.totalorder %v33, %v39
  %vm60 = vcmp.eq.s32.totalorder %v33, %v42
  %vm61 = vcmp.eq.s32.totalorder %v33, %v45
  %vm62 = vcmp.eq.s32.totalorder %v33, %v48
  %vm63 = vcmp.eq.s32.totalorder %v33, %v51
  %vm64 = vcmp.eq.s32.totalorder %v33, %v54
  %vm65 = vcmp.eq.s32.totalorder %v33, %v57
  %v66 = vsel %vm58, 1, 0
  %v67 = vsel %vm59, 1, 0
  %v68 = vsel %vm60, 1, 0
  %v69 = vsel %vm61, 1, 0
  %v70 = vsel %vm62, 1, 0
  %v71 = vsel %vm63, 1, 0
  %v72 = vsel %vm64, 1, 0
  %v73 = vsel %vm65, 1, 0
  %v74 = vcvt.s32.f32 %v66
  %v75 = vcvt.s32.f32 %v67
  %v76 = vcvt.s32.f32 %v68
  %v77 = vcvt.s32.f32 %v69
  %v78 = vcvt.s32.f32 %v70
  %v79 = vcvt.s32.f32 %v71
  %v80 = vcvt.s32.f32 %v72
  %v81 = vcvt.s32.f32 %v73
  %v82 = vpack.c.bf16 %v75, %v74
  %v83 = vpack.c.bf16 %v77, %v76
  %v84 = vpack.c.bf16 %v79, %v78
  %v85 = vpack.c.bf16 %v81, %v80
  %v86 = vld [vmem:[%s1] sm:$0xff]
  %v87 = vld [vmem:[%s1 + $0x8] sm:$0xf]
  %v88 = vld [vmem:[%s1 + $0xc] sm:$0xff]
  %v89 = vld [vmem:[%s1 + $0x14] sm:$0xf]
  %v90 = vld [vmem:[%s1 + $0x18] sm:$0xff]
  %v91 = vld [vmem:[%s1 + $0x20] sm:$0xf]
  %v92 = vld [vmem:[%s1 + $0x24] sm:$0xff]
  %v93 = vld [vmem:[%s1 + $0x2c] sm:$0xf]
  %v102 = vunpack.c.l.b16 %v86
  %v103 = vunpack.c.h.b16 %v86
  %v104 = vunpack.c.l.b16 %v87
  %v105 = vunpack.c.l.b16 %v88
  %v106 = vunpack.c.h.b16 %v88
  %v107 = vunpack.c.l.b16 %v89
  %v108 = vunpack.c.l.b16 %v90
  %v109 = vunpack.c.h.b16 %v90
  %v110 = vunpack.c.l.b16 %v91
  %v111 = vunpack.c.l.b16 %v92
  %v112 = vunpack.c.h.b16 %v92
  %v113 = vunpack.c.l.b16 %v93
  %v114 = vpack.c.b16 %v105, %v102
  %v115 = vpack.c.b16 %v106, %v103
  %v116 = vpack.c.b16 %v107, %v104
  %v117 = vpack.c.b16 %v111, %v108
  %v118 = vpack.c.b16 %v112, %v109
  %v119 = vpack.c.b16 %v113, %v110
  %vm126 = vcmask 261120
  %v128 = vsel %vm126, %v82, 0
  %v131 = vsel %vm126, %v83, 0
  %v134 = vsel %vm126, %v84, 0
  %v137 = vsel %vm126, %v85, 0
  %139 = vmatprep.subr.bf16.mxu0 %v115
  %140 = vmatpush1.bf16.msra.mxu0 %v114
  %141 = vmatprep.subr.bf16.mxu0 %v118
  %142 = vmatpush1.bf16.msra.mxu0 %v117
  %143 = vmatprep.subr.bf16.mxu0 0
  %144 = vmatpush1.bf16.msra.mxu0 0
  %145 = vmatprep.subr.bf16.mxu0 0
  %146 = vmatpush1.bf16.msra.mxu0 0
  %147 = vmatprep.subr.bf16.mxu0 0
  %148 = vmatpush1.bf16.msra.mxu0 0
  %149 = vmatprep.subr.bf16.mxu0 0
  %150 = vmatpush1.bf16.msra.mxu0 0
  %151 = vmatprep.subr.bf16.mxu0 0
  %152 = vmatpush1.bf16.msra.mxu0 0
  %153 = vmatprep.subr.bf16.mxu0 0
  %154 = vmatpush1.bf16.msra.mxu0 0
  %155 = vmatprep.subr.bf16.mxu0 0
  %156 = vmatpush1.bf16.msra.mxu0 0
  %157 = vmatprep.subr.bf16.mxu0 0
  %158 = vmatpush1.bf16.msra.mxu0 0
  %159 = vmatprep.subr.bf16.mxu0 0
  %160 = vmatpush1.bf16.msra.mxu0 0
  %161 = vmatprep.subr.bf16.mxu0 0
  %162 = vmatpush1.bf16.msra.mxu0 0
  %163 = vmatprep.subr.bf16.mxu0 0
  %164 = vmatpush1.bf16.msra.mxu0 0
  %165 = vmatprep.subr.bf16.mxu0 0
  %166 = vmatpush1.bf16.msra.mxu0 0
  %167 = vmatprep.subr.bf16.mxu0 0
  %168 = vmatpush1.bf16.msra.mxu0 0
  %169 = vmatprep.subr.bf16.mxu0 0
  %170 = vmatpush1.bf16.msra.mxu0 0
  %171 = vmatprep.mubr.bf16.mxu0 0
  %172 = vmatmul.mubr.bf16.gmra.mrb[0].mxu0 %v128
  %v173 = vpop.f32.mrb[0].mxu0
  %v174 = vadd.f32 0.0, %v173
  %v175 = vpop.f32.mrb[0].mxu0
  %v176 = vadd.f32 0.0, %v175
  %v177 = vpop.f32.mrb[0].mxu0
  %v178 = vadd.f32 0.0, %v177
  %v179 = vpop.f32.mrb[0].mxu0
  %v180 = vadd.f32 0.0, %v179
  %181 = vmatprep.mubr.bf16.mxu0 0
  %182 = vmatmul.mubr.bf16.gmra.mrb[0].mxu0 %v131
  %v183 = vpop.f32.mrb[0].mxu0
  %v184 = vadd.f32 0.0, %v183
  %v185 = vpop.f32.mrb[0].mxu0
  %v186 = vadd.f32 0.0, %v185
  %v187 = vpop.f32.mrb[0].mxu0
  %v188 = vadd.f32 0.0, %v187
  %v189 = vpop.f32.mrb[0].mxu0
  %v190 = vadd.f32 0.0, %v189
  %191 = vmatprep.mubr.bf16.mxu0 0
  %192 = vmatmul.mubr.bf16.gmra.mrb[0].mxu0 %v134
  %v193 = vpop.f32.mrb[0].mxu0
  %v194 = vadd.f32 0.0, %v193
  %v195 = vpop.f32.mrb[0].mxu0
  %v196 = vadd.f32 0.0, %v195
  %v197 = vpop.f32.mrb[0].mxu0
  %v198 = vadd.f32 0.0, %v197
  %v199 = vpop.f32.mrb[0].mxu0
  %v200 = vadd.f32 0.0, %v199
  %201 = vmatprep.mubr.bf16.mxu0 0
  %202 = vmatmul.mubr.bf16.gmra.mrb[0].mxu0 %v137
  %v203 = vpop.f32.mrb[0].mxu0
  %v204 = vadd.f32 0.0, %v203
  %v205 = vpop.f32.mrb[0].mxu0
  %v206 = vadd.f32 0.0, %v205
  %v207 = vpop.f32.mrb[0].mxu0
  %v208 = vadd.f32 0.0, %v207
  %v209 = vpop.f32.mrb[0].mxu0
  %v210 = vadd.f32 0.0, %v209
  %211 = vdwg.mxu0
  %212 = vmatprep.subr.bf16.mxu0 0
  %213 = vmatpush1.bf16.msra.mxu0 %v116
  %214 = vmatprep.subr.bf16.mxu0 0
  %215 = vmatpush1.bf16.msra.mxu0 %v119
  %216 = vmatprep.subr.bf16.mxu0 0
  %217 = vmatpush1.bf16.msra.mxu0 0
  %218 = vmatprep.subr.bf16.mxu0 0
  %219 = vmatpush1.bf16.msra.mxu0 0
  %220 = vmatprep.subr.bf16.mxu0 0
  %221 = vmatpush1.bf16.msra.mxu0 0
  %222 = vmatprep.subr.bf16.mxu0 0
  %223 = vmatpush1.bf16.msra.mxu0 0
  %224 = vmatprep.subr.bf16.mxu0 0
  %225 = vmatpush1.bf16.msra.mxu0 0
  %226 = vmatprep.subr.bf16.mxu0 0
  %227 = vmatpush1.bf16.msra.mxu0 0
  %228 = vmatprep.subr.bf16.mxu0 0
  %229 = vmatpush1.bf16.msra.mxu0 0
  %230 = vmatprep.subr.bf16.mxu0 0
  %231 = vmatpush1.bf16.msra.mxu0 0
  %232 = vmatprep.subr.bf16.mxu0 0
  %233 = vmatpush1.bf16.msra.mxu0 0
  %234 = vmatprep.subr.bf16.mxu0 0
  %235 = vmatpush1.bf16.msra.mxu0 0
  %236 = vmatprep.subr.bf16.mxu0 0
  %237 = vmatpush1.bf16.msra.mxu0 0
  %238 = vmatprep.subr.bf16.mxu0 0
  %239 = vmatpush1.bf16.msra.mxu0 0
  %240 = vmatprep.subr.bf16.mxu0 0
  %241 = vmatpush1.bf16.msra.mxu0 0
  %242 = vmatprep.subr.bf16.mxu0 0
  %243 = vmatpush1.bf16.msra.mxu0 0
  %244 = vmatprep.mubr.bf16.mxu0 0
  %245 = vmatmul.mubr.bf16.gmra.mrb[0].mxu0 %v128
  %v246 = vpop.f32.mrb[0].mxu0
  %v247 = vadd.f32 0.0, %v246
  %v248 = vpop.f32.mrb[0].mxu0
  %v249 = vpop.f32.mrb[0].mxu0
  %v250 = vadd.f32 0.0, %v249
  %v251 = vpop.f32.mrb[0].mxu0
  %252 = vmatprep.mubr.bf16.mxu0 0
  %253 = vmatmul.mubr.bf16.gmra.mrb[0].mxu0 %v131
  %v254 = vpop.f32.mrb[0].mxu0
  %v255 = vadd.f32 0.0, %v254
  %v256 = vpop.f32.mrb[0].mxu0
  %v257 = vpop.f32.mrb[0].mxu0
  %v258 = vadd.f32 0.0, %v257
  %v259 = vpop.f32.mrb[0].mxu0
  %260 = vmatprep.mubr.bf16.mxu0 0
  %261 = vmatmul.mubr.bf16.gmra.mrb[0].mxu0 %v134
  %v262 = vpop.f32.mrb[0].mxu0
  %v263 = vadd.f32 0.0, %v262
  %v264 = vpop.f32.mrb[0].mxu0
  %v265 = vpop.f32.mrb[0].mxu0
  %v266 = vadd.f32 0.0, %v265
  %v267 = vpop.f32.mrb[0].mxu0
  %268 = vmatprep.mubr.bf16.mxu0 0
  %269 = vmatmul.mubr.bf16.gmra.mrb[0].mxu0 %v137
  %v270 = vpop.f32.mrb[0].mxu0
  %v271 = vadd.f32 0.0, %v270
  %v272 = vpop.f32.mrb[0].mxu0
  %v273 = vpop.f32.mrb[0].mxu0
  %v274 = vadd.f32 0.0, %v273
  %v275 = vpop.f32.mrb[0].mxu0
  %276 = vdwg.mxu0
  %v277 = vpack.c.bf16 %v178, %v174
  %v278 = vpack.c.bf16 %v180, %v176
  %v279 = vpack.c.bf16 %v250, %v247
  %v280 = vpack.c.bf16 %v188, %v184
  %v281 = vpack.c.bf16 %v190, %v186
  %v282 = vpack.c.bf16 %v258, %v255
  %v283 = vpack.c.bf16 %v198, %v194
  %v284 = vpack.c.bf16 %v200, %v196
  %v285 = vpack.c.bf16 %v266, %v263
  %v286 = vpack.c.bf16 %v208, %v204
  %v287 = vpack.c.bf16 %v210, %v206
  %v288 = vpack.c.bf16 %v274, %v271
  %v289 = vld [vmem:[%s4] sm:$0x1]
  %s290 = scalar_lea.vmem %s4, 1
  %v291 = vld [vmem:[%s290] sm:$0x1]
  %s292 = scalar_lea.vmem %s4, 2
  %v293 = vld [vmem:[%s292] sm:$0x1]
  %s294 = scalar_lea.vmem %s4, 3
  %v295 = vld [vmem:[%s294] sm:$0x1]
  %v296 = vld [vmem:[%s2] sm:$0xf]
  %v297 = vld [vmem:[%s2 + $0x4] sm:$0xf]
  %v298 = vld [vmem:[%s2 + $0x8] sm:$0xf]
  %v299 = vld [vmem:[%s2 + $0xc] sm:$0xf]
  %v300 = vld [vmem:[%s2 + $0x10] sm:$0xf]
  %v301 = vld [vmem:[%s2 + $0x14] sm:$0xf]
  %v302 = vld [vmem:[%s2 + $0x18] sm:$0xf]
  %v303 = vld [vmem:[%s2 + $0x1c] sm:$0xf]
  %v304 = vld [vmem:[%s2 + $0x20] sm:$0xf]
  %v305 = vld [vmem:[%s2 + $0x24] sm:$0xf]
  %v306 = vld [vmem:[%s2 + $0x28] sm:$0xf]
  %v307 = vld [vmem:[%s2 + $0x2c] sm:$0xf]
  %v308 = vld [vmem:[%s2 + $0x30] sm:$0xf]
  %v309 = vld [vmem:[%s2 + $0x34] sm:$0xf]
  %v310 = vld [vmem:[%s2 + $0x38] sm:$0xf]
  %v311 = vld [vmem:[%s2 + $0x3c] sm:$0xf]
  %v312 = vld [vmem:[%s2 + $0x40] sm:$0xf]
  %v313 = vld [vmem:[%s2 + $0x44] sm:$0xf]
  %v314 = vld [vmem:[%s2 + $0x48] sm:$0xf]
  %v315 = vld [vmem:[%s2 + $0x4c] sm:$0xf]
  %v316 = vld [vmem:[%s2 + $0x50] sm:$0xf]
  %v317 = vld [vmem:[%s2 + $0x54] sm:$0xf]
  %v318 = vld [vmem:[%s2 + $0x58] sm:$0xf]
  %v319 = vld [vmem:[%s2 + $0x5c] sm:$0xf]
  %v320 = vld [vmem:[%s2 + $0x60] sm:$0xf]
  %v321 = vld [vmem:[%s2 + $0x64] sm:$0xf]
  %v322 = vld [vmem:[%s2 + $0x68] sm:$0xf]
  %v323 = vld [vmem:[%s2 + $0x6c] sm:$0xf]
  %v324 = vld [vmem:[%s2 + $0x70] sm:$0xf]
  %v325 = vld [vmem:[%s2 + $0x74] sm:$0xf]
  %v326 = vld [vmem:[%s2 + $0x78] sm:$0xf]
  %v327 = vld [vmem:[%s2 + $0x7c] sm:$0xf]
  %v328 = vld [vmem:[%s2 + $0x80] sm:$0xf]
  %v329 = vld [vmem:[%s2 + $0x84] sm:$0xf]
  %v330 = vld [vmem:[%s2 + $0x88] sm:$0xf]
  %v331 = vld [vmem:[%s2 + $0x8c] sm:$0xf]
  %v332 = vld [vmem:[%s2 + $0x90] sm:$0xf]
  %v333 = vld [vmem:[%s2 + $0x94] sm:$0x3]
  %s334 = scalar_lea.vmem %s2, 152
  %v335 = vld [vmem:[%s334] sm:$0xf]
  %v336 = vld [vmem:[%s334 + $0x4] sm:$0xf]
  %v337 = vld [vmem:[%s334 + $0x8] sm:$0xf]
  %v338 = vld [vmem:[%s334 + $0xc] sm:$0xf]
  %v339 = vld [vmem:[%s334 + $0x10] sm:$0xf]
  %v340 = vld [vmem:[%s334 + $0x14] sm:$0xf]
  %v341 = vld [vmem:[%s334 + $0x18] sm:$0xf]
  %v342 = vld [vmem:[%s334 + $0x1c] sm:$0xf]
  %v343 = vld [vmem:[%s334 + $0x20] sm:$0xf]
  %v344 = vld [vmem:[%s334 + $0x24] sm:$0xf]
  %v345 = vld [vmem:[%s334 + $0x28] sm:$0xf]
  %v346 = vld [vmem:[%s334 + $0x2c] sm:$0xf]
  %v347 = vld [vmem:[%s334 + $0x30] sm:$0xf]
  %v348 = vld [vmem:[%s334 + $0x34] sm:$0xf]
  %v349 = vld [vmem:[%s334 + $0x38] sm:$0xf]
  %v350 = vld [vmem:[%s334 + $0x3c] sm:$0xf]
  %v351 = vld [vmem:[%s334 + $0x40] sm:$0xf]
  %v352 = vld [vmem:[%s334 + $0x44] sm:$0xf]
  %v353 = vld [vmem:[%s334 + $0x48] sm:$0xf]
  %v354 = vld [vmem:[%s334 + $0x4c] sm:$0xf]
  %v355 = vld [vmem:[%s334 + $0x50] sm:$0xf]
  %v356 = vld [vmem:[%s334 + $0x54] sm:$0xf]
  %v357 = vld [vmem:[%s334 + $0x58] sm:$0xf]
  %v358 = vld [vmem:[%s334 + $0x5c] sm:$0xf]
  %v359 = vld [vmem:[%s334 + $0x60] sm:$0xf]
  %v360 = vld [vmem:[%s334 + $0x64] sm:$0xf]
  %v361 = vld [vmem:[%s334 + $0x68] sm:$0xf]
  %v362 = vld [vmem:[%s334 + $0x6c] sm:$0xf]
  %v363 = vld [vmem:[%s334 + $0x70] sm:$0xf]
  %v364 = vld [vmem:[%s334 + $0x74] sm:$0xf]
  %v365 = vld [vmem:[%s334 + $0x78] sm:$0xf]
  %v366 = vld [vmem:[%s334 + $0x7c] sm:$0xf]
  %v367 = vld [vmem:[%s334 + $0x80] sm:$0xf]
  %v368 = vld [vmem:[%s334 + $0x84] sm:$0xf]
  %v369 = vld [vmem:[%s334 + $0x88] sm:$0xf]
  %v370 = vld [vmem:[%s334 + $0x8c] sm:$0xf]
  %v371 = vld [vmem:[%s334 + $0x90] sm:$0xf]
  %v372 = vld [vmem:[%s334 + $0x94] sm:$0x3]
  %v411 = vunpack.c.l.b16 %v335
  %v412 = vunpack.c.l.b16 %v336
  %v413 = vunpack.c.l.b16 %v337
  %v414 = vunpack.c.l.b16 %v338
  %v415 = vunpack.c.l.b16 %v339
  %v416 = vunpack.c.l.b16 %v340
  %v417 = vunpack.c.l.b16 %v341
  %v418 = vunpack.c.l.b16 %v342
  %v419 = vunpack.c.l.b16 %v343
  %v420 = vunpack.c.l.b16 %v344
  %v421 = vunpack.c.l.b16 %v345
  %v422 = vunpack.c.l.b16 %v346
  %v423 = vunpack.c.l.b16 %v347
  %v424 = vunpack.c.l.b16 %v348
  %v425 = vunpack.c.l.b16 %v349
  %v426 = vunpack.c.l.b16 %v350
  %v427 = vunpack.c.l.b16 %v351
  %v428 = vunpack.c.l.b16 %v352
  %v429 = vunpack.c.l.b16 %v353
  %v430 = vunpack.c.l.b16 %v354
  %v431 = vunpack.c.l.b16 %v355
  %v432 = vunpack.c.l.b16 %v356
  %v433 = vunpack.c.l.b16 %v357
  %v434 = vunpack.c.l.b16 %v358
  %v435 = vunpack.c.l.b16 %v359
  %v436 = vunpack.c.l.b16 %v360
  %v437 = vunpack.c.l.b16 %v361
  %v438 = vunpack.c.l.b16 %v362
  %v439 = vunpack.c.l.b16 %v363
  %v440 = vunpack.c.l.b16 %v364
  %v441 = vunpack.c.l.b16 %v365
  %v442 = vunpack.c.l.b16 %v366
  %v443 = vunpack.c.l.b16 %v367
  %v444 = vunpack.c.l.b16 %v368
  %v445 = vunpack.c.l.b16 %v369
  %v446 = vunpack.c.l.b16 %v370
  %v447 = vunpack.c.l.b16 %v371
  %v448 = vunpack.c.l.b16 %v372
  %v449 = vpack.c.b16 %v412, %v411
  %v450 = vpack.c.b16 %v414, %v413
  %v451 = vpack.c.b16 %v416, %v415
  %v452 = vpack.c.b16 %v418, %v417
  %v453 = vpack.c.b16 %v420, %v419
  %v454 = vpack.c.b16 %v422, %v421
  %v455 = vpack.c.b16 %v424, %v423
  %v456 = vpack.c.b16 %v426, %v425
  %v457 = vpack.c.b16 %v428, %v427
  %v458 = vpack.c.b16 %v430, %v429
  %v459 = vpack.c.b16 %v432, %v431
  %v460 = vpack.c.b16 %v434, %v433
  %v461 = vpack.c.b16 %v436, %v435
  %v462 = vpack.c.b16 %v438, %v437
  %v463 = vpack.c.b16 %v440, %v439
  %v464 = vpack.c.b16 %v442, %v441
  %v465 = vpack.c.b16 %v444, %v443
  %v466 = vpack.c.b16 %v446, %v445
  %v467 = vpack.c.b16 %v448, %v447
  %vm486 = vcmask 359424
  %v488 = vsel %vm486, %v279, 0
  %v491 = vsel %vm486, %v282, 0
  %v494 = vsel %vm486, %v285, 0
  %v497 = vsel %vm486, %v288, 0
  %vm499 = vcmask 1045504
  %v501 = vsel %vm499, %v467, 0
  %503 = vmatprep.subr.bf16.mxu0 0
  %504 = vmatpush1.bf16.msra.mxu0 %v449
  %505 = vmatprep.subr.bf16.mxu0 0
  %506 = vmatpush1.bf16.msra.mxu0 %v450
  %507 = vmatprep.subr.bf16.mxu0 0
  %508 = vmatpush1.bf16.msra.mxu0 %v451
  %509 = vmatprep.subr.bf16.mxu0 0
  %510 = vmatpush1.bf16.msra.mxu0 %v452
  %511 = vmatprep.subr.bf16.mxu0 0
  %512 = vmatpush1.bf16.msra.mxu0 %v453
  %513 = vmatprep.subr.bf16.mxu0 0
  %514 = vmatpush1.bf16.msra.mxu0 %v454
  %515 = vmatprep.subr.bf16.mxu0 0
  %516 = vmatpush1.bf16.msra.mxu0 %v455
  %517 = vmatprep.subr.bf16.mxu0 0
  %518 = vmatpush1.bf16.msra.mxu0 %v456
  %519 = vmatprep.subr.bf16.mxu0 0
  %520 = vmatpush1.bf16.msra.mxu0 %v457
  %521 = vmatprep.subr.bf16.mxu0 0
  %522 = vmatpush1.bf16.msra.mxu0 %v458
  %523 = vmatprep.subr.bf16.mxu0 0
  %524 = vmatpush1.bf16.msra.mxu0 %v459
  %525 = vmatprep.subr.bf16.mxu0 0
  %526 = vmatpush1.bf16.msra.mxu0 %v460
  %527 = vmatprep.subr.bf16.mxu0 0
  %528 = vmatpush1.bf16.msra.mxu0 %v461
  %529 = vmatprep.subr.bf16.mxu0 0
  %530 = vmatpush1.bf16.msra.mxu0 %v462
  %531 = vmatprep.subr.bf16.mxu0 0
  %532 = vmatpush1.bf16.msra.mxu0 %v463
  %533 = vmatprep.subr.bf16.mxu0 0
  %534 = vmatpush1.bf16.msra.mxu0 %v464
  %535 = vmatprep.mubr.bf16.mxu0 %v278
  %536 = vmatmul.mubr.bf16.gmra.mrb[0].mxu0 %v277
  %v537 = vpop.f32.mrb[0].mxu0
  %v538 = vadd.f32 0.0, %v537
  %v539 = vpop.f32.mrb[0].mxu0
  %v540 = vpop.f32.mrb[0].mxu0
  %v541 = vadd.f32 0.0, %v540
  %v542 = vpop.f32.mrb[0].mxu0
  %543 = vmatprep.mubr.bf16.mxu0 %v281
  %544 = vmatmul.mubr.bf16.gmra.mrb[0].mxu0 %v280
  %v545 = vpop.f32.mrb[0].mxu0
  %v546 = vadd.f32 0.0, %v545
  %v547 = vpop.f32.mrb[0].mxu0
  %v548 = vpop.f32.mrb[0].mxu0
  %v549 = vadd.f32 0.0, %v548
  %v550 = vpop.f32.mrb[0].mxu0
  %551 = vmatprep.mubr.bf16.mxu0 %v284
  %552 = vmatmul.mubr.bf16.gmra.mrb[0].mxu0 %v283
  %v553 = vpop.f32.mrb[0].mxu0
  %v554 = vadd.f32 0.0, %v553
  %v555 = vpop.f32.mrb[0].mxu0
  %v556 = vpop.f32.mrb[0].mxu0
  %v557 = vadd.f32 0.0, %v556
  %v558 = vpop.f32.mrb[0].mxu0
  %559 = vmatprep.mubr.bf16.mxu0 %v287
  %560 = vmatmul.mubr.bf16.gmra.mrb[0].mxu0 %v286
  %v561 = vpop.f32.mrb[0].mxu0
  %v562 = vadd.f32 0.0, %v561
  %v563 = vpop.f32.mrb[0].mxu0
  %v564 = vpop.f32.mrb[0].mxu0
  %v565 = vadd.f32 0.0, %v564
  %v566 = vpop.f32.mrb[0].mxu0
  %567 = vdwg.mxu0
  %568 = vmatprep.subr.bf16.mxu0 0
  %569 = vmatpush1.bf16.msra.mxu0 %v465
  %570 = vmatprep.subr.bf16.mxu0 0
  %571 = vmatpush1.bf16.msra.mxu0 %v466
  %572 = vmatprep.subr.bf16.mxu0 0
  %573 = vmatpush1.bf16.msra.mxu0 %v501
  %574 = vmatprep.subr.bf16.mxu0 0
  %575 = vmatpush1.bf16.msra.mxu0 0
  %576 = vmatprep.subr.bf16.mxu0 0
  %577 = vmatpush1.bf16.msra.mxu0 0
  %578 = vmatprep.subr.bf16.mxu0 0
  %579 = vmatpush1.bf16.msra.mxu0 0
  %580 = vmatprep.subr.bf16.mxu0 0
  %581 = vmatpush1.bf16.msra.mxu0 0
  %582 = vmatprep.subr.bf16.mxu0 0
  %583 = vmatpush1.bf16.msra.mxu0 0
  %584 = vmatprep.subr.bf16.mxu0 0
  %585 = vmatpush1.bf16.msra.mxu0 0
  %586 = vmatprep.subr.bf16.mxu0 0
  %587 = vmatpush1.bf16.msra.mxu0 0
  %588 = vmatprep.subr.bf16.mxu0 0
  %589 = vmatpush1.bf16.msra.mxu0 0
  %590 = vmatprep.subr.bf16.mxu0 0
  %591 = vmatpush1.bf16.msra.mxu0 0
  %592 = vmatprep.subr.bf16.mxu0 0
  %593 = vmatpush1.bf16.msra.mxu0 0
  %594 = vmatprep.subr.bf16.mxu0 0
  %595 = vmatpush1.bf16.msra.mxu0 0
  %596 = vmatprep.subr.bf16.mxu0 0
  %597 = vmatpush1.bf16.msra.mxu0 0
  %598 = vmatprep.subr.bf16.mxu0 0
  %599 = vmatpush1.bf16.msra.mxu0 0
  %600 = vmatprep.mubr.bf16.mxu0 0
  %601 = vmatmul.mubr.bf16.gmra.mrb[0].mxu0 %v488
  %v602 = vpop.f32.mrb[0].mxu0
  %v603 = vadd.f32 %v538, %v602
  %v604 = vpop.f32.mrb[0].mxu0
  %v605 = vpop.f32.mrb[0].mxu0
  %v606 = vadd.f32 %v541, %v605
  %v607 = vpop.f32.mrb[0].mxu0
  %608 = vmatprep.mubr.bf16.mxu0 0
  %609 = vmatmul.mubr.bf16.gmra.mrb[0].mxu0 %v491
  %v610 = vpop.f32.mrb[0].mxu0
  %v611 = vadd.f32 %v546, %v610
  %v612 = vpop.f32.mrb[0].mxu0
  %v613 = vpop.f32.mrb[0].mxu0
  %v614 = vadd.f32 %v549, %v613
  %v615 = vpop.f32.mrb[0].mxu0
  %616 = vmatprep.mubr.bf16.mxu0 0
  %617 = vmatmul.mubr.bf16.gmra.mrb[0].mxu0 %v494
  %v618 = vpop.f32.mrb[0].mxu0
  %v619 = vadd.f32 %v554, %v618
  %v620 = vpop.f32.mrb[0].mxu0
  %v621 = vpop.f32.mrb[0].mxu0
  %v622 = vadd.f32 %v557, %v621
  %v623 = vpop.f32.mrb[0].mxu0
  %624 = vmatprep.mubr.bf16.mxu0 0
  %625 = vmatmul.mubr.bf16.gmra.mrb[0].mxu0 %v497
  %v626 = vpop.f32.mrb[0].mxu0
  %v627 = vadd.f32 %v562, %v626
  %v628 = vpop.f32.mrb[0].mxu0
  %v629 = vpop.f32.mrb[0].mxu0
  %v630 = vadd.f32 %v565, %v629
  %v631 = vpop.f32.mrb[0].mxu0
  %632 = vdwg.mxu0
  %v671 = vunpack.c.l.b16 %v296
  %v672 = vunpack.c.l.b16 %v297
  %v673 = vunpack.c.l.b16 %v298
  %v674 = vunpack.c.l.b16 %v299
  %v675 = vunpack.c.l.b16 %v300
  %v676 = vunpack.c.l.b16 %v301
  %v677 = vunpack.c.l.b16 %v302
  %v678 = vunpack.c.l.b16 %v303
  %v679 = vunpack.c.l.b16 %v304
  %v680 = vunpack.c.l.b16 %v305
  %v681 = vunpack.c.l.b16 %v306
  %v682 = vunpack.c.l.b16 %v307
  %v683 = vunpack.c.l.b16 %v308
  %v684 = vunpack.c.l.b16 %v309
  %v685 = vunpack.c.l.b16 %v310
  %v686 = vunpack.c.l.b16 %v311
  %v687 = vunpack.c.l.b16 %v312
  %v688 = vunpack.c.l.b16 %v313
  %v689 = vunpack.c.l.b16 %v314
  %v690 = vunpack.c.l.b16 %v315
  %v691 = vunpack.c.l.b16 %v316
  %v692 = vunpack.c.l.b16 %v317
  %v693 = vunpack.c.l.b16 %v318
  %v694 = vunpack.c.l.b16 %v319
  %v695 = vunpack.c.l.b16 %v320
  %v696 = vunpack.c.l.b16 %v321
  %v697 = vunpack.c.l.b16 %v322
  %v698 = vunpack.c.l.b16 %v323
  %v699 = vunpack.c.l.b16 %v324
  %v700 = vunpack.c.l.b16 %v325
  %v701 = vunpack.c.l.b16 %v326
  %v702 = vunpack.c.l.b16 %v327
  %v703 = vunpack.c.l.b16 %v328
  %v704 = vunpack.c.l.b16 %v329
  %v705 = vunpack.c.l.b16 %v330
  %v706 = vunpack.c.l.b16 %v331
  %v707 = vunpack.c.l.b16 %v332
  %v708 = vunpack.c.l.b16 %v333
  %v709 = vpack.c.b16 %v672, %v671
  %v710 = vpack.c.b16 %v674, %v673
  %v711 = vpack.c.b16 %v676, %v675
  %v712 = vpack.c.b16 %v678, %v677
  %v713 = vpack.c.b16 %v680, %v679
  %v714 = vpack.c.b16 %v682, %v681
  %v715 = vpack.c.b16 %v684, %v683
  %v716 = vpack.c.b16 %v686, %v685
  %v717 = vpack.c.b16 %v688, %v687
  %v718 = vpack.c.b16 %v690, %v689
  %v719 = vpack.c.b16 %v692, %v691
  %v720 = vpack.c.b16 %v694, %v693
  %v721 = vpack.c.b16 %v696, %v695
  %v722 = vpack.c.b16 %v698, %v697
  %v723 = vpack.c.b16 %v700, %v699
  %v724 = vpack.c.b16 %v702, %v701
  %v725 = vpack.c.b16 %v704, %v703
  %v726 = vpack.c.b16 %v706, %v705
  %v727 = vpack.c.b16 %v708, %v707
  %v747 = vsel %vm499, %v727, 0
  %749 = vmatprep.subr.bf16.mxu0 0
  %750 = vmatpush1.bf16.msra.mxu0 %v709
  %751 = vmatprep.subr.bf16.mxu0 0
  %752 = vmatpush1.bf16.msra.mxu0 %v710
  %753 = vmatprep.subr.bf16.mxu0 0
  %754 = vmatpush1.bf16.msra.mxu0 %v711
  %755 = vmatprep.subr.bf16.mxu0 0
  %756 = vmatpush1.bf16.msra.mxu0 %v712
  %757 = vmatprep.subr.bf16.mxu0 0
  %758 = vmatpush1.bf16.msra.mxu0 %v713
  %759 = vmatprep.subr.bf16.mxu0 0
  %760 = vmatpush1.bf16.msra.mxu0 %v714
  %761 = vmatprep.subr.bf16.mxu0 0
  %762 = vmatpush1.bf16.msra.mxu0 %v715
  %763 = vmatprep.subr.bf16.mxu0 0
  %764 = vmatpush1.bf16.msra.mxu0 %v716
  %765 = vmatprep.subr.bf16.mxu0 0
  %766 = vmatpush1.bf16.msra.mxu0 %v717
  %767 = vmatprep.subr.bf16.mxu0 0
  %768 = vmatpush1.bf16.msra.mxu0 %v718
  %769 = vmatprep.subr.bf16.mxu0 0
  %770 = vmatpush1.bf16.msra.mxu0 %v719
  %771 = vmatprep.subr.bf16.mxu0 0
  %772 = vmatpush1.bf16.msra.mxu0 %v720
  %773 = vmatprep.subr.bf16.mxu0 0
  %774 = vmatpush1.bf16.msra.mxu0 %v721
  %775 = vmatprep.subr.bf16.mxu0 0
  %776 = vmatpush1.bf16.msra.mxu0 %v722
  %777 = vmatprep.subr.bf16.mxu0 0
  %778 = vmatpush1.bf16.msra.mxu0 %v723
  %779 = vmatprep.subr.bf16.mxu0 0
  %780 = vmatpush1.bf16.msra.mxu0 %v724
  %781 = vmatprep.mubr.bf16.mxu0 %v278
  %782 = vmatmul.mubr.bf16.gmra.mrb[0].mxu0 %v277
  %v783 = vpop.f32.mrb[0].mxu0
  %v784 = vadd.f32 %v630, %v783
  %v785 = vpop.f32.mrb[0].mxu0
  %v786 = vpop.f32.mrb[0].mxu0
  %v787 = vadd.f32 %v627, %v786
  %v788 = vpop.f32.mrb[0].mxu0
  %789 = vmatprep.mubr.bf16.mxu0 %v281
  %790 = vmatmul.mubr.bf16.gmra.mrb[0].mxu0 %v280
  %v791 = vpop.f32.mrb[0].mxu0
  %v792 = vadd.f32 %v622, %v791
  %v793 = vpop.f32.mrb[0].mxu0
  %v794 = vpop.f32.mrb[0].mxu0
  %v795 = vadd.f32 %v619, %v794
  %v796 = vpop.f32.mrb[0].mxu0
  %797 = vmatprep.mubr.bf16.mxu0 %v284
  %798 = vmatmul.mubr.bf16.gmra.mrb[0].mxu0 %v283
  %v799 = vpop.f32.mrb[0].mxu0
  %v800 = vadd.f32 %v614, %v799
  %v801 = vpop.f32.mrb[0].mxu0
  %v802 = vpop.f32.mrb[0].mxu0
  %v803 = vadd.f32 %v611, %v802
  %v804 = vpop.f32.mrb[0].mxu0
  %805 = vmatprep.mubr.bf16.mxu0 %v287
  %806 = vmatmul.mubr.bf16.gmra.mrb[0].mxu0 %v286
  %v807 = vpop.f32.mrb[0].mxu0
  %v808 = vadd.f32 %v606, %v807
  %v809 = vpop.f32.mrb[0].mxu0
  %v810 = vpop.f32.mrb[0].mxu0
  %v811 = vadd.f32 %v603, %v810
  %v812 = vpop.f32.mrb[0].mxu0
  %813 = vdwg.mxu0
  %814 = vmatprep.subr.bf16.mxu0 0
  %815 = vmatpush1.bf16.msra.mxu0 %v725
  %816 = vmatprep.subr.bf16.mxu0 0
  %817 = vmatpush1.bf16.msra.mxu0 %v726
  %818 = vmatprep.subr.bf16.mxu0 0
  %819 = vmatpush1.bf16.msra.mxu0 %v747
  %820 = vmatprep.subr.bf16.mxu0 0
  %821 = vmatpush1.bf16.msra.mxu0 0
  %822 = vmatprep.subr.bf16.mxu0 0
  %823 = vmatpush1.bf16.msra.mxu0 0
  %824 = vmatprep.subr.bf16.mxu0 0
  %825 = vmatpush1.bf16.msra.mxu0 0
  %826 = vmatprep.subr.bf16.mxu0 0
  %827 = vmatpush1.bf16.msra.mxu0 0
  %828 = vmatprep.subr.bf16.mxu0 0
  %829 = vmatpush1.bf16.msra.mxu0 0
  %830 = vmatprep.subr.bf16.mxu0 0
  %831 = vmatpush1.bf16.msra.mxu0 0
  %832 = vmatprep.subr.bf16.mxu0 0
  %833 = vmatpush1.bf16.msra.mxu0 0
  %834 = vmatprep.subr.bf16.mxu0 0
  %835 = vmatpush1.bf16.msra.mxu0 0
  %836 = vmatprep.subr.bf16.mxu0 0
  %837 = vmatpush1.bf16.msra.mxu0 0
  %838 = vmatprep.subr.bf16.mxu0 0
  %839 = vmatpush1.bf16.msra.mxu0 0
  %840 = vmatprep.subr.bf16.mxu0 0
  %841 = vmatpush1.bf16.msra.mxu0 0
  %842 = vmatprep.subr.bf16.mxu0 0
  %843 = vmatpush1.bf16.msra.mxu0 0
  %844 = vmatprep.subr.bf16.mxu0 0
  %845 = vmatpush1.bf16.msra.mxu0 0
  %846 = vmatprep.mubr.bf16.mxu0 0
  %847 = vmatmul.mubr.bf16.gmra.mrb[0].mxu0 %v488
  %v848 = vpop.f32.mrb[0].mxu0
  %v849 = vadd.f32 %v784, %v848
  %v850 = vpop.f32.mrb[0].mxu0
  %v851 = vpop.f32.mrb[0].mxu0
  %v852 = vadd.f32 %v787, %v851
  %v853 = vpop.f32.mrb[0].mxu0
  %854 = vmatprep.mubr.bf16.mxu0 0
  %855 = vmatmul.mubr.bf16.gmra.mrb[0].mxu0 %v491
  %v856 = vpop.f32.mrb[0].mxu0
  %v857 = vadd.f32 %v792, %v856
  %v858 = vpop.f32.mrb[0].mxu0
  %v859 = vpop.f32.mrb[0].mxu0
  %v860 = vadd.f32 %v795, %v859
  %v861 = vpop.f32.mrb[0].mxu0
  %862 = vmatprep.mubr.bf16.mxu0 0
  %863 = vmatmul.mubr.bf16.gmra.mrb[0].mxu0 %v494
  %v864 = vpop.f32.mrb[0].mxu0
  %v865 = vadd.f32 %v800, %v864
  %v866 = vpop.f32.mrb[0].mxu0
  %v867 = vpop.f32.mrb[0].mxu0
  %v868 = vadd.f32 %v803, %v867
  %v869 = vpop.f32.mrb[0].mxu0
  %870 = vmatprep.mubr.bf16.mxu0 0
  %871 = vmatmul.mubr.bf16.gmra.mrb[0].mxu0 %v497
  %v872 = vpop.f32.mrb[0].mxu0
  %v873 = vadd.f32 %v808, %v872
  %v874 = vpop.f32.mrb[0].mxu0
  %v875 = vpop.f32.mrb[0].mxu0
  %v876 = vadd.f32 %v811, %v875
  %v877 = vpop.f32.mrb[0].mxu0
  %878 = vdwg.mxu0
  %v880 = vlaneseq
  %v881 = vshrl.u32 %v880, 7
  %v882 = vsub.s32 0, %v881
  %v883 = vrot.slane %v289, %v882
  %v885 = vadd.f32 %v849, %v883
  %v886 = vadd.f32 %v852, %v883
  %v887 = vadd.f32 %v857, %v883
  %v888 = vadd.f32 %v860, %v883
  %v889 = vadd.f32 %v865, %v883
  %v890 = vadd.f32 %v868, %v883
  %v891 = vadd.f32 %v873, %v883
  %v892 = vadd.f32 %v876, %v883
  %v893 = vld [vmem:[%s3] sm:$0xf]
  %v894 = vld [vmem:[%s3 + $0x4] sm:$0xf]
  %v895 = vld [vmem:[%s3 + $0x8] sm:$0xf]
  %v896 = vld [vmem:[%s3 + $0xc] sm:$0xf]
  %v897 = vld [vmem:[%s3 + $0x10] sm:$0xf]
  %v898 = vld [vmem:[%s3 + $0x14] sm:$0xf]
  %v899 = vld [vmem:[%s3 + $0x18] sm:$0xf]
  %v900 = vld [vmem:[%s3 + $0x1c] sm:$0xf]
  %v901 = vld [vmem:[%s3 + $0x20] sm:$0xf]
  %v902 = vld [vmem:[%s3 + $0x24] sm:$0xf]
  %v903 = vld [vmem:[%s3 + $0x28] sm:$0xf]
  %v904 = vld [vmem:[%s3 + $0x2c] sm:$0xf]
  %v905 = vld [vmem:[%s3 + $0x30] sm:$0x3]
  %v919 = vunpack.c.l.b16 %v893
  %v920 = vunpack.c.l.b16 %v894
  %v921 = vunpack.c.l.b16 %v895
  %v922 = vunpack.c.l.b16 %v896
  %v923 = vunpack.c.l.b16 %v897
  %v924 = vunpack.c.l.b16 %v898
  %v925 = vunpack.c.l.b16 %v899
  %v926 = vunpack.c.l.b16 %v900
  %v927 = vunpack.c.l.b16 %v901
  %v928 = vunpack.c.l.b16 %v902
  %v929 = vunpack.c.l.b16 %v903
  %v930 = vunpack.c.l.b16 %v904
  %v931 = vunpack.c.l.b16 %v905
  %v932 = vpack.c.b16 %v920, %v919
  %v933 = vpack.c.b16 %v922, %v921
  %v934 = vpack.c.b16 %v924, %v923
  %v935 = vpack.c.b16 %v926, %v925
  %v936 = vpack.c.b16 %v928, %v927
  %v937 = vpack.c.b16 %v930, %v929
  %v938 = vpack.c.b16 %v931, %v931
  %vm945 = vcmask 818176
  %v947 = vsel %vm945, 0, 0
  %vm949 = vcmask 1041408
  %v951 = vsel %vm949, %v938, 0
  %953 = vmatprep.subr.bf16.mxu0 0
  %954 = vmatpush1.bf16.msra.mxu0 %v932
  %955 = vmatprep.subr.bf16.mxu0 0
  %956 = vmatpush1.bf16.msra.mxu0 %v933
  %957 = vmatprep.subr.bf16.mxu0 0
  %958 = vmatpush1.bf16.msra.mxu0 %v934
  %959 = vmatprep.subr.bf16.mxu0 0
  %960 = vmatpush1.bf16.msra.mxu0 %v935
  %961 = vmatprep.subr.bf16.mxu0 0
  %962 = vmatpush1.bf16.msra.mxu0 %v936
  %963 = vmatprep.subr.bf16.mxu0 0
  %964 = vmatpush1.bf16.msra.mxu0 %v937
  %965 = vmatprep.subr.bf16.mxu0 0
  %966 = vmatpush1.bf16.msra.mxu0 %v951
  %967 = vmatprep.subr.bf16.mxu0 0
  %968 = vmatpush1.bf16.msra.mxu0 0
  %969 = vmatprep.subr.bf16.mxu0 0
  %970 = vmatpush1.bf16.msra.mxu0 0
  %971 = vmatprep.subr.bf16.mxu0 0
  %972 = vmatpush1.bf16.msra.mxu0 0
  %973 = vmatprep.subr.bf16.mxu0 0
  %974 = vmatpush1.bf16.msra.mxu0 0
  %975 = vmatprep.subr.bf16.mxu0 0
  %976 = vmatpush1.bf16.msra.mxu0 0
  %977 = vmatprep.subr.bf16.mxu0 0
  %978 = vmatpush1.bf16.msra.mxu0 0
  %979 = vmatprep.subr.bf16.mxu0 0
  %980 = vmatpush1.bf16.msra.mxu0 0
  %981 = vmatprep.subr.bf16.mxu0 0
  %982 = vmatpush1.bf16.msra.mxu0 0
  %983 = vmatprep.subr.bf16.mxu0 0
  %984 = vmatpush1.bf16.msra.mxu0 0
  %985 = vmatprep.mubr.bf16.mxu0 0
  %986 = vmatmul.mubr.bf16.gmra.mrb[0].mxu0 %v947
  %v987 = vpop.f32.mrb[0].mxu0
  %v988 = vadd.f32 0.0, %v987
  %v989 = vpop.f32.mrb[0].mxu0
  %v990 = vpop.f32.mrb[0].mxu0
  %v991 = vpop.f32.mrb[0].mxu0
  %992 = vdwg.mxu0
  %v993 = vadd.f32 %v885, %v988
  %v994 = vtanh.pop %v993
  %v995 = vpack.c.bf16 %v994, %v994
  %v997 = vsel %vm945, %v995, 0
  %999 = vmatprep.subr.bf16.mxu0 0
  %1000 = vmatpush1.bf16.msra.mxu0 %v932
  %1001 = vmatprep.subr.bf16.mxu0 0
  %1002 = vmatpush1.bf16.msra.mxu0 %v933
  %1003 = vmatprep.subr.bf16.mxu0 0
  %1004 = vmatpush1.bf16.msra.mxu0 %v934
  %1005 = vmatprep.subr.bf16.mxu0 0
  %1006 = vmatpush1.bf16.msra.mxu0 %v935
  %1007 = vmatprep.subr.bf16.mxu0 0
  %1008 = vmatpush1.bf16.msra.mxu0 %v936
  %1009 = vmatprep.subr.bf16.mxu0 0
  %1010 = vmatpush1.bf16.msra.mxu0 %v937
  %1011 = vmatprep.subr.bf16.mxu0 0
  %1012 = vmatpush1.bf16.msra.mxu0 %v951
  %1013 = vmatprep.subr.bf16.mxu0 0
  %1014 = vmatpush1.bf16.msra.mxu0 0
  %1015 = vmatprep.subr.bf16.mxu0 0
  %1016 = vmatpush1.bf16.msra.mxu0 0
  %1017 = vmatprep.subr.bf16.mxu0 0
  %1018 = vmatpush1.bf16.msra.mxu0 0
  %1019 = vmatprep.subr.bf16.mxu0 0
  %1020 = vmatpush1.bf16.msra.mxu0 0
  %1021 = vmatprep.subr.bf16.mxu0 0
  %1022 = vmatpush1.bf16.msra.mxu0 0
  %1023 = vmatprep.subr.bf16.mxu0 0
  %1024 = vmatpush1.bf16.msra.mxu0 0
  %1025 = vmatprep.subr.bf16.mxu0 0
  %1026 = vmatpush1.bf16.msra.mxu0 0
  %1027 = vmatprep.subr.bf16.mxu0 0
  %1028 = vmatpush1.bf16.msra.mxu0 0
  %1029 = vmatprep.subr.bf16.mxu0 0
  %1030 = vmatpush1.bf16.msra.mxu0 0
  %1031 = vmatprep.mubr.bf16.mxu0 0
  %1032 = vmatmul.mubr.bf16.gmra.mrb[0].mxu0 %v997
  %v1033 = vpop.f32.mrb[0].mxu0
  %v1034 = vadd.f32 0.0, %v1033
  %v1035 = vpop.f32.mrb[0].mxu0
  %v1036 = vpop.f32.mrb[0].mxu0
  %v1037 = vpop.f32.mrb[0].mxu0
  %1038 = vdwg.mxu0
  %v1039 = vadd.f32 %v886, %v1034
  %v1040 = vtanh.pop %v1039
  %v1041 = vpack.c.bf16 %v1040, %v1040
  %v1043 = vsel %vm945, %v1041, 0
  %1045 = vmatprep.subr.bf16.mxu0 0
  %1046 = vmatpush1.bf16.msra.mxu0 %v932
  %1047 = vmatprep.subr.bf16.mxu0 0
  %1048 = vmatpush1.bf16.msra.mxu0 %v933
  %1049 = vmatprep.subr.bf16.mxu0 0
  %1050 = vmatpush1.bf16.msra.mxu0 %v934
  %1051 = vmatprep.subr.bf16.mxu0 0
  %1052 = vmatpush1.bf16.msra.mxu0 %v935
  %1053 = vmatprep.subr.bf16.mxu0 0
  %1054 = vmatpush1.bf16.msra.mxu0 %v936
  %1055 = vmatprep.subr.bf16.mxu0 0
  %1056 = vmatpush1.bf16.msra.mxu0 %v937
  %1057 = vmatprep.subr.bf16.mxu0 0
  %1058 = vmatpush1.bf16.msra.mxu0 %v951
  %1059 = vmatprep.subr.bf16.mxu0 0
  %1060 = vmatpush1.bf16.msra.mxu0 0
  %1061 = vmatprep.subr.bf16.mxu0 0
  %1062 = vmatpush1.bf16.msra.mxu0 0
  %1063 = vmatprep.subr.bf16.mxu0 0
  %1064 = vmatpush1.bf16.msra.mxu0 0
  %1065 = vmatprep.subr.bf16.mxu0 0
  %1066 = vmatpush1.bf16.msra.mxu0 0
  %1067 = vmatprep.subr.bf16.mxu0 0
  %1068 = vmatpush1.bf16.msra.mxu0 0
  %1069 = vmatprep.subr.bf16.mxu0 0
  %1070 = vmatpush1.bf16.msra.mxu0 0
  %1071 = vmatprep.subr.bf16.mxu0 0
  %1072 = vmatpush1.bf16.msra.mxu0 0
  %1073 = vmatprep.subr.bf16.mxu0 0
  %1074 = vmatpush1.bf16.msra.mxu0 0
  %1075 = vmatprep.subr.bf16.mxu0 0
  %1076 = vmatpush1.bf16.msra.mxu0 0
  %1077 = vmatprep.mubr.bf16.mxu0 0
  %1078 = vmatmul.mubr.bf16.gmra.mrb[0].mxu0 %v1043
  %v1079 = vpop.f32.mrb[0].mxu0
  %v1080 = vadd.f32 0.0, %v1079
  %v1081 = vpop.f32.mrb[0].mxu0
  %v1082 = vpop.f32.mrb[0].mxu0
  %v1083 = vpop.f32.mrb[0].mxu0
  %1084 = vdwg.mxu0
  %v1085 = vadd.f32 %v887, %v1080
  %v1086 = vtanh.pop %v1085
  %v1087 = vpack.c.bf16 %v1086, %v1086
  %v1089 = vsel %vm945, %v1087, 0
  %1091 = vmatprep.subr.bf16.mxu0 0
  %1092 = vmatpush1.bf16.msra.mxu0 %v932
  %1093 = vmatprep.subr.bf16.mxu0 0
  %1094 = vmatpush1.bf16.msra.mxu0 %v933
  %1095 = vmatprep.subr.bf16.mxu0 0
  %1096 = vmatpush1.bf16.msra.mxu0 %v934
  %1097 = vmatprep.subr.bf16.mxu0 0
  %1098 = vmatpush1.bf16.msra.mxu0 %v935
  %1099 = vmatprep.subr.bf16.mxu0 0
  %1100 = vmatpush1.bf16.msra.mxu0 %v936
  %1101 = vmatprep.subr.bf16.mxu0 0
  %1102 = vmatpush1.bf16.msra.mxu0 %v937
  %1103 = vmatprep.subr.bf16.mxu0 0
  %1104 = vmatpush1.bf16.msra.mxu0 %v951
  %1105 = vmatprep.subr.bf16.mxu0 0
  %1106 = vmatpush1.bf16.msra.mxu0 0
  %1107 = vmatprep.subr.bf16.mxu0 0
  %1108 = vmatpush1.bf16.msra.mxu0 0
  %1109 = vmatprep.subr.bf16.mxu0 0
  %1110 = vmatpush1.bf16.msra.mxu0 0
  %1111 = vmatprep.subr.bf16.mxu0 0
  %1112 = vmatpush1.bf16.msra.mxu0 0
  %1113 = vmatprep.subr.bf16.mxu0 0
  %1114 = vmatpush1.bf16.msra.mxu0 0
  %1115 = vmatprep.subr.bf16.mxu0 0
  %1116 = vmatpush1.bf16.msra.mxu0 0
  %1117 = vmatprep.subr.bf16.mxu0 0
  %1118 = vmatpush1.bf16.msra.mxu0 0
  %1119 = vmatprep.subr.bf16.mxu0 0
  %1120 = vmatpush1.bf16.msra.mxu0 0
  %1121 = vmatprep.subr.bf16.mxu0 0
  %1122 = vmatpush1.bf16.msra.mxu0 0
  %1123 = vmatprep.mubr.bf16.mxu0 0
  %1124 = vmatmul.mubr.bf16.gmra.mrb[0].mxu0 %v1089
  %v1125 = vpop.f32.mrb[0].mxu0
  %v1126 = vadd.f32 0.0, %v1125
  %v1127 = vpop.f32.mrb[0].mxu0
  %v1128 = vpop.f32.mrb[0].mxu0
  %v1129 = vpop.f32.mrb[0].mxu0
  %1130 = vdwg.mxu0
  %v1131 = vadd.f32 %v888, %v1126
  %v1132 = vtanh.pop %v1131
  %v1133 = vpack.c.bf16 %v1132, %v1132
  %v1135 = vsel %vm945, %v1133, 0
  %1137 = vmatprep.subr.bf16.mxu0 0
  %1138 = vmatpush1.bf16.msra.mxu0 %v932
  %1139 = vmatprep.subr.bf16.mxu0 0
  %1140 = vmatpush1.bf16.msra.mxu0 %v933
  %1141 = vmatprep.subr.bf16.mxu0 0
  %1142 = vmatpush1.bf16.msra.mxu0 %v934
  %1143 = vmatprep.subr.bf16.mxu0 0
  %1144 = vmatpush1.bf16.msra.mxu0 %v935
  %1145 = vmatprep.subr.bf16.mxu0 0
  %1146 = vmatpush1.bf16.msra.mxu0 %v936
  %1147 = vmatprep.subr.bf16.mxu0 0
  %1148 = vmatpush1.bf16.msra.mxu0 %v937
  %1149 = vmatprep.subr.bf16.mxu0 0
  %1150 = vmatpush1.bf16.msra.mxu0 %v951
  %1151 = vmatprep.subr.bf16.mxu0 0
  %1152 = vmatpush1.bf16.msra.mxu0 0
  %1153 = vmatprep.subr.bf16.mxu0 0
  %1154 = vmatpush1.bf16.msra.mxu0 0
  %1155 = vmatprep.subr.bf16.mxu0 0
  %1156 = vmatpush1.bf16.msra.mxu0 0
  %1157 = vmatprep.subr.bf16.mxu0 0
  %1158 = vmatpush1.bf16.msra.mxu0 0
  %1159 = vmatprep.subr.bf16.mxu0 0
  %1160 = vmatpush1.bf16.msra.mxu0 0
  %1161 = vmatprep.subr.bf16.mxu0 0
  %1162 = vmatpush1.bf16.msra.mxu0 0
  %1163 = vmatprep.subr.bf16.mxu0 0
  %1164 = vmatpush1.bf16.msra.mxu0 0
  %1165 = vmatprep.subr.bf16.mxu0 0
  %1166 = vmatpush1.bf16.msra.mxu0 0
  %1167 = vmatprep.subr.bf16.mxu0 0
  %1168 = vmatpush1.bf16.msra.mxu0 0
  %1169 = vmatprep.mubr.bf16.mxu0 0
  %1170 = vmatmul.mubr.bf16.gmra.mrb[0].mxu0 %v1135
  %v1171 = vpop.f32.mrb[0].mxu0
  %v1172 = vadd.f32 0.0, %v1171
  %v1173 = vpop.f32.mrb[0].mxu0
  %v1174 = vpop.f32.mrb[0].mxu0
  %v1175 = vpop.f32.mrb[0].mxu0
  %1176 = vdwg.mxu0
  %v1177 = vadd.f32 %v889, %v1172
  %v1178 = vtanh.pop %v1177
  %v1179 = vpack.c.bf16 %v1178, %v1178
  %v1181 = vsel %vm945, %v1179, 0
  %1183 = vmatprep.subr.bf16.mxu0 0
  %1184 = vmatpush1.bf16.msra.mxu0 %v932
  %1185 = vmatprep.subr.bf16.mxu0 0
  %1186 = vmatpush1.bf16.msra.mxu0 %v933
  %1187 = vmatprep.subr.bf16.mxu0 0
  %1188 = vmatpush1.bf16.msra.mxu0 %v934
  %1189 = vmatprep.subr.bf16.mxu0 0
  %1190 = vmatpush1.bf16.msra.mxu0 %v935
  %1191 = vmatprep.subr.bf16.mxu0 0
  %1192 = vmatpush1.bf16.msra.mxu0 %v936
  %1193 = vmatprep.subr.bf16.mxu0 0
  %1194 = vmatpush1.bf16.msra.mxu0 %v937
  %1195 = vmatprep.subr.bf16.mxu0 0
  %1196 = vmatpush1.bf16.msra.mxu0 %v951
  %1197 = vmatprep.subr.bf16.mxu0 0
  %1198 = vmatpush1.bf16.msra.mxu0 0
  %1199 = vmatprep.subr.bf16.mxu0 0
  %1200 = vmatpush1.bf16.msra.mxu0 0
  %1201 = vmatprep.subr.bf16.mxu0 0
  %1202 = vmatpush1.bf16.msra.mxu0 0
  %1203 = vmatprep.subr.bf16.mxu0 0
  %1204 = vmatpush1.bf16.msra.mxu0 0
  %1205 = vmatprep.subr.bf16.mxu0 0
  %1206 = vmatpush1.bf16.msra.mxu0 0
  %1207 = vmatprep.subr.bf16.mxu0 0
  %1208 = vmatpush1.bf16.msra.mxu0 0
  %1209 = vmatprep.subr.bf16.mxu0 0
  %1210 = vmatpush1.bf16.msra.mxu0 0
  %1211 = vmatprep.subr.bf16.mxu0 0
  %1212 = vmatpush1.bf16.msra.mxu0 0
  %1213 = vmatprep.subr.bf16.mxu0 0
  %1214 = vmatpush1.bf16.msra.mxu0 0
  %1215 = vmatprep.mubr.bf16.mxu0 0
  %1216 = vmatmul.mubr.bf16.gmra.mrb[0].mxu0 %v1181
  %v1217 = vpop.f32.mrb[0].mxu0
  %v1218 = vadd.f32 0.0, %v1217
  %v1219 = vpop.f32.mrb[0].mxu0
  %v1220 = vpop.f32.mrb[0].mxu0
  %v1221 = vpop.f32.mrb[0].mxu0
  %1222 = vdwg.mxu0
  %v1223 = vadd.f32 %v890, %v1218
  %v1224 = vtanh.pop %v1223
  %v1225 = vpack.c.bf16 %v1224, %v1224
  %v1227 = vsel %vm945, %v1225, 0
  %1229 = vmatprep.subr.bf16.mxu0 0
  %1230 = vmatpush1.bf16.msra.mxu0 %v932
  %1231 = vmatprep.subr.bf16.mxu0 0
  %1232 = vmatpush1.bf16.msra.mxu0 %v933
  %1233 = vmatprep.subr.bf16.mxu0 0
  %1234 = vmatpush1.bf16.msra.mxu0 %v934
  %1235 = vmatprep.subr.bf16.mxu0 0
  %1236 = vmatpush1.bf16.msra.mxu0 %v935
  %1237 = vmatprep.subr.bf16.mxu0 0
  %1238 = vmatpush1.bf16.msra.mxu0 %v936
  %1239 = vmatprep.subr.bf16.mxu0 0
  %1240 = vmatpush1.bf16.msra.mxu0 %v937
  %1241 = vmatprep.subr.bf16.mxu0 0
  %1242 = vmatpush1.bf16.msra.mxu0 %v951
  %1243 = vmatprep.subr.bf16.mxu0 0
  %1244 = vmatpush1.bf16.msra.mxu0 0
  %1245 = vmatprep.subr.bf16.mxu0 0
  %1246 = vmatpush1.bf16.msra.mxu0 0
  %1247 = vmatprep.subr.bf16.mxu0 0
  %1248 = vmatpush1.bf16.msra.mxu0 0
  %1249 = vmatprep.subr.bf16.mxu0 0
  %1250 = vmatpush1.bf16.msra.mxu0 0
  %1251 = vmatprep.subr.bf16.mxu0 0
  %1252 = vmatpush1.bf16.msra.mxu0 0
  %1253 = vmatprep.subr.bf16.mxu0 0
  %1254 = vmatpush1.bf16.msra.mxu0 0
  %1255 = vmatprep.subr.bf16.mxu0 0
  %1256 = vmatpush1.bf16.msra.mxu0 0
  %1257 = vmatprep.subr.bf16.mxu0 0
  %1258 = vmatpush1.bf16.msra.mxu0 0
  %1259 = vmatprep.subr.bf16.mxu0 0
  %1260 = vmatpush1.bf16.msra.mxu0 0
  %1261 = vmatprep.mubr.bf16.mxu0 0
  %1262 = vmatmul.mubr.bf16.gmra.mrb[0].mxu0 %v1227
  %v1263 = vpop.f32.mrb[0].mxu0
  %v1264 = vadd.f32 0.0, %v1263
  %v1265 = vpop.f32.mrb[0].mxu0
  %v1266 = vpop.f32.mrb[0].mxu0
  %v1267 = vpop.f32.mrb[0].mxu0
  %1268 = vdwg.mxu0
  %v1269 = vadd.f32 %v891, %v1264
  %v1270 = vtanh.pop %v1269
  %v1271 = vpack.c.bf16 %v1270, %v1270
  %v1273 = vsel %vm945, %v1271, 0
  %1275 = vmatprep.subr.bf16.mxu0 0
  %1276 = vmatpush1.bf16.msra.mxu0 %v932
  %1277 = vmatprep.subr.bf16.mxu0 0
  %1278 = vmatpush1.bf16.msra.mxu0 %v933
  %1279 = vmatprep.subr.bf16.mxu0 0
  %1280 = vmatpush1.bf16.msra.mxu0 %v934
  %1281 = vmatprep.subr.bf16.mxu0 0
  %1282 = vmatpush1.bf16.msra.mxu0 %v935
  %1283 = vmatprep.subr.bf16.mxu0 0
  %1284 = vmatpush1.bf16.msra.mxu0 %v936
  %1285 = vmatprep.subr.bf16.mxu0 0
  %1286 = vmatpush1.bf16.msra.mxu0 %v937
  %1287 = vmatprep.subr.bf16.mxu0 0
  %1288 = vmatpush1.bf16.msra.mxu0 %v951
  %1289 = vmatprep.subr.bf16.mxu0 0
  %1290 = vmatpush1.bf16.msra.mxu0 0
  %1291 = vmatprep.subr.bf16.mxu0 0
  %1292 = vmatpush1.bf16.msra.mxu0 0
  %1293 = vmatprep.subr.bf16.mxu0 0
  %1294 = vmatpush1.bf16.msra.mxu0 0
  %1295 = vmatprep.subr.bf16.mxu0 0
  %1296 = vmatpush1.bf16.msra.mxu0 0
  %1297 = vmatprep.subr.bf16.mxu0 0
  %1298 = vmatpush1.bf16.msra.mxu0 0
  %1299 = vmatprep.subr.bf16.mxu0 0
  %1300 = vmatpush1.bf16.msra.mxu0 0
  %1301 = vmatprep.subr.bf16.mxu0 0
  %1302 = vmatpush1.bf16.msra.mxu0 0
  %1303 = vmatprep.subr.bf16.mxu0 0
  %1304 = vmatpush1.bf16.msra.mxu0 0
  %1305 = vmatprep.subr.bf16.mxu0 0
  %1306 = vmatpush1.bf16.msra.mxu0 0
  %1307 = vmatprep.mubr.bf16.mxu0 0
  %1308 = vmatmul.mubr.bf16.gmra.mrb[0].mxu0 %v1273
  %v1309 = vpop.f32.mrb[0].mxu0
  %v1310 = vadd.f32 0.0, %v1309
  %v1311 = vpop.f32.mrb[0].mxu0
  %v1312 = vpop.f32.mrb[0].mxu0
  %v1313 = vpop.f32.mrb[0].mxu0
  %1314 = vdwg.mxu0
  %v1315 = vadd.f32 %v892, %v1310
  %v1316 = vtanh.pop %v1315
  %v1317 = vpack.c.bf16 %v1040, %v994
  %v1318 = vpack.c.bf16 %v1132, %v1086
  %v1319 = vpack.c.bf16 %v1224, %v1178
  %v1320 = vpack.c.bf16 %v1316, %v1270
  %v1321 = vpack.c.bf16 %v1270, %v1316
  %v1322 = vpack.c.bf16 %v1178, %v1224
  %v1323 = vpack.c.bf16 %v1086, %v1132
  %v1324 = vpack.c.bf16 %v994, %v1040
  %s1325 = scalar_lea.vmem %s3, 52
  %v1326 = vld [vmem:[%s1325] sm:$0xf]
  %v1327 = vld [vmem:[%s1325 + $0x4] sm:$0xf]
  %v1328 = vld [vmem:[%s1325 + $0x8] sm:$0xf]
  %v1329 = vld [vmem:[%s1325 + $0xc] sm:$0xf]
  %v1330 = vld [vmem:[%s1325 + $0x10] sm:$0xf]
  %v1331 = vld [vmem:[%s1325 + $0x14] sm:$0xf]
  %v1332 = vld [vmem:[%s1325 + $0x18] sm:$0xf]
  %v1333 = vld [vmem:[%s1325 + $0x1c] sm:$0xf]
  %v1334 = vld [vmem:[%s1325 + $0x20] sm:$0xf]
  %v1335 = vld [vmem:[%s1325 + $0x24] sm:$0xf]
  %v1336 = vld [vmem:[%s1325 + $0x28] sm:$0xf]
  %v1337 = vld [vmem:[%s1325 + $0x2c] sm:$0xf]
  %v1338 = vld [vmem:[%s1325 + $0x30] sm:$0x3]
  %s1339 = scalar_lea.vmem %s3, 104
  %v1340 = vld [vmem:[%s1339] sm:$0xf]
  %v1341 = vld [vmem:[%s1339 + $0x4] sm:$0xf]
  %v1342 = vld [vmem:[%s1339 + $0x8] sm:$0xf]
  %v1343 = vld [vmem:[%s1339 + $0xc] sm:$0xf]
  %v1344 = vld [vmem:[%s1339 + $0x10] sm:$0xf]
  %v1345 = vld [vmem:[%s1339 + $0x14] sm:$0xf]
  %v1346 = vld [vmem:[%s1339 + $0x18] sm:$0xf]
  %v1347 = vld [vmem:[%s1339 + $0x1c] sm:$0xf]
  %v1348 = vld [vmem:[%s1339 + $0x20] sm:$0xf]
  %v1349 = vld [vmem:[%s1339 + $0x24] sm:$0xf]
  %v1350 = vld [vmem:[%s1339 + $0x28] sm:$0xf]
  %v1351 = vld [vmem:[%s1339 + $0x2c] sm:$0xf]
  %v1352 = vld [vmem:[%s1339 + $0x30] sm:$0x3]
  %v1366 = vunpack.c.l.b16 %v1340
  %v1367 = vunpack.c.l.b16 %v1341
  %v1368 = vunpack.c.l.b16 %v1342
  %v1369 = vunpack.c.l.b16 %v1343
  %v1370 = vunpack.c.l.b16 %v1344
  %v1371 = vunpack.c.l.b16 %v1345
  %v1372 = vunpack.c.l.b16 %v1346
  %v1373 = vunpack.c.l.b16 %v1347
  %v1374 = vunpack.c.l.b16 %v1348
  %v1375 = vunpack.c.l.b16 %v1349
  %v1376 = vunpack.c.l.b16 %v1350
  %v1377 = vunpack.c.l.b16 %v1351
  %v1378 = vunpack.c.l.b16 %v1352
  %v1379 = vpack.c.b16 %v1367, %v1366
  %v1380 = vpack.c.b16 %v1369, %v1368
  %v1381 = vpack.c.b16 %v1371, %v1370
  %v1382 = vpack.c.b16 %v1373, %v1372
  %v1383 = vpack.c.b16 %v1375, %v1374
  %v1384 = vpack.c.b16 %v1377, %v1376
  %v1385 = vpack.c.b16 %v1378, %v1378
  %v1393 = vsel %vm945, %v1321, 0
  %v1396 = vsel %vm945, %v1322, 0
  %v1399 = vsel %vm945, %v1323, 0
  %v1402 = vsel %vm945, %v1324, 0
  %v1405 = vsel %vm949, %v1385, 0
  %1407 = vmatprep.subr.bf16.mxu0 0
  %1408 = vmatpush1.bf16.msra.mxu0 %v1379
  %1409 = vmatprep.subr.bf16.mxu0 0
  %1410 = vmatpush1.bf16.msra.mxu0 %v1380
  %1411 = vmatprep.subr.bf16.mxu0 0
  %1412 = vmatpush1.bf16.msra.mxu0 %v1381
  %1413 = vmatprep.subr.bf16.mxu0 0
  %1414 = vmatpush1.bf16.msra.mxu0 %v1382
  %1415 = vmatprep.subr.bf16.mxu0 0
  %1416 = vmatpush1.bf16.msra.mxu0 %v1383
  %1417 = vmatprep.subr.bf16.mxu0 0
  %1418 = vmatpush1.bf16.msra.mxu0 %v1384
  %1419 = vmatprep.subr.bf16.mxu0 0
  %1420 = vmatpush1.bf16.msra.mxu0 %v1405
  %1421 = vmatprep.subr.bf16.mxu0 0
  %1422 = vmatpush1.bf16.msra.mxu0 0
  %1423 = vmatprep.subr.bf16.mxu0 0
  %1424 = vmatpush1.bf16.msra.mxu0 0
  %1425 = vmatprep.subr.bf16.mxu0 0
  %1426 = vmatpush1.bf16.msra.mxu0 0
  %1427 = vmatprep.subr.bf16.mxu0 0
  %1428 = vmatpush1.bf16.msra.mxu0 0
  %1429 = vmatprep.subr.bf16.mxu0 0
  %1430 = vmatpush1.bf16.msra.mxu0 0
  %1431 = vmatprep.subr.bf16.mxu0 0
  %1432 = vmatpush1.bf16.msra.mxu0 0
  %1433 = vmatprep.subr.bf16.mxu0 0
  %1434 = vmatpush1.bf16.msra.mxu0 0
  %1435 = vmatprep.subr.bf16.mxu0 0
  %1436 = vmatpush1.bf16.msra.mxu0 0
  %1437 = vmatprep.subr.bf16.mxu0 0
  %1438 = vmatpush1.bf16.msra.mxu0 0
  %1439 = vmatprep.mubr.bf16.mxu0 0
  %1440 = vmatmul.mubr.bf16.gmra.mrb[0].mxu0 %v1393
  %v1441 = vpop.f32.mrb[0].mxu0
  %v1442 = vadd.f32 0.0, %v1441
  %v1443 = vpop.f32.mrb[0].mxu0
  %v1444 = vpop.f32.mrb[0].mxu0
  %v1445 = vadd.f32 0.0, %v1444
  %v1446 = vpop.f32.mrb[0].mxu0
  %1447 = vmatprep.mubr.bf16.mxu0 0
  %1448 = vmatmul.mubr.bf16.gmra.mrb[0].mxu0 %v1396
  %v1449 = vpop.f32.mrb[0].mxu0
  %v1450 = vadd.f32 0.0, %v1449
  %v1451 = vpop.f32.mrb[0].mxu0
  %v1452 = vpop.f32.mrb[0].mxu0
  %v1453 = vadd.f32 0.0, %v1452
  %v1454 = vpop.f32.mrb[0].mxu0
  %1455 = vmatprep.mubr.bf16.mxu0 0
  %1456 = vmatmul.mubr.bf16.gmra.mrb[0].mxu0 %v1399
  %v1457 = vpop.f32.mrb[0].mxu0
  %v1458 = vadd.f32 0.0, %v1457
  %v1459 = vpop.f32.mrb[0].mxu0
  %v1460 = vpop.f32.mrb[0].mxu0
  %v1461 = vadd.f32 0.0, %v1460
  %v1462 = vpop.f32.mrb[0].mxu0
  %1463 = vmatprep.mubr.bf16.mxu0 0
  %1464 = vmatmul.mubr.bf16.gmra.mrb[0].mxu0 %v1402
  %v1465 = vpop.f32.mrb[0].mxu0
  %v1466 = vadd.f32 0.0, %v1465
  %v1467 = vpop.f32.mrb[0].mxu0
  %v1468 = vpop.f32.mrb[0].mxu0
  %v1469 = vadd.f32 0.0, %v1468
  %v1470 = vpop.f32.mrb[0].mxu0
  %1471 = vdwg.mxu0
  %v1485 = vunpack.c.l.b16 %v1326
  %v1486 = vunpack.c.l.b16 %v1327
  %v1487 = vunpack.c.l.b16 %v1328
  %v1488 = vunpack.c.l.b16 %v1329
  %v1489 = vunpack.c.l.b16 %v1330
  %v1490 = vunpack.c.l.b16 %v1331
  %v1491 = vunpack.c.l.b16 %v1332
  %v1492 = vunpack.c.l.b16 %v1333
  %v1493 = vunpack.c.l.b16 %v1334
  %v1494 = vunpack.c.l.b16 %v1335
  %v1495 = vunpack.c.l.b16 %v1336
  %v1496 = vunpack.c.l.b16 %v1337
  %v1497 = vunpack.c.l.b16 %v1338
  %v1498 = vpack.c.b16 %v1486, %v1485
  %v1499 = vpack.c.b16 %v1488, %v1487
  %v1500 = vpack.c.b16 %v1490, %v1489
  %v1501 = vpack.c.b16 %v1492, %v1491
  %v1502 = vpack.c.b16 %v1494, %v1493
  %v1503 = vpack.c.b16 %v1496, %v1495
  %v1504 = vpack.c.b16 %v1497, %v1497
  %v1512 = vsel %vm945, %v1317, 0
  %v1515 = vsel %vm945, %v1318, 0
  %v1518 = vsel %vm945, %v1319, 0
  %v1521 = vsel %vm945, %v1320, 0
  %v1524 = vsel %vm949, %v1504, 0
  %1526 = vmatprep.subr.bf16.mxu0 0
  %1527 = vmatpush1.bf16.msra.mxu0 %v1498
  %1528 = vmatprep.subr.bf16.mxu0 0
  %1529 = vmatpush1.bf16.msra.mxu0 %v1499
  %1530 = vmatprep.subr.bf16.mxu0 0
  %1531 = vmatpush1.bf16.msra.mxu0 %v1500
  %1532 = vmatprep.subr.bf16.mxu0 0
  %1533 = vmatpush1.bf16.msra.mxu0 %v1501
  %1534 = vmatprep.subr.bf16.mxu0 0
  %1535 = vmatpush1.bf16.msra.mxu0 %v1502
  %1536 = vmatprep.subr.bf16.mxu0 0
  %1537 = vmatpush1.bf16.msra.mxu0 %v1503
  %1538 = vmatprep.subr.bf16.mxu0 0
  %1539 = vmatpush1.bf16.msra.mxu0 %v1524
  %1540 = vmatprep.subr.bf16.mxu0 0
  %1541 = vmatpush1.bf16.msra.mxu0 0
  %1542 = vmatprep.subr.bf16.mxu0 0
  %1543 = vmatpush1.bf16.msra.mxu0 0
  %1544 = vmatprep.subr.bf16.mxu0 0
  %1545 = vmatpush1.bf16.msra.mxu0 0
  %1546 = vmatprep.subr.bf16.mxu0 0
  %1547 = vmatpush1.bf16.msra.mxu0 0
  %1548 = vmatprep.subr.bf16.mxu0 0
  %1549 = vmatpush1.bf16.msra.mxu0 0
  %1550 = vmatprep.subr.bf16.mxu0 0
  %1551 = vmatpush1.bf16.msra.mxu0 0
  %1552 = vmatprep.subr.bf16.mxu0 0
  %1553 = vmatpush1.bf16.msra.mxu0 0
  %1554 = vmatprep.subr.bf16.mxu0 0
  %1555 = vmatpush1.bf16.msra.mxu0 0
  %1556 = vmatprep.subr.bf16.mxu0 0
  %1557 = vmatpush1.bf16.msra.mxu0 0
  %1558 = vmatprep.mubr.bf16.mxu0 0
  %1559 = vmatmul.mubr.bf16.gmra.mrb[0].mxu0 %v1512
  %v1560 = vpop.f32.mrb[0].mxu0
  %v1561 = vadd.f32 %v1442, %v1560
  %v1562 = vpop.f32.mrb[0].mxu0
  %v1563 = vpop.f32.mrb[0].mxu0
  %v1564 = vadd.f32 %v1445, %v1563
  %v1565 = vpop.f32.mrb[0].mxu0
  %1566 = vmatprep.mubr.bf16.mxu0 0
  %1567 = vmatmul.mubr.bf16.gmra.mrb[0].mxu0 %v1515
  %v1568 = vpop.f32.mrb[0].mxu0
  %v1569 = vadd.f32 %v1450, %v1568
  %v1570 = vpop.f32.mrb[0].mxu0
  %v1571 = vpop.f32.mrb[0].mxu0
  %v1572 = vadd.f32 %v1453, %v1571
  %v1573 = vpop.f32.mrb[0].mxu0
  %1574 = vmatprep.mubr.bf16.mxu0 0
  %1575 = vmatmul.mubr.bf16.gmra.mrb[0].mxu0 %v1518
  %v1576 = vpop.f32.mrb[0].mxu0
  %v1577 = vadd.f32 %v1458, %v1576
  %v1578 = vpop.f32.mrb[0].mxu0
  %v1579 = vpop.f32.mrb[0].mxu0
  %v1580 = vadd.f32 %v1461, %v1579
  %v1581 = vpop.f32.mrb[0].mxu0
  %1582 = vmatprep.mubr.bf16.mxu0 0
  %1583 = vmatmul.mubr.bf16.gmra.mrb[0].mxu0 %v1521
  %v1584 = vpop.f32.mrb[0].mxu0
  %v1585 = vadd.f32 %v1466, %v1584
  %v1586 = vpop.f32.mrb[0].mxu0
  %v1587 = vpop.f32.mrb[0].mxu0
  %v1588 = vadd.f32 %v1469, %v1587
  %v1589 = vpop.f32.mrb[0].mxu0
  %1590 = vdwg.mxu0
  %v1592 = vlaneseq
  %v1593 = vshrl.u32 %v1592, 7
  %v1594 = vsub.s32 0, %v1593
  %v1595 = vrot.slane %v291, %v1594
  %v1597 = vadd.f32 %v1561, %v1595
  %v1598 = vadd.f32 %v1564, %v1595
  %v1599 = vadd.f32 %v1569, %v1595
  %v1600 = vadd.f32 %v1572, %v1595
  %v1601 = vadd.f32 %v1577, %v1595
  %v1602 = vadd.f32 %v1580, %v1595
  %v1603 = vadd.f32 %v1585, %v1595
  %v1604 = vadd.f32 %v1588, %v1595
  %s1605 = scalar_lea.vmem %s3, 156
  %v1606 = vld [vmem:[%s1605] sm:$0xf]
  %v1607 = vld [vmem:[%s1605 + $0x4] sm:$0xf]
  %v1608 = vld [vmem:[%s1605 + $0x8] sm:$0xf]
  %v1609 = vld [vmem:[%s1605 + $0xc] sm:$0xf]
  %v1610 = vld [vmem:[%s1605 + $0x10] sm:$0xf]
  %v1611 = vld [vmem:[%s1605 + $0x14] sm:$0xf]
  %v1612 = vld [vmem:[%s1605 + $0x18] sm:$0xf]
  %v1613 = vld [vmem:[%s1605 + $0x1c] sm:$0xf]
  %v1614 = vld [vmem:[%s1605 + $0x20] sm:$0xf]
  %v1615 = vld [vmem:[%s1605 + $0x24] sm:$0xf]
  %v1616 = vld [vmem:[%s1605 + $0x28] sm:$0xf]
  %v1617 = vld [vmem:[%s1605 + $0x2c] sm:$0xf]
  %v1618 = vld [vmem:[%s1605 + $0x30] sm:$0x3]
  %v1619 = vpack.c.bf16 %v1316, %v1316
  %v1633 = vunpack.c.l.b16 %v1606
  %v1634 = vunpack.c.l.b16 %v1607
  %v1635 = vunpack.c.l.b16 %v1608
  %v1636 = vunpack.c.l.b16 %v1609
  %v1637 = vunpack.c.l.b16 %v1610
  %v1638 = vunpack.c.l.b16 %v1611
  %v1639 = vunpack.c.l.b16 %v1612
  %v1640 = vunpack.c.l.b16 %v1613
  %v1641 = vunpack.c.l.b16 %v1614
  %v1642 = vunpack.c.l.b16 %v1615
  %v1643 = vunpack.c.l.b16 %v1616
  %v1644 = vunpack.c.l.b16 %v1617
  %v1645 = vunpack.c.l.b16 %v1618
  %v1646 = vpack.c.b16 %v1634, %v1633
  %v1647 = vpack.c.b16 %v1636, %v1635
  %v1648 = vpack.c.b16 %v1638, %v1637
  %v1649 = vpack.c.b16 %v1640, %v1639
  %v1650 = vpack.c.b16 %v1642, %v1641
  %v1651 = vpack.c.b16 %v1644, %v1643
  %v1652 = vpack.c.b16 %v1645, %v1645
  %v1660 = vsel %vm945, %v1619, 0
  %v1663 = vsel %vm949, %v1652, 0
  %1665 = vmatprep.subr.bf16.mxu0 0
  %1666 = vmatpush1.bf16.msra.mxu0 %v1646
  %1667 = vmatprep.subr.bf16.mxu0 0
  %1668 = vmatpush1.bf16.msra.mxu0 %v1647
  %1669 = vmatprep.subr.bf16.mxu0 0
  %1670 = vmatpush1.bf16.msra.mxu0 %v1648
  %1671 = vmatprep.subr.bf16.mxu0 0
  %1672 = vmatpush1.bf16.msra.mxu0 %v1649
  %1673 = vmatprep.subr.bf16.mxu0 0
  %1674 = vmatpush1.bf16.msra.mxu0 %v1650
  %1675 = vmatprep.subr.bf16.mxu0 0
  %1676 = vmatpush1.bf16.msra.mxu0 %v1651
  %1677 = vmatprep.subr.bf16.mxu0 0
  %1678 = vmatpush1.bf16.msra.mxu0 %v1663
  %1679 = vmatprep.subr.bf16.mxu0 0
  %1680 = vmatpush1.bf16.msra.mxu0 0
  %1681 = vmatprep.subr.bf16.mxu0 0
  %1682 = vmatpush1.bf16.msra.mxu0 0
  %1683 = vmatprep.subr.bf16.mxu0 0
  %1684 = vmatpush1.bf16.msra.mxu0 0
  %1685 = vmatprep.subr.bf16.mxu0 0
  %1686 = vmatpush1.bf16.msra.mxu0 0
  %1687 = vmatprep.subr.bf16.mxu0 0
  %1688 = vmatpush1.bf16.msra.mxu0 0
  %1689 = vmatprep.subr.bf16.mxu0 0
  %1690 = vmatpush1.bf16.msra.mxu0 0
  %1691 = vmatprep.subr.bf16.mxu0 0
  %1692 = vmatpush1.bf16.msra.mxu0 0
  %1693 = vmatprep.subr.bf16.mxu0 0
  %1694 = vmatpush1.bf16.msra.mxu0 0
  %1695 = vmatprep.subr.bf16.mxu0 0
  %1696 = vmatpush1.bf16.msra.mxu0 0
  %1697 = vmatprep.mubr.bf16.mxu0 0
  %1698 = vmatmul.mubr.bf16.gmra.mrb[0].mxu0 %v1660
  %v1699 = vpop.f32.mrb[0].mxu0
  %v1700 = vadd.f32 0.0, %v1699
  %v1701 = vpop.f32.mrb[0].mxu0
  %v1702 = vpop.f32.mrb[0].mxu0
  %v1703 = vpop.f32.mrb[0].mxu0
  %1704 = vdwg.mxu0
  %v1705 = vadd.f32 %v1597, %v1700
  %v1706 = vtanh.pop %v1705
  %v1707 = vpack.c.bf16 %v1706, %v1706
  %v1709 = vsel %vm945, %v1707, 0
  %1711 = vmatprep.subr.bf16.mxu0 0
  %1712 = vmatpush1.bf16.msra.mxu0 %v1646
  %1713 = vmatprep.subr.bf16.mxu0 0
  %1714 = vmatpush1.bf16.msra.mxu0 %v1647
  %1715 = vmatprep.subr.bf16.mxu0 0
  %1716 = vmatpush1.bf16.msra.mxu0 %v1648
  %1717 = vmatprep.subr.bf16.mxu0 0
  %1718 = vmatpush1.bf16.msra.mxu0 %v1649
  %1719 = vmatprep.subr.bf16.mxu0 0
  %1720 = vmatpush1.bf16.msra.mxu0 %v1650
  %1721 = vmatprep.subr.bf16.mxu0 0
  %1722 = vmatpush1.bf16.msra.mxu0 %v1651
  %1723 = vmatprep.subr.bf16.mxu0 0
  %1724 = vmatpush1.bf16.msra.mxu0 %v1663
  %1725 = vmatprep.subr.bf16.mxu0 0
  %1726 = vmatpush1.bf16.msra.mxu0 0
  %1727 = vmatprep.subr.bf16.mxu0 0
  %1728 = vmatpush1.bf16.msra.mxu0 0
  %1729 = vmatprep.subr.bf16.mxu0 0
  %1730 = vmatpush1.bf16.msra.mxu0 0
  %1731 = vmatprep.subr.bf16.mxu0 0
  %1732 = vmatpush1.bf16.msra.mxu0 0
  %1733 = vmatprep.subr.bf16.mxu0 0
  %1734 = vmatpush1.bf16.msra.mxu0 0
  %1735 = vmatprep.subr.bf16.mxu0 0
  %1736 = vmatpush1.bf16.msra.mxu0 0
  %1737 = vmatprep.subr.bf16.mxu0 0
  %1738 = vmatpush1.bf16.msra.mxu0 0
  %1739 = vmatprep.subr.bf16.mxu0 0
  %1740 = vmatpush1.bf16.msra.mxu0 0
  %1741 = vmatprep.subr.bf16.mxu0 0
  %1742 = vmatpush1.bf16.msra.mxu0 0
  %1743 = vmatprep.mubr.bf16.mxu0 0
  %1744 = vmatmul.mubr.bf16.gmra.mrb[0].mxu0 %v1709
  %v1745 = vpop.f32.mrb[0].mxu0
  %v1746 = vadd.f32 0.0, %v1745
  %v1747 = vpop.f32.mrb[0].mxu0
  %v1748 = vpop.f32.mrb[0].mxu0
  %v1749 = vpop.f32.mrb[0].mxu0
  %1750 = vdwg.mxu0
  %v1751 = vadd.f32 %v1598, %v1746
  %v1752 = vtanh.pop %v1751
  %v1753 = vpack.c.bf16 %v1752, %v1752
  %v1755 = vsel %vm945, %v1753, 0
  %1757 = vmatprep.subr.bf16.mxu0 0
  %1758 = vmatpush1.bf16.msra.mxu0 %v1646
  %1759 = vmatprep.subr.bf16.mxu0 0
  %1760 = vmatpush1.bf16.msra.mxu0 %v1647
  %1761 = vmatprep.subr.bf16.mxu0 0
  %1762 = vmatpush1.bf16.msra.mxu0 %v1648
  %1763 = vmatprep.subr.bf16.mxu0 0
  %1764 = vmatpush1.bf16.msra.mxu0 %v1649
  %1765 = vmatprep.subr.bf16.mxu0 0
  %1766 = vmatpush1.bf16.msra.mxu0 %v1650
  %1767 = vmatprep.subr.bf16.mxu0 0
  %1768 = vmatpush1.bf16.msra.mxu0 %v1651
  %1769 = vmatprep.subr.bf16.mxu0 0
  %1770 = vmatpush1.bf16.msra.mxu0 %v1663
  %1771 = vmatprep.subr.bf16.mxu0 0
  %1772 = vmatpush1.bf16.msra.mxu0 0
  %1773 = vmatprep.subr.bf16.mxu0 0
  %1774 = vmatpush1.bf16.msra.mxu0 0
  %1775 = vmatprep.subr.bf16.mxu0 0
  %1776 = vmatpush1.bf16.msra.mxu0 0
  %1777 = vmatprep.subr.bf16.mxu0 0
  %1778 = vmatpush1.bf16.msra.mxu0 0
  %1779 = vmatprep.subr.bf16.mxu0 0
  %1780 = vmatpush1.bf16.msra.mxu0 0
  %1781 = vmatprep.subr.bf16.mxu0 0
  %1782 = vmatpush1.bf16.msra.mxu0 0
  %1783 = vmatprep.subr.bf16.mxu0 0
  %1784 = vmatpush1.bf16.msra.mxu0 0
  %1785 = vmatprep.subr.bf16.mxu0 0
  %1786 = vmatpush1.bf16.msra.mxu0 0
  %1787 = vmatprep.subr.bf16.mxu0 0
  %1788 = vmatpush1.bf16.msra.mxu0 0
  %1789 = vmatprep.mubr.bf16.mxu0 0
  %1790 = vmatmul.mubr.bf16.gmra.mrb[0].mxu0 %v1755
  %v1791 = vpop.f32.mrb[0].mxu0
  %v1792 = vadd.f32 0.0, %v1791
  %v1793 = vpop.f32.mrb[0].mxu0
  %v1794 = vpop.f32.mrb[0].mxu0
  %v1795 = vpop.f32.mrb[0].mxu0
  %1796 = vdwg.mxu0
  %v1797 = vadd.f32 %v1599, %v1792
  %v1798 = vtanh.pop %v1797
  %v1799 = vpack.c.bf16 %v1798, %v1798
  %v1801 = vsel %vm945, %v1799, 0
  %1803 = vmatprep.subr.bf16.mxu0 0
  %1804 = vmatpush1.bf16.msra.mxu0 %v1646
  %1805 = vmatprep.subr.bf16.mxu0 0
  %1806 = vmatpush1.bf16.msra.mxu0 %v1647
  %1807 = vmatprep.subr.bf16.mxu0 0
  %1808 = vmatpush1.bf16.msra.mxu0 %v1648
  %1809 = vmatprep.subr.bf16.mxu0 0
  %1810 = vmatpush1.bf16.msra.mxu0 %v1649
  %1811 = vmatprep.subr.bf16.mxu0 0
  %1812 = vmatpush1.bf16.msra.mxu0 %v1650
  %1813 = vmatprep.subr.bf16.mxu0 0
  %1814 = vmatpush1.bf16.msra.mxu0 %v1651
  %1815 = vmatprep.subr.bf16.mxu0 0
  %1816 = vmatpush1.bf16.msra.mxu0 %v1663
  %1817 = vmatprep.subr.bf16.mxu0 0
  %1818 = vmatpush1.bf16.msra.mxu0 0
  %1819 = vmatprep.subr.bf16.mxu0 0
  %1820 = vmatpush1.bf16.msra.mxu0 0
  %1821 = vmatprep.subr.bf16.mxu0 0
  %1822 = vmatpush1.bf16.msra.mxu0 0
  %1823 = vmatprep.subr.bf16.mxu0 0
  %1824 = vmatpush1.bf16.msra.mxu0 0
  %1825 = vmatprep.subr.bf16.mxu0 0
  %1826 = vmatpush1.bf16.msra.mxu0 0
  %1827 = vmatprep.subr.bf16.mxu0 0
  %1828 = vmatpush1.bf16.msra.mxu0 0
  %1829 = vmatprep.subr.bf16.mxu0 0
  %1830 = vmatpush1.bf16.msra.mxu0 0
  %1831 = vmatprep.subr.bf16.mxu0 0
  %1832 = vmatpush1.bf16.msra.mxu0 0
  %1833 = vmatprep.subr.bf16.mxu0 0
  %1834 = vmatpush1.bf16.msra.mxu0 0
  %1835 = vmatprep.mubr.bf16.mxu0 0
  %1836 = vmatmul.mubr.bf16.gmra.mrb[0].mxu0 %v1801
  %v1837 = vpop.f32.mrb[0].mxu0
  %v1838 = vadd.f32 0.0, %v1837
  %v1839 = vpop.f32.mrb[0].mxu0
  %v1840 = vpop.f32.mrb[0].mxu0
  %v1841 = vpop.f32.mrb[0].mxu0
  %1842 = vdwg.mxu0
  %v1843 = vadd.f32 %v1600, %v1838
  %v1844 = vtanh.pop %v1843
  %v1845 = vpack.c.bf16 %v1844, %v1844
  %v1847 = vsel %vm945, %v1845, 0
  %1849 = vmatprep.subr.bf16.mxu0 0
  %1850 = vmatpush1.bf16.msra.mxu0 %v1646
  %1851 = vmatprep.subr.bf16.mxu0 0
  %1852 = vmatpush1.bf16.msra.mxu0 %v1647
  %1853 = vmatprep.subr.bf16.mxu0 0
  %1854 = vmatpush1.bf16.msra.mxu0 %v1648
  %1855 = vmatprep.subr.bf16.mxu0 0
  %1856 = vmatpush1.bf16.msra.mxu0 %v1649
  %1857 = vmatprep.subr.bf16.mxu0 0
  %1858 = vmatpush1.bf16.msra.mxu0 %v1650
  %1859 = vmatprep.subr.bf16.mxu0 0
  %1860 = vmatpush1.bf16.msra.mxu0 %v1651
  %1861 = vmatprep.subr.bf16.mxu0 0
  %1862 = vmatpush1.bf16.msra.mxu0 %v1663
  %1863 = vmatprep.subr.bf16.mxu0 0
  %1864 = vmatpush1.bf16.msra.mxu0 0
  %1865 = vmatprep.subr.bf16.mxu0 0
  %1866 = vmatpush1.bf16.msra.mxu0 0
  %1867 = vmatprep.subr.bf16.mxu0 0
  %1868 = vmatpush1.bf16.msra.mxu0 0
  %1869 = vmatprep.subr.bf16.mxu0 0
  %1870 = vmatpush1.bf16.msra.mxu0 0
  %1871 = vmatprep.subr.bf16.mxu0 0
  %1872 = vmatpush1.bf16.msra.mxu0 0
  %1873 = vmatprep.subr.bf16.mxu0 0
  %1874 = vmatpush1.bf16.msra.mxu0 0
  %1875 = vmatprep.subr.bf16.mxu0 0
  %1876 = vmatpush1.bf16.msra.mxu0 0
  %1877 = vmatprep.subr.bf16.mxu0 0
  %1878 = vmatpush1.bf16.msra.mxu0 0
  %1879 = vmatprep.subr.bf16.mxu0 0
  %1880 = vmatpush1.bf16.msra.mxu0 0
  %1881 = vmatprep.mubr.bf16.mxu0 0
  %1882 = vmatmul.mubr.bf16.gmra.mrb[0].mxu0 %v1847
  %v1883 = vpop.f32.mrb[0].mxu0
  %v1884 = vadd.f32 0.0, %v1883
  %v1885 = vpop.f32.mrb[0].mxu0
  %v1886 = vpop.f32.mrb[0].mxu0
  %v1887 = vpop.f32.mrb[0].mxu0
  %1888 = vdwg.mxu0
  %v1889 = vadd.f32 %v1601, %v1884
  %v1890 = vtanh.pop %v1889
  %v1891 = vpack.c.bf16 %v1890, %v1890
  %v1893 = vsel %vm945, %v1891, 0
  %1895 = vmatprep.subr.bf16.mxu0 0
  %1896 = vmatpush1.bf16.msra.mxu0 %v1646
  %1897 = vmatprep.subr.bf16.mxu0 0
  %1898 = vmatpush1.bf16.msra.mxu0 %v1647
  %1899 = vmatprep.subr.bf16.mxu0 0
  %1900 = vmatpush1.bf16.msra.mxu0 %v1648
  %1901 = vmatprep.subr.bf16.mxu0 0
  %1902 = vmatpush1.bf16.msra.mxu0 %v1649
  %1903 = vmatprep.subr.bf16.mxu0 0
  %1904 = vmatpush1.bf16.msra.mxu0 %v1650
  %1905 = vmatprep.subr.bf16.mxu0 0
  %1906 = vmatpush1.bf16.msra.mxu0 %v1651
  %1907 = vmatprep.subr.bf16.mxu0 0
  %1908 = vmatpush1.bf16.msra.mxu0 %v1663
  %1909 = vmatprep.subr.bf16.mxu0 0
  %1910 = vmatpush1.bf16.msra.mxu0 0
  %1911 = vmatprep.subr.bf16.mxu0 0
  %1912 = vmatpush1.bf16.msra.mxu0 0
  %1913 = vmatprep.subr.bf16.mxu0 0
  %1914 = vmatpush1.bf16.msra.mxu0 0
  %1915 = vmatprep.subr.bf16.mxu0 0
  %1916 = vmatpush1.bf16.msra.mxu0 0
  %1917 = vmatprep.subr.bf16.mxu0 0
  %1918 = vmatpush1.bf16.msra.mxu0 0
  %1919 = vmatprep.subr.bf16.mxu0 0
  %1920 = vmatpush1.bf16.msra.mxu0 0
  %1921 = vmatprep.subr.bf16.mxu0 0
  %1922 = vmatpush1.bf16.msra.mxu0 0
  %1923 = vmatprep.subr.bf16.mxu0 0
  %1924 = vmatpush1.bf16.msra.mxu0 0
  %1925 = vmatprep.subr.bf16.mxu0 0
  %1926 = vmatpush1.bf16.msra.mxu0 0
  %1927 = vmatprep.mubr.bf16.mxu0 0
  %1928 = vmatmul.mubr.bf16.gmra.mrb[0].mxu0 %v1893
  %v1929 = vpop.f32.mrb[0].mxu0
  %v1930 = vadd.f32 0.0, %v1929
  %v1931 = vpop.f32.mrb[0].mxu0
  %v1932 = vpop.f32.mrb[0].mxu0
  %v1933 = vpop.f32.mrb[0].mxu0
  %1934 = vdwg.mxu0
  %v1935 = vadd.f32 %v1602, %v1930
  %v1936 = vtanh.pop %v1935
  %v1937 = vpack.c.bf16 %v1936, %v1936
  %v1939 = vsel %vm945, %v1937, 0
  %1941 = vmatprep.subr.bf16.mxu0 0
  %1942 = vmatpush1.bf16.msra.mxu0 %v1646
  %1943 = vmatprep.subr.bf16.mxu0 0
  %1944 = vmatpush1.bf16.msra.mxu0 %v1647
  %1945 = vmatprep.subr.bf16.mxu0 0
  %1946 = vmatpush1.bf16.msra.mxu0 %v1648
  %1947 = vmatprep.subr.bf16.mxu0 0
  %1948 = vmatpush1.bf16.msra.mxu0 %v1649
  %1949 = vmatprep.subr.bf16.mxu0 0
  %1950 = vmatpush1.bf16.msra.mxu0 %v1650
  %1951 = vmatprep.subr.bf16.mxu0 0
  %1952 = vmatpush1.bf16.msra.mxu0 %v1651
  %1953 = vmatprep.subr.bf16.mxu0 0
  %1954 = vmatpush1.bf16.msra.mxu0 %v1663
  %1955 = vmatprep.subr.bf16.mxu0 0
  %1956 = vmatpush1.bf16.msra.mxu0 0
  %1957 = vmatprep.subr.bf16.mxu0 0
  %1958 = vmatpush1.bf16.msra.mxu0 0
  %1959 = vmatprep.subr.bf16.mxu0 0
  %1960 = vmatpush1.bf16.msra.mxu0 0
  %1961 = vmatprep.subr.bf16.mxu0 0
  %1962 = vmatpush1.bf16.msra.mxu0 0
  %1963 = vmatprep.subr.bf16.mxu0 0
  %1964 = vmatpush1.bf16.msra.mxu0 0
  %1965 = vmatprep.subr.bf16.mxu0 0
  %1966 = vmatpush1.bf16.msra.mxu0 0
  %1967 = vmatprep.subr.bf16.mxu0 0
  %1968 = vmatpush1.bf16.msra.mxu0 0
  %1969 = vmatprep.subr.bf16.mxu0 0
  %1970 = vmatpush1.bf16.msra.mxu0 0
  %1971 = vmatprep.subr.bf16.mxu0 0
  %1972 = vmatpush1.bf16.msra.mxu0 0
  %1973 = vmatprep.mubr.bf16.mxu0 0
  %1974 = vmatmul.mubr.bf16.gmra.mrb[0].mxu0 %v1939
  %v1975 = vpop.f32.mrb[0].mxu0
  %v1976 = vadd.f32 0.0, %v1975
  %v1977 = vpop.f32.mrb[0].mxu0
  %v1978 = vpop.f32.mrb[0].mxu0
  %v1979 = vpop.f32.mrb[0].mxu0
  %1980 = vdwg.mxu0
  %v1981 = vadd.f32 %v1603, %v1976
  %v1982 = vtanh.pop %v1981
  %v1983 = vpack.c.bf16 %v1982, %v1982
  %v1985 = vsel %vm945, %v1983, 0
  %1987 = vmatprep.subr.bf16.mxu0 0
  %1988 = vmatpush1.bf16.msra.mxu0 %v1646
  %1989 = vmatprep.subr.bf16.mxu0 0
  %1990 = vmatpush1.bf16.msra.mxu0 %v1647
  %1991 = vmatprep.subr.bf16.mxu0 0
  %1992 = vmatpush1.bf16.msra.mxu0 %v1648
  %1993 = vmatprep.subr.bf16.mxu0 0
  %1994 = vmatpush1.bf16.msra.mxu0 %v1649
  %1995 = vmatprep.subr.bf16.mxu0 0
  %1996 = vmatpush1.bf16.msra.mxu0 %v1650
  %1997 = vmatprep.subr.bf16.mxu0 0
  %1998 = vmatpush1.bf16.msra.mxu0 %v1651
  %1999 = vmatprep.subr.bf16.mxu0 0
  %2000 = vmatpush1.bf16.msra.mxu0 %v1663
  %2001 = vmatprep.subr.bf16.mxu0 0
  %2002 = vmatpush1.bf16.msra.mxu0 0
  %2003 = vmatprep.subr.bf16.mxu0 0
  %2004 = vmatpush1.bf16.msra.mxu0 0
  %2005 = vmatprep.subr.bf16.mxu0 0
  %2006 = vmatpush1.bf16.msra.mxu0 0
  %2007 = vmatprep.subr.bf16.mxu0 0
  %2008 = vmatpush1.bf16.msra.mxu0 0
  %2009 = vmatprep.subr.bf16.mxu0 0
  %2010 = vmatpush1.bf16.msra.mxu0 0
  %2011 = vmatprep.subr.bf16.mxu0 0
  %2012 = vmatpush1.bf16.msra.mxu0 0
  %2013 = vmatprep.subr.bf16.mxu0 0
  %2014 = vmatpush1.bf16.msra.mxu0 0
  %2015 = vmatprep.subr.bf16.mxu0 0
  %2016 = vmatpush1.bf16.msra.mxu0 0
  %2017 = vmatprep.subr.bf16.mxu0 0
  %2018 = vmatpush1.bf16.msra.mxu0 0
  %2019 = vmatprep.mubr.bf16.mxu0 0
  %2020 = vmatmul.mubr.bf16.gmra.mrb[0].mxu0 %v1985
  %v2021 = vpop.f32.mrb[0].mxu0
  %v2022 = vadd.f32 0.0, %v2021
  %v2023 = vpop.f32.mrb[0].mxu0
  %v2024 = vpop.f32.mrb[0].mxu0
  %v2025 = vpop.f32.mrb[0].mxu0
  %2026 = vdwg.mxu0
  %v2027 = vadd.f32 %v1604, %v2022
  %v2028 = vtanh.pop %v2027
  %v2029 = vpack.c.bf16 %v1752, %v1706
  %v2030 = vpack.c.bf16 %v1844, %v1798
  %v2031 = vpack.c.bf16 %v1936, %v1890
  %v2032 = vpack.c.bf16 %v2028, %v1982
  %v2033 = vpack.c.bf16 %v1982, %v2028
  %v2034 = vpack.c.bf16 %v1890, %v1936
  %v2035 = vpack.c.bf16 %v1798, %v1844
  %v2036 = vpack.c.bf16 %v1706, %v1752
  %s2037 = scalar_lea.vmem %s3, 208
  %v2038 = vld [vmem:[%s2037] sm:$0xf]
  %v2039 = vld [vmem:[%s2037 + $0x4] sm:$0xf]
  %v2040 = vld [vmem:[%s2037 + $0x8] sm:$0xf]
  %v2041 = vld [vmem:[%s2037 + $0xc] sm:$0xf]
  %v2042 = vld [vmem:[%s2037 + $0x10] sm:$0xf]
  %v2043 = vld [vmem:[%s2037 + $0x14] sm:$0xf]
  %v2044 = vld [vmem:[%s2037 + $0x18] sm:$0xf]
  %v2045 = vld [vmem:[%s2037 + $0x1c] sm:$0xf]
  %v2046 = vld [vmem:[%s2037 + $0x20] sm:$0xf]
  %v2047 = vld [vmem:[%s2037 + $0x24] sm:$0xf]
  %v2048 = vld [vmem:[%s2037 + $0x28] sm:$0xf]
  %v2049 = vld [vmem:[%s2037 + $0x2c] sm:$0xf]
  %v2050 = vld [vmem:[%s2037 + $0x30] sm:$0x3]
  %s2051 = scalar_lea.vmem %s3, 260
  %v2052 = vld [vmem:[%s2051] sm:$0xf]
  %v2053 = vld [vmem:[%s2051 + $0x4] sm:$0xf]
  %v2054 = vld [vmem:[%s2051 + $0x8] sm:$0xf]
  %v2055 = vld [vmem:[%s2051 + $0xc] sm:$0xf]
  %v2056 = vld [vmem:[%s2051 + $0x10] sm:$0xf]
  %v2057 = vld [vmem:[%s2051 + $0x14] sm:$0xf]
  %v2058 = vld [vmem:[%s2051 + $0x18] sm:$0xf]
  %v2059 = vld [vmem:[%s2051 + $0x1c] sm:$0xf]
  %v2060 = vld [vmem:[%s2051 + $0x20] sm:$0xf]
  %v2061 = vld [vmem:[%s2051 + $0x24] sm:$0xf]
  %v2062 = vld [vmem:[%s2051 + $0x28] sm:$0xf]
  %v2063 = vld [vmem:[%s2051 + $0x2c] sm:$0xf]
  %v2064 = vld [vmem:[%s2051 + $0x30] sm:$0x3]
  %v2078 = vunpack.c.l.b16 %v2052
  %v2079 = vunpack.c.l.b16 %v2053
  %v2080 = vunpack.c.l.b16 %v2054
  %v2081 = vunpack.c.l.b16 %v2055
  %v2082 = vunpack.c.l.b16 %v2056
  %v2083 = vunpack.c.l.b16 %v2057
  %v2084 = vunpack.c.l.b16 %v2058
  %v2085 = vunpack.c.l.b16 %v2059
  %v2086 = vunpack.c.l.b16 %v2060
  %v2087 = vunpack.c.l.b16 %v2061
  %v2088 = vunpack.c.l.b16 %v2062
  %v2089 = vunpack.c.l.b16 %v2063
  %v2090 = vunpack.c.l.b16 %v2064
  %v2091 = vpack.c.b16 %v2079, %v2078
  %v2092 = vpack.c.b16 %v2081, %v2080
  %v2093 = vpack.c.b16 %v2083, %v2082
  %v2094 = vpack.c.b16 %v2085, %v2084
  %v2095 = vpack.c.b16 %v2087, %v2086
  %v2096 = vpack.c.b16 %v2089, %v2088
  %v2097 = vpack.c.b16 %v2090, %v2090
  %v2105 = vsel %vm945, %v2033, 0
  %v2108 = vsel %vm945, %v2034, 0
  %v2111 = vsel %vm945, %v2035, 0
  %v2114 = vsel %vm945, %v2036, 0
  %v2117 = vsel %vm949, %v2097, 0
  %2119 = vmatprep.subr.bf16.mxu0 0
  %2120 = vmatpush1.bf16.msra.mxu0 %v2091
  %2121 = vmatprep.subr.bf16.mxu0 0
  %2122 = vmatpush1.bf16.msra.mxu0 %v2092
  %2123 = vmatprep.subr.bf16.mxu0 0
  %2124 = vmatpush1.bf16.msra.mxu0 %v2093
  %2125 = vmatprep.subr.bf16.mxu0 0
  %2126 = vmatpush1.bf16.msra.mxu0 %v2094
  %2127 = vmatprep.subr.bf16.mxu0 0
  %2128 = vmatpush1.bf16.msra.mxu0 %v2095
  %2129 = vmatprep.subr.bf16.mxu0 0
  %2130 = vmatpush1.bf16.msra.mxu0 %v2096
  %2131 = vmatprep.subr.bf16.mxu0 0
  %2132 = vmatpush1.bf16.msra.mxu0 %v2117
  %2133 = vmatprep.subr.bf16.mxu0 0
  %2134 = vmatpush1.bf16.msra.mxu0 0
  %2135 = vmatprep.subr.bf16.mxu0 0
  %2136 = vmatpush1.bf16.msra.mxu0 0
  %2137 = vmatprep.subr.bf16.mxu0 0
  %2138 = vmatpush1.bf16.msra.mxu0 0
  %2139 = vmatprep.subr.bf16.mxu0 0
  %2140 = vmatpush1.bf16.msra.mxu0 0
  %2141 = vmatprep.subr.bf16.mxu0 0
  %2142 = vmatpush1.bf16.msra.mxu0 0
  %2143 = vmatprep.subr.bf16.mxu0 0
  %2144 = vmatpush1.bf16.msra.mxu0 0
  %2145 = vmatprep.subr.bf16.mxu0 0
  %2146 = vmatpush1.bf16.msra.mxu0 0
  %2147 = vmatprep.subr.bf16.mxu0 0
  %2148 = vmatpush1.bf16.msra.mxu0 0
  %2149 = vmatprep.subr.bf16.mxu0 0
  %2150 = vmatpush1.bf16.msra.mxu0 0
  %2151 = vmatprep.mubr.bf16.mxu0 0
  %2152 = vmatmul.mubr.bf16.gmra.mrb[0].mxu0 %v2105
  %v2153 = vpop.f32.mrb[0].mxu0
  %v2154 = vadd.f32 0.0, %v2153
  %v2155 = vpop.f32.mrb[0].mxu0
  %v2156 = vpop.f32.mrb[0].mxu0
  %v2157 = vadd.f32 0.0, %v2156
  %v2158 = vpop.f32.mrb[0].mxu0
  %2159 = vmatprep.mubr.bf16.mxu0 0
  %2160 = vmatmul.mubr.bf16.gmra.mrb[0].mxu0 %v2108
  %v2161 = vpop.f32.mrb[0].mxu0
  %v2162 = vadd.f32 0.0, %v2161
  %v2163 = vpop.f32.mrb[0].mxu0
  %v2164 = vpop.f32.mrb[0].mxu0
  %v2165 = vadd.f32 0.0, %v2164
  %v2166 = vpop.f32.mrb[0].mxu0
  %2167 = vmatprep.mubr.bf16.mxu0 0
  %2168 = vmatmul.mubr.bf16.gmra.mrb[0].mxu0 %v2111
  %v2169 = vpop.f32.mrb[0].mxu0
  %v2170 = vadd.f32 0.0, %v2169
  %v2171 = vpop.f32.mrb[0].mxu0
  %v2172 = vpop.f32.mrb[0].mxu0
  %v2173 = vadd.f32 0.0, %v2172
  %v2174 = vpop.f32.mrb[0].mxu0
  %2175 = vmatprep.mubr.bf16.mxu0 0
  %2176 = vmatmul.mubr.bf16.gmra.mrb[0].mxu0 %v2114
  %v2177 = vpop.f32.mrb[0].mxu0
  %v2178 = vadd.f32 0.0, %v2177
  %v2179 = vpop.f32.mrb[0].mxu0
  %v2180 = vpop.f32.mrb[0].mxu0
  %v2181 = vadd.f32 0.0, %v2180
  %v2182 = vpop.f32.mrb[0].mxu0
  %2183 = vdwg.mxu0
  %v2197 = vunpack.c.l.b16 %v2038
  %v2198 = vunpack.c.l.b16 %v2039
  %v2199 = vunpack.c.l.b16 %v2040
  %v2200 = vunpack.c.l.b16 %v2041
  %v2201 = vunpack.c.l.b16 %v2042
  %v2202 = vunpack.c.l.b16 %v2043
  %v2203 = vunpack.c.l.b16 %v2044
  %v2204 = vunpack.c.l.b16 %v2045
  %v2205 = vunpack.c.l.b16 %v2046
  %v2206 = vunpack.c.l.b16 %v2047
  %v2207 = vunpack.c.l.b16 %v2048
  %v2208 = vunpack.c.l.b16 %v2049
  %v2209 = vunpack.c.l.b16 %v2050
  %v2210 = vpack.c.b16 %v2198, %v2197
  %v2211 = vpack.c.b16 %v2200, %v2199
  %v2212 = vpack.c.b16 %v2202, %v2201
  %v2213 = vpack.c.b16 %v2204, %v2203
  %v2214 = vpack.c.b16 %v2206, %v2205
  %v2215 = vpack.c.b16 %v2208, %v2207
  %v2216 = vpack.c.b16 %v2209, %v2209
  %v2224 = vsel %vm945, %v2029, 0
  %v2227 = vsel %vm945, %v2030, 0
  %v2230 = vsel %vm945, %v2031, 0
  %v2233 = vsel %vm945, %v2032, 0
  %v2236 = vsel %vm949, %v2216, 0
  %2238 = vmatprep.subr.bf16.mxu0 0
  %2239 = vmatpush1.bf16.msra.mxu0 %v2210
  %2240 = vmatprep.subr.bf16.mxu0 0
  %2241 = vmatpush1.bf16.msra.mxu0 %v2211
  %2242 = vmatprep.subr.bf16.mxu0 0
  %2243 = vmatpush1.bf16.msra.mxu0 %v2212
  %2244 = vmatprep.subr.bf16.mxu0 0
  %2245 = vmatpush1.bf16.msra.mxu0 %v2213
  %2246 = vmatprep.subr.bf16.mxu0 0
  %2247 = vmatpush1.bf16.msra.mxu0 %v2214
  %2248 = vmatprep.subr.bf16.mxu0 0
  %2249 = vmatpush1.bf16.msra.mxu0 %v2215
  %2250 = vmatprep.subr.bf16.mxu0 0
  %2251 = vmatpush1.bf16.msra.mxu0 %v2236
  %2252 = vmatprep.subr.bf16.mxu0 0
  %2253 = vmatpush1.bf16.msra.mxu0 0
  %2254 = vmatprep.subr.bf16.mxu0 0
  %2255 = vmatpush1.bf16.msra.mxu0 0
  %2256 = vmatprep.subr.bf16.mxu0 0
  %2257 = vmatpush1.bf16.msra.mxu0 0
  %2258 = vmatprep.subr.bf16.mxu0 0
  %2259 = vmatpush1.bf16.msra.mxu0 0
  %2260 = vmatprep.subr.bf16.mxu0 0
  %2261 = vmatpush1.bf16.msra.mxu0 0
  %2262 = vmatprep.subr.bf16.mxu0 0
  %2263 = vmatpush1.bf16.msra.mxu0 0
  %2264 = vmatprep.subr.bf16.mxu0 0
  %2265 = vmatpush1.bf16.msra.mxu0 0
  %2266 = vmatprep.subr.bf16.mxu0 0
  %2267 = vmatpush1.bf16.msra.mxu0 0
  %2268 = vmatprep.subr.bf16.mxu0 0
  %2269 = vmatpush1.bf16.msra.mxu0 0
  %2270 = vmatprep.mubr.bf16.mxu0 0
  %2271 = vmatmul.mubr.bf16.gmra.mrb[0].mxu0 %v2224
  %v2272 = vpop.f32.mrb[0].mxu0
  %v2273 = vadd.f32 %v2154, %v2272
  %v2274 = vpop.f32.mrb[0].mxu0
  %v2275 = vpop.f32.mrb[0].mxu0
  %v2276 = vadd.f32 %v2157, %v2275
  %v2277 = vpop.f32.mrb[0].mxu0
  %2278 = vmatprep.mubr.bf16.mxu0 0
  %2279 = vmatmul.mubr.bf16.gmra.mrb[0].mxu0 %v2227
  %v2280 = vpop.f32.mrb[0].mxu0
  %v2281 = vadd.f32 %v2162, %v2280
  %v2282 = vpop.f32.mrb[0].mxu0
  %v2283 = vpop.f32.mrb[0].mxu0
  %v2284 = vadd.f32 %v2165, %v2283
  %v2285 = vpop.f32.mrb[0].mxu0
  %2286 = vmatprep.mubr.bf16.mxu0 0
  %2287 = vmatmul.mubr.bf16.gmra.mrb[0].mxu0 %v2230
  %v2288 = vpop.f32.mrb[0].mxu0
  %v2289 = vadd.f32 %v2170, %v2288
  %v2290 = vpop.f32.mrb[0].mxu0
  %v2291 = vpop.f32.mrb[0].mxu0
  %v2292 = vadd.f32 %v2173, %v2291
  %v2293 = vpop.f32.mrb[0].mxu0
  %2294 = vmatprep.mubr.bf16.mxu0 0
  %2295 = vmatmul.mubr.bf16.gmra.mrb[0].mxu0 %v2233
  %v2296 = vpop.f32.mrb[0].mxu0
  %v2297 = vadd.f32 %v2178, %v2296
  %v2298 = vpop.f32.mrb[0].mxu0
  %v2299 = vpop.f32.mrb[0].mxu0
  %v2300 = vadd.f32 %v2181, %v2299
  %v2301 = vpop.f32.mrb[0].mxu0
  %2302 = vdwg.mxu0
  %v2304 = vlaneseq
  %v2305 = vshrl.u32 %v2304, 7
  %v2306 = vsub.s32 0, %v2305
  %v2307 = vrot.slane %v293, %v2306
  %v2309 = vadd.f32 %v2273, %v2307
  %v2310 = vadd.f32 %v2276, %v2307
  %v2311 = vadd.f32 %v2281, %v2307
  %v2312 = vadd.f32 %v2284, %v2307
  %v2313 = vadd.f32 %v2289, %v2307
  %v2314 = vadd.f32 %v2292, %v2307
  %v2315 = vadd.f32 %v2297, %v2307
  %v2316 = vadd.f32 %v2300, %v2307
  %s2317 = scalar_lea.vmem %s3, 312
  %v2318 = vld [vmem:[%s2317] sm:$0xf]
  %v2319 = vld [vmem:[%s2317 + $0x4] sm:$0xf]
  %v2320 = vld [vmem:[%s2317 + $0x8] sm:$0xf]
  %v2321 = vld [vmem:[%s2317 + $0xc] sm:$0xf]
  %v2322 = vld [vmem:[%s2317 + $0x10] sm:$0xf]
  %v2323 = vld [vmem:[%s2317 + $0x14] sm:$0xf]
  %v2324 = vld [vmem:[%s2317 + $0x18] sm:$0xf]
  %v2325 = vld [vmem:[%s2317 + $0x1c] sm:$0xf]
  %v2326 = vld [vmem:[%s2317 + $0x20] sm:$0xf]
  %v2327 = vld [vmem:[%s2317 + $0x24] sm:$0xf]
  %v2328 = vld [vmem:[%s2317 + $0x28] sm:$0xf]
  %v2329 = vld [vmem:[%s2317 + $0x2c] sm:$0xf]
  %v2330 = vld [vmem:[%s2317 + $0x30] sm:$0x3]
  %v2331 = vpack.c.bf16 %v2028, %v2028
  %v2345 = vunpack.c.l.b16 %v2318
  %v2346 = vunpack.c.l.b16 %v2319
  %v2347 = vunpack.c.l.b16 %v2320
  %v2348 = vunpack.c.l.b16 %v2321
  %v2349 = vunpack.c.l.b16 %v2322
  %v2350 = vunpack.c.l.b16 %v2323
  %v2351 = vunpack.c.l.b16 %v2324
  %v2352 = vunpack.c.l.b16 %v2325
  %v2353 = vunpack.c.l.b16 %v2326
  %v2354 = vunpack.c.l.b16 %v2327
  %v2355 = vunpack.c.l.b16 %v2328
  %v2356 = vunpack.c.l.b16 %v2329
  %v2357 = vunpack.c.l.b16 %v2330
  %v2358 = vpack.c.b16 %v2346, %v2345
  %v2359 = vpack.c.b16 %v2348, %v2347
  %v2360 = vpack.c.b16 %v2350, %v2349
  %v2361 = vpack.c.b16 %v2352, %v2351
  %v2362 = vpack.c.b16 %v2354, %v2353
  %v2363 = vpack.c.b16 %v2356, %v2355
  %v2364 = vpack.c.b16 %v2357, %v2357
  %v2372 = vsel %vm945, %v2331, 0
  %v2375 = vsel %vm949, %v2364, 0
  %2377 = vmatprep.subr.bf16.mxu0 0
  %2378 = vmatpush1.bf16.msra.mxu0 %v2358
  %2379 = vmatprep.subr.bf16.mxu0 0
  %2380 = vmatpush1.bf16.msra.mxu0 %v2359
  %2381 = vmatprep.subr.bf16.mxu0 0
  %2382 = vmatpush1.bf16.msra.mxu0 %v2360
  %2383 = vmatprep.subr.bf16.mxu0 0
  %2384 = vmatpush1.bf16.msra.mxu0 %v2361
  %2385 = vmatprep.subr.bf16.mxu0 0
  %2386 = vmatpush1.bf16.msra.mxu0 %v2362
  %2387 = vmatprep.subr.bf16.mxu0 0
  %2388 = vmatpush1.bf16.msra.mxu0 %v2363
  %2389 = vmatprep.subr.bf16.mxu0 0
  %2390 = vmatpush1.bf16.msra.mxu0 %v2375
  %2391 = vmatprep.subr.bf16.mxu0 0
  %2392 = vmatpush1.bf16.msra.mxu0 0
  %2393 = vmatprep.subr.bf16.mxu0 0
  %2394 = vmatpush1.bf16.msra.mxu0 0
  %2395 = vmatprep.subr.bf16.mxu0 0
  %2396 = vmatpush1.bf16.msra.mxu0 0
  %2397 = vmatprep.subr.bf16.mxu0 0
  %2398 = vmatpush1.bf16.msra.mxu0 0
  %2399 = vmatprep.subr.bf16.mxu0 0
  %2400 = vmatpush1.bf16.msra.mxu0 0
  %2401 = vmatprep.subr.bf16.mxu0 0
  %2402 = vmatpush1.bf16.msra.mxu0 0
  %2403 = vmatprep.subr.bf16.mxu0 0
  %2404 = vmatpush1.bf16.msra.mxu0 0
  %2405 = vmatprep.subr.bf16.mxu0 0
  %2406 = vmatpush1.bf16.msra.mxu0 0
  %2407 = vmatprep.subr.bf16.mxu0 0
  %2408 = vmatpush1.bf16.msra.mxu0 0
  %2409 = vmatprep.mubr.bf16.mxu0 0
  %2410 = vmatmul.mubr.bf16.gmra.mrb[0].mxu0 %v2372
  %v2411 = vpop.f32.mrb[0].mxu0
  %v2412 = vadd.f32 0.0, %v2411
  %v2413 = vpop.f32.mrb[0].mxu0
  %v2414 = vpop.f32.mrb[0].mxu0
  %v2415 = vpop.f32.mrb[0].mxu0
  %2416 = vdwg.mxu0
  %v2417 = vadd.f32 %v2309, %v2412
  %v2418 = vtanh.pop %v2417
  %v2419 = vpack.c.bf16 %v2418, %v2418
  %v2421 = vsel %vm945, %v2419, 0
  %2423 = vmatprep.subr.bf16.mxu0 0
  %2424 = vmatpush1.bf16.msra.mxu0 %v2358
  %2425 = vmatprep.subr.bf16.mxu0 0
  %2426 = vmatpush1.bf16.msra.mxu0 %v2359
  %2427 = vmatprep.subr.bf16.mxu0 0
  %2428 = vmatpush1.bf16.msra.mxu0 %v2360
  %2429 = vmatprep.subr.bf16.mxu0 0
  %2430 = vmatpush1.bf16.msra.mxu0 %v2361
  %2431 = vmatprep.subr.bf16.mxu0 0
  %2432 = vmatpush1.bf16.msra.mxu0 %v2362
  %2433 = vmatprep.subr.bf16.mxu0 0
  %2434 = vmatpush1.bf16.msra.mxu0 %v2363
  %2435 = vmatprep.subr.bf16.mxu0 0
  %2436 = vmatpush1.bf16.msra.mxu0 %v2375
  %2437 = vmatprep.subr.bf16.mxu0 0
  %2438 = vmatpush1.bf16.msra.mxu0 0
  %2439 = vmatprep.subr.bf16.mxu0 0
  %2440 = vmatpush1.bf16.msra.mxu0 0
  %2441 = vmatprep.subr.bf16.mxu0 0
  %2442 = vmatpush1.bf16.msra.mxu0 0
  %2443 = vmatprep.subr.bf16.mxu0 0
  %2444 = vmatpush1.bf16.msra.mxu0 0
  %2445 = vmatprep.subr.bf16.mxu0 0
  %2446 = vmatpush1.bf16.msra.mxu0 0
  %2447 = vmatprep.subr.bf16.mxu0 0
  %2448 = vmatpush1.bf16.msra.mxu0 0
  %2449 = vmatprep.subr.bf16.mxu0 0
  %2450 = vmatpush1.bf16.msra.mxu0 0
  %2451 = vmatprep.subr.bf16.mxu0 0
  %2452 = vmatpush1.bf16.msra.mxu0 0
  %2453 = vmatprep.subr.bf16.mxu0 0
  %2454 = vmatpush1.bf16.msra.mxu0 0
  %2455 = vmatprep.mubr.bf16.mxu0 0
  %2456 = vmatmul.mubr.bf16.gmra.mrb[0].mxu0 %v2421
  %v2457 = vpop.f32.mrb[0].mxu0
  %v2458 = vadd.f32 0.0, %v2457
  %v2459 = vpop.f32.mrb[0].mxu0
  %v2460 = vpop.f32.mrb[0].mxu0
  %v2461 = vpop.f32.mrb[0].mxu0
  %2462 = vdwg.mxu0
  %v2463 = vadd.f32 %v2310, %v2458
  %v2464 = vtanh.pop %v2463
  %v2465 = vpack.c.bf16 %v2464, %v2464
  %v2467 = vsel %vm945, %v2465, 0
  %2469 = vmatprep.subr.bf16.mxu0 0
  %2470 = vmatpush1.bf16.msra.mxu0 %v2358
  %2471 = vmatprep.subr.bf16.mxu0 0
  %2472 = vmatpush1.bf16.msra.mxu0 %v2359
  %2473 = vmatprep.subr.bf16.mxu0 0
  %2474 = vmatpush1.bf16.msra.mxu0 %v2360
  %2475 = vmatprep.subr.bf16.mxu0 0
  %2476 = vmatpush1.bf16.msra.mxu0 %v2361
  %2477 = vmatprep.subr.bf16.mxu0 0
  %2478 = vmatpush1.bf16.msra.mxu0 %v2362
  %2479 = vmatprep.subr.bf16.mxu0 0
  %2480 = vmatpush1.bf16.msra.mxu0 %v2363
  %2481 = vmatprep.subr.bf16.mxu0 0
  %2482 = vmatpush1.bf16.msra.mxu0 %v2375
  %2483 = vmatprep.subr.bf16.mxu0 0
  %2484 = vmatpush1.bf16.msra.mxu0 0
  %2485 = vmatprep.subr.bf16.mxu0 0
  %2486 = vmatpush1.bf16.msra.mxu0 0
  %2487 = vmatprep.subr.bf16.mxu0 0
  %2488 = vmatpush1.bf16.msra.mxu0 0
  %2489 = vmatprep.subr.bf16.mxu0 0
  %2490 = vmatpush1.bf16.msra.mxu0 0
  %2491 = vmatprep.subr.bf16.mxu0 0
  %2492 = vmatpush1.bf16.msra.mxu0 0
  %2493 = vmatprep.subr.bf16.mxu0 0
  %2494 = vmatpush1.bf16.msra.mxu0 0
  %2495 = vmatprep.subr.bf16.mxu0 0
  %2496 = vmatpush1.bf16.msra.mxu0 0
  %2497 = vmatprep.subr.bf16.mxu0 0
  %2498 = vmatpush1.bf16.msra.mxu0 0
  %2499 = vmatprep.subr.bf16.mxu0 0
  %2500 = vmatpush1.bf16.msra.mxu0 0
  %2501 = vmatprep.mubr.bf16.mxu0 0
  %2502 = vmatmul.mubr.bf16.gmra.mrb[0].mxu0 %v2467
  %v2503 = vpop.f32.mrb[0].mxu0
  %v2504 = vadd.f32 0.0, %v2503
  %v2505 = vpop.f32.mrb[0].mxu0
  %v2506 = vpop.f32.mrb[0].mxu0
  %v2507 = vpop.f32.mrb[0].mxu0
  %2508 = vdwg.mxu0
  %v2509 = vadd.f32 %v2311, %v2504
  %v2510 = vtanh.pop %v2509
  %v2511 = vpack.c.bf16 %v2510, %v2510
  %v2513 = vsel %vm945, %v2511, 0
  %2515 = vmatprep.subr.bf16.mxu0 0
  %2516 = vmatpush1.bf16.msra.mxu0 %v2358
  %2517 = vmatprep.subr.bf16.mxu0 0
  %2518 = vmatpush1.bf16.msra.mxu0 %v2359
  %2519 = vmatprep.subr.bf16.mxu0 0
  %2520 = vmatpush1.bf16.msra.mxu0 %v2360
  %2521 = vmatprep.subr.bf16.mxu0 0
  %2522 = vmatpush1.bf16.msra.mxu0 %v2361
  %2523 = vmatprep.subr.bf16.mxu0 0
  %2524 = vmatpush1.bf16.msra.mxu0 %v2362
  %2525 = vmatprep.subr.bf16.mxu0 0
  %2526 = vmatpush1.bf16.msra.mxu0 %v2363
  %2527 = vmatprep.subr.bf16.mxu0 0
  %2528 = vmatpush1.bf16.msra.mxu0 %v2375
  %2529 = vmatprep.subr.bf16.mxu0 0
  %2530 = vmatpush1.bf16.msra.mxu0 0
  %2531 = vmatprep.subr.bf16.mxu0 0
  %2532 = vmatpush1.bf16.msra.mxu0 0
  %2533 = vmatprep.subr.bf16.mxu0 0
  %2534 = vmatpush1.bf16.msra.mxu0 0
  %2535 = vmatprep.subr.bf16.mxu0 0
  %2536 = vmatpush1.bf16.msra.mxu0 0
  %2537 = vmatprep.subr.bf16.mxu0 0
  %2538 = vmatpush1.bf16.msra.mxu0 0
  %2539 = vmatprep.subr.bf16.mxu0 0
  %2540 = vmatpush1.bf16.msra.mxu0 0
  %2541 = vmatprep.subr.bf16.mxu0 0
  %2542 = vmatpush1.bf16.msra.mxu0 0
  %2543 = vmatprep.subr.bf16.mxu0 0
  %2544 = vmatpush1.bf16.msra.mxu0 0
  %2545 = vmatprep.subr.bf16.mxu0 0
  %2546 = vmatpush1.bf16.msra.mxu0 0
  %2547 = vmatprep.mubr.bf16.mxu0 0
  %2548 = vmatmul.mubr.bf16.gmra.mrb[0].mxu0 %v2513
  %v2549 = vpop.f32.mrb[0].mxu0
  %v2550 = vadd.f32 0.0, %v2549
  %v2551 = vpop.f32.mrb[0].mxu0
  %v2552 = vpop.f32.mrb[0].mxu0
  %v2553 = vpop.f32.mrb[0].mxu0
  %2554 = vdwg.mxu0
  %v2555 = vadd.f32 %v2312, %v2550
  %v2556 = vtanh.pop %v2555
  %v2557 = vpack.c.bf16 %v2556, %v2556
  %v2559 = vsel %vm945, %v2557, 0
  %2561 = vmatprep.subr.bf16.mxu0 0
  %2562 = vmatpush1.bf16.msra.mxu0 %v2358
  %2563 = vmatprep.subr.bf16.mxu0 0
  %2564 = vmatpush1.bf16.msra.mxu0 %v2359
  %2565 = vmatprep.subr.bf16.mxu0 0
  %2566 = vmatpush1.bf16.msra.mxu0 %v2360
  %2567 = vmatprep.subr.bf16.mxu0 0
  %2568 = vmatpush1.bf16.msra.mxu0 %v2361
  %2569 = vmatprep.subr.bf16.mxu0 0
  %2570 = vmatpush1.bf16.msra.mxu0 %v2362
  %2571 = vmatprep.subr.bf16.mxu0 0
  %2572 = vmatpush1.bf16.msra.mxu0 %v2363
  %2573 = vmatprep.subr.bf16.mxu0 0
  %2574 = vmatpush1.bf16.msra.mxu0 %v2375
  %2575 = vmatprep.subr.bf16.mxu0 0
  %2576 = vmatpush1.bf16.msra.mxu0 0
  %2577 = vmatprep.subr.bf16.mxu0 0
  %2578 = vmatpush1.bf16.msra.mxu0 0
  %2579 = vmatprep.subr.bf16.mxu0 0
  %2580 = vmatpush1.bf16.msra.mxu0 0
  %2581 = vmatprep.subr.bf16.mxu0 0
  %2582 = vmatpush1.bf16.msra.mxu0 0
  %2583 = vmatprep.subr.bf16.mxu0 0
  %2584 = vmatpush1.bf16.msra.mxu0 0
  %2585 = vmatprep.subr.bf16.mxu0 0
  %2586 = vmatpush1.bf16.msra.mxu0 0
  %2587 = vmatprep.subr.bf16.mxu0 0
  %2588 = vmatpush1.bf16.msra.mxu0 0
  %2589 = vmatprep.subr.bf16.mxu0 0
  %2590 = vmatpush1.bf16.msra.mxu0 0
  %2591 = vmatprep.subr.bf16.mxu0 0
  %2592 = vmatpush1.bf16.msra.mxu0 0
  %2593 = vmatprep.mubr.bf16.mxu0 0
  %2594 = vmatmul.mubr.bf16.gmra.mrb[0].mxu0 %v2559
  %v2595 = vpop.f32.mrb[0].mxu0
  %v2596 = vadd.f32 0.0, %v2595
  %v2597 = vpop.f32.mrb[0].mxu0
  %v2598 = vpop.f32.mrb[0].mxu0
  %v2599 = vpop.f32.mrb[0].mxu0
  %2600 = vdwg.mxu0
  %v2601 = vadd.f32 %v2313, %v2596
  %v2602 = vtanh.pop %v2601
  %v2603 = vpack.c.bf16 %v2602, %v2602
  %v2605 = vsel %vm945, %v2603, 0
  %2607 = vmatprep.subr.bf16.mxu0 0
  %2608 = vmatpush1.bf16.msra.mxu0 %v2358
  %2609 = vmatprep.subr.bf16.mxu0 0
  %2610 = vmatpush1.bf16.msra.mxu0 %v2359
  %2611 = vmatprep.subr.bf16.mxu0 0
  %2612 = vmatpush1.bf16.msra.mxu0 %v2360
  %2613 = vmatprep.subr.bf16.mxu0 0
  %2614 = vmatpush1.bf16.msra.mxu0 %v2361
  %2615 = vmatprep.subr.bf16.mxu0 0
  %2616 = vmatpush1.bf16.msra.mxu0 %v2362
  %2617 = vmatprep.subr.bf16.mxu0 0
  %2618 = vmatpush1.bf16.msra.mxu0 %v2363
  %2619 = vmatprep.subr.bf16.mxu0 0
  %2620 = vmatpush1.bf16.msra.mxu0 %v2375
  %2621 = vmatprep.subr.bf16.mxu0 0
  %2622 = vmatpush1.bf16.msra.mxu0 0
  %2623 = vmatprep.subr.bf16.mxu0 0
  %2624 = vmatpush1.bf16.msra.mxu0 0
  %2625 = vmatprep.subr.bf16.mxu0 0
  %2626 = vmatpush1.bf16.msra.mxu0 0
  %2627 = vmatprep.subr.bf16.mxu0 0
  %2628 = vmatpush1.bf16.msra.mxu0 0
  %2629 = vmatprep.subr.bf16.mxu0 0
  %2630 = vmatpush1.bf16.msra.mxu0 0
  %2631 = vmatprep.subr.bf16.mxu0 0
  %2632 = vmatpush1.bf16.msra.mxu0 0
  %2633 = vmatprep.subr.bf16.mxu0 0
  %2634 = vmatpush1.bf16.msra.mxu0 0
  %2635 = vmatprep.subr.bf16.mxu0 0
  %2636 = vmatpush1.bf16.msra.mxu0 0
  %2637 = vmatprep.subr.bf16.mxu0 0
  %2638 = vmatpush1.bf16.msra.mxu0 0
  %2639 = vmatprep.mubr.bf16.mxu0 0
  %2640 = vmatmul.mubr.bf16.gmra.mrb[0].mxu0 %v2605
  %v2641 = vpop.f32.mrb[0].mxu0
  %v2642 = vadd.f32 0.0, %v2641
  %v2643 = vpop.f32.mrb[0].mxu0
  %v2644 = vpop.f32.mrb[0].mxu0
  %v2645 = vpop.f32.mrb[0].mxu0
  %2646 = vdwg.mxu0
  %v2647 = vadd.f32 %v2314, %v2642
  %v2648 = vtanh.pop %v2647
  %v2649 = vpack.c.bf16 %v2648, %v2648
  %v2651 = vsel %vm945, %v2649, 0
  %2653 = vmatprep.subr.bf16.mxu0 0
  %2654 = vmatpush1.bf16.msra.mxu0 %v2358
  %2655 = vmatprep.subr.bf16.mxu0 0
  %2656 = vmatpush1.bf16.msra.mxu0 %v2359
  %2657 = vmatprep.subr.bf16.mxu0 0
  %2658 = vmatpush1.bf16.msra.mxu0 %v2360
  %2659 = vmatprep.subr.bf16.mxu0 0
  %2660 = vmatpush1.bf16.msra.mxu0 %v2361
  %2661 = vmatprep.subr.bf16.mxu0 0
  %2662 = vmatpush1.bf16.msra.mxu0 %v2362
  %2663 = vmatprep.subr.bf16.mxu0 0
  %2664 = vmatpush1.bf16.msra.mxu0 %v2363
  %2665 = vmatprep.subr.bf16.mxu0 0
  %2666 = vmatpush1.bf16.msra.mxu0 %v2375
  %2667 = vmatprep.subr.bf16.mxu0 0
  %2668 = vmatpush1.bf16.msra.mxu0 0
  %2669 = vmatprep.subr.bf16.mxu0 0
  %2670 = vmatpush1.bf16.msra.mxu0 0
  %2671 = vmatprep.subr.bf16.mxu0 0
  %2672 = vmatpush1.bf16.msra.mxu0 0
  %2673 = vmatprep.subr.bf16.mxu0 0
  %2674 = vmatpush1.bf16.msra.mxu0 0
  %2675 = vmatprep.subr.bf16.mxu0 0
  %2676 = vmatpush1.bf16.msra.mxu0 0
  %2677 = vmatprep.subr.bf16.mxu0 0
  %2678 = vmatpush1.bf16.msra.mxu0 0
  %2679 = vmatprep.subr.bf16.mxu0 0
  %2680 = vmatpush1.bf16.msra.mxu0 0
  %2681 = vmatprep.subr.bf16.mxu0 0
  %2682 = vmatpush1.bf16.msra.mxu0 0
  %2683 = vmatprep.subr.bf16.mxu0 0
  %2684 = vmatpush1.bf16.msra.mxu0 0
  %2685 = vmatprep.mubr.bf16.mxu0 0
  %2686 = vmatmul.mubr.bf16.gmra.mrb[0].mxu0 %v2651
  %v2687 = vpop.f32.mrb[0].mxu0
  %v2688 = vadd.f32 0.0, %v2687
  %v2689 = vpop.f32.mrb[0].mxu0
  %v2690 = vpop.f32.mrb[0].mxu0
  %v2691 = vpop.f32.mrb[0].mxu0
  %2692 = vdwg.mxu0
  %v2693 = vadd.f32 %v2315, %v2688
  %v2694 = vtanh.pop %v2693
  %v2695 = vpack.c.bf16 %v2694, %v2694
  %v2697 = vsel %vm945, %v2695, 0
  %2699 = vmatprep.subr.bf16.mxu0 0
  %2700 = vmatpush1.bf16.msra.mxu0 %v2358
  %2701 = vmatprep.subr.bf16.mxu0 0
  %2702 = vmatpush1.bf16.msra.mxu0 %v2359
  %2703 = vmatprep.subr.bf16.mxu0 0
  %2704 = vmatpush1.bf16.msra.mxu0 %v2360
  %2705 = vmatprep.subr.bf16.mxu0 0
  %2706 = vmatpush1.bf16.msra.mxu0 %v2361
  %2707 = vmatprep.subr.bf16.mxu0 0
  %2708 = vmatpush1.bf16.msra.mxu0 %v2362
  %2709 = vmatprep.subr.bf16.mxu0 0
  %2710 = vmatpush1.bf16.msra.mxu0 %v2363
  %2711 = vmatprep.subr.bf16.mxu0 0
  %2712 = vmatpush1.bf16.msra.mxu0 %v2375
  %2713 = vmatprep.subr.bf16.mxu0 0
  %2714 = vmatpush1.bf16.msra.mxu0 0
  %2715 = vmatprep.subr.bf16.mxu0 0
  %2716 = vmatpush1.bf16.msra.mxu0 0
  %2717 = vmatprep.subr.bf16.mxu0 0
  %2718 = vmatpush1.bf16.msra.mxu0 0
  %2719 = vmatprep.subr.bf16.mxu0 0
  %2720 = vmatpush1.bf16.msra.mxu0 0
  %2721 = vmatprep.subr.bf16.mxu0 0
  %2722 = vmatpush1.bf16.msra.mxu0 0
  %2723 = vmatprep.subr.bf16.mxu0 0
  %2724 = vmatpush1.bf16.msra.mxu0 0
  %2725 = vmatprep.subr.bf16.mxu0 0
  %2726 = vmatpush1.bf16.msra.mxu0 0
  %2727 = vmatprep.subr.bf16.mxu0 0
  %2728 = vmatpush1.bf16.msra.mxu0 0
  %2729 = vmatprep.subr.bf16.mxu0 0
  %2730 = vmatpush1.bf16.msra.mxu0 0
  %2731 = vmatprep.mubr.bf16.mxu0 0
  %2732 = vmatmul.mubr.bf16.gmra.mrb[0].mxu0 %v2697
  %v2733 = vpop.f32.mrb[0].mxu0
  %v2734 = vadd.f32 0.0, %v2733
  %v2735 = vpop.f32.mrb[0].mxu0
  %v2736 = vpop.f32.mrb[0].mxu0
  %v2737 = vpop.f32.mrb[0].mxu0
  %2738 = vdwg.mxu0
  %v2739 = vadd.f32 %v2316, %v2734
  %v2740 = vtanh.pop %v2739
  %v2741 = vpack.c.bf16 %v2740, %v2740
  %v2742 = vld [vmem:[%s5] sm:$0xf]
  %v2743 = vld [vmem:[%s5 + $0x4] sm:$0xf]
  %v2744 = vld [vmem:[%s5 + $0x8] sm:$0xf]
  %v2745 = vld [vmem:[%s5 + $0xc] sm:$0xf]
  %v2746 = vld [vmem:[%s5 + $0x10] sm:$0xf]
  %v2747 = vld [vmem:[%s5 + $0x14] sm:$0xf]
  %v2748 = vld [vmem:[%s5 + $0x18] sm:$0xf]
  %v2749 = vld [vmem:[%s5 + $0x1c] sm:$0xf]
  %v2750 = vld [vmem:[%s5 + $0x20] sm:$0xf]
  %v2751 = vld [vmem:[%s5 + $0x24] sm:$0xf]
  %v2752 = vld [vmem:[%s5 + $0x28] sm:$0xf]
  %v2753 = vld [vmem:[%s5 + $0x2c] sm:$0xf]
  %v2754 = vld [vmem:[%s5 + $0x30] sm:$0x3]
  %s2755 = scalar_lea.vmem %s5, 52
  %v2756 = vld [vmem:[%s2755] sm:$0xf]
  %v2757 = vld [vmem:[%s2755 + $0x4] sm:$0xf]
  %v2758 = vld [vmem:[%s2755 + $0x8] sm:$0xf]
  %v2759 = vld [vmem:[%s2755 + $0xc] sm:$0xf]
  %v2760 = vld [vmem:[%s2755 + $0x10] sm:$0xf]
  %v2761 = vld [vmem:[%s2755 + $0x14] sm:$0xf]
  %v2762 = vld [vmem:[%s2755 + $0x18] sm:$0xf]
  %v2763 = vld [vmem:[%s2755 + $0x1c] sm:$0xf]
  %v2764 = vld [vmem:[%s2755 + $0x20] sm:$0xf]
  %v2765 = vld [vmem:[%s2755 + $0x24] sm:$0xf]
  %v2766 = vld [vmem:[%s2755 + $0x28] sm:$0xf]
  %v2767 = vld [vmem:[%s2755 + $0x2c] sm:$0xf]
  %v2768 = vld [vmem:[%s2755 + $0x30] sm:$0x3]
  %v2782 = vunpack.c.l.b16 %v2756
  %v2783 = vunpack.c.l.b16 %v2757
  %v2784 = vunpack.c.l.b16 %v2758
  %v2785 = vunpack.c.l.b16 %v2759
  %v2786 = vunpack.c.l.b16 %v2760
  %v2787 = vunpack.c.l.b16 %v2761
  %v2788 = vunpack.c.l.b16 %v2762
  %v2789 = vunpack.c.l.b16 %v2763
  %v2790 = vunpack.c.l.b16 %v2764
  %v2791 = vunpack.c.l.b16 %v2765
  %v2792 = vunpack.c.l.b16 %v2766
  %v2793 = vunpack.c.l.b16 %v2767
  %v2794 = vunpack.c.l.b16 %v2768
  %v2795 = vpack.c.b16 %v2783, %v2782
  %v2796 = vpack.c.b16 %v2785, %v2784
  %v2797 = vpack.c.b16 %v2787, %v2786
  %v2798 = vpack.c.b16 %v2789, %v2788
  %v2799 = vpack.c.b16 %v2791, %v2790
  %v2800 = vpack.c.b16 %v2793, %v2792
  %v2801 = vpack.c.b16 %v2794, %v2794
  %v2809 = vsel %vm949, %v2801, 0
  %2811 = vmatprep.subr.bf16.mxu0 0
  %2812 = vmatpush1.bf16.msra.mxu0 %v2795
  %2813 = vmatprep.subr.bf16.mxu0 0
  %2814 = vmatpush1.bf16.msra.mxu0 %v2796
  %2815 = vmatprep.subr.bf16.mxu0 0
  %2816 = vmatpush1.bf16.msra.mxu0 %v2797
  %2817 = vmatprep.subr.bf16.mxu0 0
  %2818 = vmatpush1.bf16.msra.mxu0 %v2798
  %2819 = vmatprep.subr.bf16.mxu0 0
  %2820 = vmatpush1.bf16.msra.mxu0 %v2799
  %2821 = vmatprep.subr.bf16.mxu0 0
  %2822 = vmatpush1.bf16.msra.mxu0 %v2800
  %2823 = vmatprep.subr.bf16.mxu0 0
  %2824 = vmatpush1.bf16.msra.mxu0 %v2809
  %2825 = vmatprep.subr.bf16.mxu0 0
  %2826 = vmatpush1.bf16.msra.mxu0 0
  %2827 = vmatprep.subr.bf16.mxu0 0
  %2828 = vmatpush1.bf16.msra.mxu0 0
  %2829 = vmatprep.subr.bf16.mxu0 0
  %2830 = vmatpush1.bf16.msra.mxu0 0
  %2831 = vmatprep.subr.bf16.mxu0 0
  %2832 = vmatpush1.bf16.msra.mxu0 0
  %2833 = vmatprep.subr.bf16.mxu0 0
  %2834 = vmatpush1.bf16.msra.mxu0 0
  %2835 = vmatprep.subr.bf16.mxu0 0
  %2836 = vmatpush1.bf16.msra.mxu0 0
  %2837 = vmatprep.subr.bf16.mxu0 0
  %2838 = vmatpush1.bf16.msra.mxu0 0
  %2839 = vmatprep.subr.bf16.mxu0 0
  %2840 = vmatpush1.bf16.msra.mxu0 0
  %2841 = vmatprep.subr.bf16.mxu0 0
  %2842 = vmatpush1.bf16.msra.mxu0 0
  %2843 = vmatprep.mubr.bf16.mxu0 0
  %2844 = vmatmul.mubr.bf16.gmra.mrb[0].mxu0 %v2421
  %v2845 = vpop.f32.mrb[0].mxu0
  %v2846 = vadd.f32 0.0, %v2845
  %v2847 = vpop.f32.mrb[0].mxu0
  %v2848 = vpop.f32.mrb[0].mxu0
  %v2849 = vpop.f32.mrb[0].mxu0
  %2850 = vdwg.mxu0
  %v2864 = vunpack.c.l.b16 %v2742
  %v2865 = vunpack.c.l.b16 %v2743
  %v2866 = vunpack.c.l.b16 %v2744
  %v2867 = vunpack.c.l.b16 %v2745
  %v2868 = vunpack.c.l.b16 %v2746
  %v2869 = vunpack.c.l.b16 %v2747
  %v2870 = vunpack.c.l.b16 %v2748
  %v2871 = vunpack.c.l.b16 %v2749
  %v2872 = vunpack.c.l.b16 %v2750
  %v2873 = vunpack.c.l.b16 %v2751
  %v2874 = vunpack.c.l.b16 %v2752
  %v2875 = vunpack.c.l.b16 %v2753
  %v2876 = vunpack.c.l.b16 %v2754
  %v2877 = vpack.c.b16 %v2865, %v2864
  %v2878 = vpack.c.b16 %v2867, %v2866
  %v2879 = vpack.c.b16 %v2869, %v2868
  %v2880 = vpack.c.b16 %v2871, %v2870
  %v2881 = vpack.c.b16 %v2873, %v2872
  %v2882 = vpack.c.b16 %v2875, %v2874
  %v2883 = vpack.c.b16 %v2876, %v2876
  %v2891 = vsel %vm945, %v2741, 0
  %v2894 = vsel %vm949, %v2883, 0
  %2896 = vmatprep.subr.bf16.mxu0 0
  %2897 = vmatpush1.bf16.msra.mxu0 %v2877
  %2898 = vmatprep.subr.bf16.mxu0 0
  %2899 = vmatpush1.bf16.msra.mxu0 %v2878
  %2900 = vmatprep.subr.bf16.mxu0 0
  %2901 = vmatpush1.bf16.msra.mxu0 %v2879
  %2902 = vmatprep.subr.bf16.mxu0 0
  %2903 = vmatpush1.bf16.msra.mxu0 %v2880
  %2904 = vmatprep.subr.bf16.mxu0 0
  %2905 = vmatpush1.bf16.msra.mxu0 %v2881
  %2906 = vmatprep.subr.bf16.mxu0 0
  %2907 = vmatpush1.bf16.msra.mxu0 %v2882
  %2908 = vmatprep.subr.bf16.mxu0 0
  %2909 = vmatpush1.bf16.msra.mxu0 %v2894
  %2910 = vmatprep.subr.bf16.mxu0 0
  %2911 = vmatpush1.bf16.msra.mxu0 0
  %2912 = vmatprep.subr.bf16.mxu0 0
  %2913 = vmatpush1.bf16.msra.mxu0 0
  %2914 = vmatprep.subr.bf16.mxu0 0
  %2915 = vmatpush1.bf16.msra.mxu0 0
  %2916 = vmatprep.subr.bf16.mxu0 0
  %2917 = vmatpush1.bf16.msra.mxu0 0
  %2918 = vmatprep.subr.bf16.mxu0 0
  %2919 = vmatpush1.bf16.msra.mxu0 0
  %2920 = vmatprep.subr.bf16.mxu0 0
  %2921 = vmatpush1.bf16.msra.mxu0 0
  %2922 = vmatprep.subr.bf16.mxu0 0
  %2923 = vmatpush1.bf16.msra.mxu0 0
  %2924 = vmatprep.subr.bf16.mxu0 0
  %2925 = vmatpush1.bf16.msra.mxu0 0
  %2926 = vmatprep.subr.bf16.mxu0 0
  %2927 = vmatpush1.bf16.msra.mxu0 0
  %2928 = vmatprep.mubr.bf16.mxu0 0
  %2929 = vmatmul.mubr.bf16.gmra.mrb[0].mxu0 %v2891
  %v2930 = vpop.f32.mrb[0].mxu0
  %v2931 = vadd.f32 %v2846, %v2930
  %v2932 = vpop.f32.mrb[0].mxu0
  %v2933 = vpop.f32.mrb[0].mxu0
  %v2934 = vpop.f32.mrb[0].mxu0
  %2935 = vdwg.mxu0
  %v2937 = vlaneseq
  %v2938 = vshrl.u32 %v2937, 7
  %v2939 = vsub.s32 0, %v2938
  %v2940 = vrot.slane %v295, %v2939
  %v2942 = vadd.f32 %v2931, %v2940
  %vm2943 = vcmask 31744
  %2944 = vst.msk [vmem:[%s6] sm:$0xff] %vm2943, %v2942
  // Predicated region
  $region26: #{rnn_forward.1} parent=0 // pred_check
    _
  $region27: #{rnn_forward.1} parent=0 // pred_check_branch
    %2946 = sbr.rel (0) target = $region29
  $region28: #{rnn_forward.1} parent=0 // pred_region
    _
  $region29: #{rnn_forward.1} parent=0 // pred_fallthru
    _
  // Predicated region
  $region30: #{rnn_forward.1} parent=0 // pred_check
    _
  $region31: #{rnn_forward.1} parent=0 // pred_check_branch
    %2948 = sbr.rel (0) target = $region33
  $region32: #{rnn_forward.1} parent=0 // pred_region
    _
  $region33: #{rnn_forward.1} parent=0 // pred_fallthru
    _

</llo_original>
